<compile_context>
chip_gen: v7x
topology: tpu7x:2x2x1
jax: 0.10.0
libtpu: 0.0.40
codegen_flags: <defaults>
</compile_context>

<pallas_src>
import math
from functools import partial

import jax
import jax.numpy as jnp
from jax.experimental import pallas as pl
from jax.experimental.pallas import tpu as pltpu

D_MODEL = 128
N_HEAD = 4
HEAD_DIM = D_MODEL // N_HEAD     # 32
D_FF = D_MODEL                   # dim_feedforward = d_model in the PyTorch ctor
N_LAYERS = 4
LN_EPS = 1e-5


# ----------------------------- kernel ---------------------------------------


def _layernorm(x, gamma, beta):
    # f32 math, biased variance (matches PyTorch LayerNorm)
    mu = jnp.mean(x, axis=-1, keepdims=True)
    xc = x - mu
    var = jnp.mean(xc * xc, axis=-1, keepdims=True)
    return xc * jax.lax.rsqrt(var + LN_EPS) * gamma + beta


def fused_forward_kernel(x_ref, ew_ref, eb_ref, pos_ref, mask_ref,
                         wqkv_ref, bqkv_ref, wo_ref, bo_ref,
                         g1_ref, be1_ref, w1_ref, b1_ref, w2_ref, b2_ref,
                         g2_ref, be2_ref, dw_ref, db_ref,
                         o_ref, h_ref):
    f32, bf16 = jnp.float32, jnp.bfloat16

    l = pl.program_id(0)
    n_layers = pl.num_programs(0)

    d_model = wo_ref.shape[-1]
    head_dim = d_model // N_HEAD
    batch, out_dim = o_ref.shape
    bs = h_ref.shape[0]              # B * S  (s-major rows: row = s*B + b)
    seq = bs // batch

    # ---- embedding + positional encoding (first grid step only) ----
    @pl.when(l == 0)
    def _():
        h_ref[...] = (jnp.dot(x_ref[...].astype(bf16), ew_ref[...],
                              preferred_element_type=f32)
                      + eb_ref[...] + pos_ref[...])

    h = h_ref[...]                   # (B*S, D) f32
    hb = h.astype(bf16)

    # ---- fused QKV projection: one (B*S, D) x (D, 3D) matmul ----
    # 1/sqrt(head_dim) is pre-folded into the Wq columns / bq host-side.
    qkv = jnp.dot(hb, wqkv_ref[0], preferred_element_type=f32) + bqkv_ref[0]
    qkvb = qkv.astype(bf16)          # single downcast for all of Q,K,V

    # ---- attention: both batch elements fused via block mask ----
    scores = []
    for hd in range(N_HEAD):
        q_h = qkvb[:, hd * head_dim:(hd + 1) * head_dim]
        k_h = qkvb[:, d_model + hd * head_dim: d_model + (hd + 1) * head_dim]
        scores.append(jax.lax.dot_general(q_h, k_h, (((1,), (1,)), ((), ())),
                                          preferred_element_type=f32))  # (BS,BS)

    # batched softmax over all heads at once (mask pre-tiled host-side)
    s_all = jnp.concatenate(scores, axis=0) + mask_ref[...]   # (H*BS, BS)
    s_all = s_all - jnp.max(s_all, axis=-1, keepdims=True)
    e_all = jnp.exp(s_all)
    p_all = e_all * pl.reciprocal(jnp.sum(e_all, axis=-1, keepdims=True),
                                  approx=True)
    pb_all = p_all.astype(bf16)

    pvs = []
    for hd in range(N_HEAD):
        v_h = qkvb[:, 2 * d_model + hd * head_dim:
                   2 * d_model + (hd + 1) * head_dim]
        p_h = pb_all[hd * bs:(hd + 1) * bs, :]
        pvs.append(jnp.dot(p_h, v_h, preferred_element_type=f32))   # (BS, Hd)

    # concat heads along lanes, fold through unsplit Wo in ONE matmul
    pv = jnp.concatenate(pvs, axis=1).astype(bf16)                  # (BS, D)
    attn = jnp.dot(pv, wo_ref[0], preferred_element_type=f32) + bo_ref[0]

    # ---- post-norm residual blocks ----
    x1 = _layernorm(h + attn, g1_ref[0], be1_ref[0])
    h1 = jnp.maximum(jnp.dot(x1.astype(bf16), w1_ref[0],
                             preferred_element_type=f32) + b1_ref[0], 0.0)
    h2 = jnp.dot(h1.astype(bf16), w2_ref[0],
                 preferred_element_type=f32) + b2_ref[0]
    h_new = _layernorm(x1 + h2, g2_ref[0], be2_ref[0])
    h_ref[...] = h_new

    # ---- decoder (last grid step only): out[b] = sum_s h[s,b,:] @ dw[s] ----
    @pl.when(l == n_layers - 1)
    def _():
        hb2 = h_new.astype(bf16)
        acc = jnp.zeros((batch, out_dim), f32) + db_ref[...]
        for s in range(seq):
            rows = hb2[s * batch:(s + 1) * batch, :]        # contiguous, no gather
            acc = acc + jnp.dot(rows, dw_ref[s], preferred_element_type=f32)
        o_ref[...] = acc


# ----------------------------- wrapper ---------------------------------------


def _const_spec(a):
    n = a.ndim

    def imap(l):
        return (0,) * n

    return pl.BlockSpec(a.shape, imap)


def _layer_spec(a):
    n = a.ndim - 1

    def imap(l):
        return (l,) + (0,) * n

    return pl.BlockSpec((1,) + a.shape[1:], imap)


@partial(jax.jit, static_argnames=("output_size",))
def transformer_forward(x, params, output_size):
    # x: (B, 1, S, input_size) -> s-major slab (S*B, In), matching the (S,B,D)
    # layout the PyTorch encoder uses after the permute.
    B, _, S, In = x.shape
    x2d = x[:, 0].transpose(1, 0, 2).reshape(S * B, In)

    inputs = (x2d,
              params["emb_w"], params["emb_b"], params["pos"], params["mask"],
              params["wqkv"], params["bqkv"], params["wo"], params["bo"],
              params["g1"], params["be1"], params["w1"], params["b1"],
              params["w2"], params["b2"], params["g2"], params["be2"],
              params["dw"], params["db"])

    in_specs = [
        _const_spec(x2d),
        _const_spec(params["emb_w"]), _const_spec(params["emb_b"]),
        _const_spec(params["pos"]), _const_spec(params["mask"]),
        _layer_spec(params["wqkv"]), _layer_spec(params["bqkv"]),
        _layer_spec(params["wo"]), _layer_spec(params["bo"]),
        _layer_spec(params["g1"]), _layer_spec(params["be1"]),
        _layer_spec(params["w1"]), _layer_spec(params["b1"]),
        _layer_spec(params["w2"]), _layer_spec(params["b2"]),
        _layer_spec(params["g2"]), _layer_spec(params["be2"]),
        _const_spec(params["dw"]), _const_spec(params["db"]),
    ]

    out = pl.pallas_call(
        fused_forward_kernel,
        grid_spec=pltpu.PrefetchScalarGridSpec(
            num_scalar_prefetch=0,
            grid=(N_LAYERS,),
            in_specs=in_specs,
            out_specs=pl.BlockSpec((B, output_size), lambda l: (0, 0)),
            scratch_shapes=[pltpu.VMEM((B * S, D_MODEL), jnp.float32)]),
        out_shape=jax.ShapeDtypeStruct((B, output_size), jnp.float32),
        compiler_params=pltpu.CompilerParams(
            dimension_semantics=("arbitrary",)),
    )(*inputs)
    return out


# ----------------------------- parameters ------------------------------------


def positional_encoding(d_model, max_len):
    position = jnp.arange(max_len, dtype=jnp.float32)[:, None]
    div_term = jnp.exp(jnp.arange(0, d_model, 2, dtype=jnp.float32)
                       * (-jnp.log(jnp.float32(10000.0)) / d_model))
    ang = position * div_term                      # (max_len, d_model/2)
    enc = jnp.zeros((max_len, d_model), jnp.float32)
    enc = enc.at[:, 0::2].set(jnp.sin(ang))
    enc = enc.at[:, 1::2].set(jnp.cos(ang))
    return enc


def init_params(key, input_size, seq_length, output_size, batch):
    f32, bf16 = jnp.float32, jnp.bfloat16
    scale = 1.0 / math.sqrt(HEAD_DIM)

    def nrm(k, shape, s=0.05):
        return (s * jax.random.normal(k, shape)).astype(f32)

    keys = iter(jax.random.split(key, 2 + N_LAYERS * 8 + 2))

    emb_w = nrm(next(keys), (input_size, D_MODEL))    # Linear(in, 128) transposed
    emb_b = nrm(next(keys), (1, D_MODEL))

    pos = positional_encoding(D_MODEL, seq_length)    # (S, D)
    pos_rep = jnp.repeat(pos, batch, axis=0)          # (S*B, D), row = s*B + b

    # block mask: row/col r maps to batch r % B; cross-batch entries -> -1e30.
    bs = batch * seq_length
    rb = jnp.arange(bs) % batch
    mask = jnp.where(rb[:, None] == rb[None, :], 0.0, -1e30).astype(f32)
    mask = jnp.tile(mask, (N_HEAD, 1))                # (H*BS, BS), pre-tiled

    wqkv_l, bqkv_l, wo_l, bo_l = [], [], [], []
    w1_l, b1_l, w2_l, b2_l = [], [], [], []
    g1_l, be1_l, g2_l, be2_l = [], [], [], []
    for _ in range(N_LAYERS):
        # head h of Q/K/V lives in columns [h*32:(h+1)*32] of each D-block;
        # Wo rows follow the same head-major concat order.
        wq = nrm(next(keys), (D_MODEL, D_MODEL)) * scale   # fold 1/sqrt(hd)
        wk = nrm(next(keys), (D_MODEL, D_MODEL))
        wv = nrm(next(keys), (D_MODEL, D_MODEL))
        wo = nrm(next(keys), (D_MODEL, D_MODEL))
        bqkv = nrm(next(keys), (1, 3 * D_MODEL))
        bqkv = bqkv.at[:, :D_MODEL].multiply(scale)        # fold scale into bq
        wqkv_l.append(jnp.concatenate([wq, wk, wv], axis=1))   # (D, 3D)
        bqkv_l.append(bqkv)
        wo_l.append(wo)
        bo_l.append(jnp.zeros((1, D_MODEL), f32))
        w1_l.append(nrm(next(keys), (D_MODEL, D_FF)))
        b1_l.append(nrm(next(keys), (1, D_FF)))
        w2_l.append(nrm(next(keys), (D_FF, D_MODEL)))
        b2_l.append(jnp.zeros((1, D_MODEL), f32))
        g1_l.append(jnp.ones((1, D_MODEL), f32))
        be1_l.append(jnp.zeros((1, D_MODEL), f32))
        g2_l.append(jnp.ones((1, D_MODEL), f32))
        be2_l.append(jnp.zeros((1, D_MODEL), f32))

    # decoder: Linear(S*D, out); flatten order is (s-major, d-minor) per batch.
    # Kept UNPADDED (no dead zero DMA); final tiny store handles lane masking.
    dec_w = nrm(next(keys), (seq_length * D_MODEL, output_size))
    dec_b = nrm(next(keys), (1, output_size))

    return {
        "emb_w": emb_w.astype(bf16), "emb_b": emb_b,
        "pos": pos_rep, "mask": mask,
        "wqkv": jnp.stack(wqkv_l).astype(bf16),    # (L, D, 3D)
        "bqkv": jnp.stack(bqkv_l),                 # (L, 1, 3D) f32
        "wo": jnp.stack(wo_l).astype(bf16),        # (L, D, D)
        "bo": jnp.stack(bo_l),                     # (L, 1, D)
        "g1": jnp.stack(g1_l), "be1": jnp.stack(be1_l),
        "w1": jnp.stack(w1_l).astype(bf16),        # (L, D, FF)
        "b1": jnp.stack(b1_l),
        "w2": jnp.stack(w2_l).astype(bf16),        # (L, FF, D)
        "b2": jnp.stack(b2_l),
        "g2": jnp.stack(g2_l), "be2": jnp.stack(be2_l),
        "dw": dec_w.reshape(seq_length, D_MODEL, output_size).astype(bf16),
        "db": dec_b,                               # (1, out)
    }


# ----------------------------- main ------------------------------------------


if __name__ == "__main__":
    B, C, S, INPUT_SIZE, OUTPUT_SIZE = 2, 1, 8, 16, 8

    key = jax.random.PRNGKey(0)
    k_x, k_p = jax.random.split(key)
    x = jax.random.normal(k_x, (B, C, S, INPUT_SIZE), dtype=jnp.float32)
    params = init_params(k_p, INPUT_SIZE, S, OUTPUT_SIZE, B)

    y = transformer_forward(x, params, OUTPUT_SIZE)
    y = jax.block_until_ready(y)

    assert y.shape == (B, OUTPUT_SIZE), y.shape
    assert jnp.all(jnp.isfinite(y))
    print("KERNEL_OK")
</pallas_src>

<mosaic_0001>
module attributes {stable_mosaic.version = 11 : i64} {
  func.func @fused_forward_kernel(%arg0: i32, %arg1: memref<16x16xf32, #tpu.memory_space<vmem>>, %arg2: memref<16x128xbf16, #tpu.memory_space<vmem>>, %arg3: memref<1x128xf32, #tpu.memory_space<vmem>>, %arg4: memref<16x128xf32, #tpu.memory_space<vmem>>, %arg5: memref<64x16xf32, #tpu.memory_space<vmem>>, %arg6: memref<1x128x384xbf16, #tpu.memory_space<vmem>>, %arg7: memref<1x1x384xf32, #tpu.memory_space<vmem>>, %arg8: memref<1x128x128xbf16, #tpu.memory_space<vmem>>, %arg9: memref<1x1x128xf32, #tpu.memory_space<vmem>>, %arg10: memref<1x1x128xf32, #tpu.memory_space<vmem>>, %arg11: memref<1x1x128xf32, #tpu.memory_space<vmem>>, %arg12: memref<1x128x128xbf16, #tpu.memory_space<vmem>>, %arg13: memref<1x1x128xf32, #tpu.memory_space<vmem>>, %arg14: memref<1x128x128xbf16, #tpu.memory_space<vmem>>, %arg15: memref<1x1x128xf32, #tpu.memory_space<vmem>>, %arg16: memref<1x1x128xf32, #tpu.memory_space<vmem>>, %arg17: memref<1x1x128xf32, #tpu.memory_space<vmem>>, %arg18: memref<8x128x8xbf16, #tpu.memory_space<vmem>>, %arg19: memref<1x8xf32, #tpu.memory_space<vmem>>, %arg20: memref<2x8xf32, #tpu.memory_space<vmem>>, %arg21: memref<16x128xf32, #tpu.memory_space<vmem>>) attributes {dimension_semantics = [#tpu.dimension_semantics<arbitrary>], iteration_bounds = array<i64: 4>, scalar_prefetch = 0 : i64, scratch_operands = 1 : i64, tpu.core_type = #tpu.core_type<tc>, window_params = [{pipeline_mode = #tpu.pipeline_mode<synchronous>, transform_indices = @transform_0, window_bounds = array<i64: 16, 16>}, {pipeline_mode = #tpu.pipeline_mode<synchronous>, transform_indices = @transform_1, window_bounds = array<i64: 16, 128>}, {pipeline_mode = #tpu.pipeline_mode<synchronous>, transform_indices = @transform_2, window_bounds = array<i64: 1, 128>}, {pipeline_mode = #tpu.pipeline_mode<synchronous>, transform_indices = @transform_3, window_bounds = array<i64: 16, 128>}, {pipeline_mode = #tpu.pipeline_mode<synchronous>, transform_indices = @transform_4, window_bounds = array<i64: 64, 16>}, {transform_indices = @transform_5, window_bounds = array<i64: 1, 128, 384>}, {transform_indices = @transform_6, window_bounds = array<i64: 1, 1, 384>}, {transform_indices = @transform_7, window_bounds = array<i64: 1, 128, 128>}, {transform_indices = @transform_8, window_bounds = array<i64: 1, 1, 128>}, {transform_indices = @transform_9, window_bounds = array<i64: 1, 1, 128>}, {transform_indices = @transform_10, window_bounds = array<i64: 1, 1, 128>}, {transform_indices = @transform_11, window_bounds = array<i64: 1, 128, 128>}, {transform_indices = @transform_12, window_bounds = array<i64: 1, 1, 128>}, {transform_indices = @transform_13, window_bounds = array<i64: 1, 128, 128>}, {transform_indices = @transform_14, window_bounds = array<i64: 1, 1, 128>}, {transform_indices = @transform_15, window_bounds = array<i64: 1, 1, 128>}, {transform_indices = @transform_16, window_bounds = array<i64: 1, 1, 128>}, {pipeline_mode = #tpu.pipeline_mode<synchronous>, transform_indices = @transform_17, window_bounds = array<i64: 8, 128, 8>}, {pipeline_mode = #tpu.pipeline_mode<synchronous>, transform_indices = @transform_18, window_bounds = array<i64: 1, 8>}, {pipeline_mode = #tpu.pipeline_mode<synchronous>, transform_indices = @transform_19, window_bounds = array<i64: 2, 8>}]} {
    %c0_i32 = arith.constant 0 : i32
    %0 = arith.cmpi eq, %arg0, %c0_i32 : i32
    %1 = arith.extui %0 : i1 to i32
    %c0_i32_0 = arith.constant 0 : i32
    %2 = arith.cmpi ne, %1, %c0_i32_0 : i32
    scf.if %2 {
      %c0_67 = arith.constant 0 : index
      %c0_68 = arith.constant 0 : index
      %132 = vector.load %arg1[%c0_67, %c0_68] : memref<16x16xf32, #tpu.memory_space<vmem>>, vector<16x16xf32>
      %133 = arith.truncf %132 : vector<16x16xf32> to vector<16x16xbf16>
      %c0_69 = arith.constant 0 : index
      %c0_70 = arith.constant 0 : index
      %134 = vector.load %arg2[%c0_69, %c0_70] : memref<16x128xbf16, #tpu.memory_space<vmem>>, vector<16x128xbf16>
      %cst_71 = arith.constant dense<0.000000e+00> : vector<16x128xf32>
      %135 = tpu.matmul %133, %134, %cst_71 {dimension_numbers = #tpu.dot_dimension_numbers<[1], [0], [0], [1], [0, 0, 1, 1], [], []>} : vector<16x16xbf16>, vector<16x128xbf16>, vector<16x128xf32> -> vector<16x128xf32>
      %c0_72 = arith.constant 0 : index
      %c0_73 = arith.constant 0 : index
      %136 = vector.load %arg3[%c0_72, %c0_73] : memref<1x128xf32, #tpu.memory_space<vmem>>, vector<1x128xf32>
      %137 = vector.broadcast %136 : vector<1x128xf32> to vector<16x128xf32>
      %138 = arith.addf %135, %137 : vector<16x128xf32>
      %c0_74 = arith.constant 0 : index
      %c0_75 = arith.constant 0 : index
      %139 = vector.load %arg4[%c0_74, %c0_75] : memref<16x128xf32, #tpu.memory_space<vmem>>, vector<16x128xf32>
      %140 = arith.addf %138, %139 : vector<16x128xf32>
      %c0_76 = arith.constant 0 : index
      %c0_77 = arith.constant 0 : index
      %141 = vector.load %arg21[%c0_76, %c0_77] : memref<16x128xf32, #tpu.memory_space<vmem>>, vector<16x128xf32>
      tpu.vector_store %arg21[%c0_76, %c0_77], %140 {strides = array<i32>} : memref<16x128xf32, #tpu.memory_space<vmem>>, vector<16x128xf32>,
    } else {
    }
    %c0 = arith.constant 0 : index
    %c0_1 = arith.constant 0 : index
    %3 = vector.load %arg21[%c0, %c0_1] : memref<16x128xf32, #tpu.memory_space<vmem>>, vector<16x128xf32>
    %4 = arith.truncf %3 : vector<16x128xf32> to vector<16x128xbf16>
    %c0_2 = arith.constant 0 : index
    %c0_3 = arith.constant 0 : index
    %c0_4 = arith.constant 0 : index
    %5 = vector.load %arg6[%c0_2, %c0_3, %c0_4] : memref<1x128x384xbf16, #tpu.memory_space<vmem>>, vector<1x128x384xbf16>
    %6 = vector.shape_cast %5 : vector<1x128x384xbf16> to vector<128x384xbf16>
    %cst = arith.constant dense<0.000000e+00> : vector<16x384xf32>
    %7 = tpu.matmul %4, %6, %cst {dimension_numbers = #tpu.dot_dimension_numbers<[1], [0], [0], [1], [0, 0, 1, 1], [], []>} : vector<16x128xbf16>, vector<128x384xbf16>, vector<16x384xf32> -> vector<16x384xf32>
    %c0_5 = arith.constant 0 : index
    %c0_6 = arith.constant 0 : index
    %c0_7 = arith.constant 0 : index
    %8 = vector.load %arg7[%c0_5, %c0_6, %c0_7] : memref<1x1x384xf32, #tpu.memory_space<vmem>>, vector<1x1x384xf32>
    %9 = vector.shape_cast %8 : vector<1x1x384xf32> to vector<1x384xf32>
    %10 = vector.broadcast %9 : vector<1x384xf32> to vector<16x384xf32>
    %11 = arith.addf %7, %10 : vector<16x384xf32>
    %12 = arith.truncf %11 : vector<16x384xf32> to vector<16x384xbf16>
    %13 = vector.extract_strided_slice %12 {offsets = [0, 0], sizes = [16, 32], strides = [1, 1]} : vector<16x384xbf16> to vector<16x32xbf16>
    %14 = vector.extract_strided_slice %12 {offsets = [0, 128], sizes = [16, 32], strides = [1, 1]} : vector<16x384xbf16> to vector<16x32xbf16>
    %cst_8 = arith.constant dense<0.000000e+00> : vector<16x16xf32>
    %15 = tpu.matmul %13, %14, %cst_8 {dimension_numbers = #tpu.dot_dimension_numbers<[1], [1], [0], [0], [0, 0, 1, 0], [], []>} : vector<16x32xbf16>, vector<16x32xbf16>, vector<16x16xf32> -> vector<16x16xf32>
    %16 = vector.extract_strided_slice %12 {offsets = [0, 32], sizes = [16, 32], strides = [1, 1]} : vector<16x384xbf16> to vector<16x32xbf16>
    %17 = vector.extract_strided_slice %12 {offsets = [0, 160], sizes = [16, 32], strides = [1, 1]} : vector<16x384xbf16> to vector<16x32xbf16>
    %cst_9 = arith.constant dense<0.000000e+00> : vector<16x16xf32>
    %18 = tpu.matmul %16, %17, %cst_9 {dimension_numbers = #tpu.dot_dimension_numbers<[1], [1], [0], [0], [0, 0, 1, 0], [], []>} : vector<16x32xbf16>, vector<16x32xbf16>, vector<16x16xf32> -> vector<16x16xf32>
    %19 = vector.extract_strided_slice %12 {offsets = [0, 64], sizes = [16, 32], strides = [1, 1]} : vector<16x384xbf16> to vector<16x32xbf16>
    %20 = vector.extract_strided_slice %12 {offsets = [0, 192], sizes = [16, 32], strides = [1, 1]} : vector<16x384xbf16> to vector<16x32xbf16>
    %cst_10 = arith.constant dense<0.000000e+00> : vector<16x16xf32>
    %21 = tpu.matmul %19, %20, %cst_10 {dimension_numbers = #tpu.dot_dimension_numbers<[1], [1], [0], [0], [0, 0, 1, 0], [], []>} : vector<16x32xbf16>, vector<16x32xbf16>, vector<16x16xf32> -> vector<16x16xf32>
    %22 = vector.extract_strided_slice %12 {offsets = [0, 96], sizes = [16, 32], strides = [1, 1]} : vector<16x384xbf16> to vector<16x32xbf16>
    %23 = vector.extract_strided_slice %12 {offsets = [0, 224], sizes = [16, 32], strides = [1, 1]} : vector<16x384xbf16> to vector<16x32xbf16>
    %cst_11 = arith.constant dense<0.000000e+00> : vector<16x16xf32>
    %24 = tpu.matmul %22, %23, %cst_11 {dimension_numbers = #tpu.dot_dimension_numbers<[1], [1], [0], [0], [0, 0, 1, 0], [], []>} : vector<16x32xbf16>, vector<16x32xbf16>, vector<16x16xf32> -> vector<16x16xf32>
    %25 = tpu.concatenate %15, %18, %21, %24 in 0 : vector<16x16xf32>, vector<16x16xf32>, vector<16x16xf32>, vector<16x16xf32> -> vector<64x16xf32>
    %c0_12 = arith.constant 0 : index
    %c0_13 = arith.constant 0 : index
    %26 = vector.load %arg5[%c0_12, %c0_13] : memref<64x16xf32, #tpu.memory_space<vmem>>, vector<64x16xf32>
    %27 = arith.addf %25, %26 : vector<64x16xf32>
    %cst_14 = arith.constant dense<0xFF800000> : vector<64xf32>
    %28 = vector.multi_reduction <maximumf>, %27, %cst_14 [1] : vector<64x16xf32> to vector<64xf32>
    %29 = vector.shape_cast %28 : vector<64xf32> to vector<64x1xf32>
    %30 = vector.broadcast %29 : vector<64x1xf32> to vector<64x16xf32>
    %31 = arith.subf %27, %30 : vector<64x16xf32>
    %32 = math.exp %31 : vector<64x16xf32>
    %cst_15 = arith.constant dense<0.000000e+00> : vector<64xf32>
    %33 = vector.multi_reduction <add>, %32, %cst_15 [1] : vector<64x16xf32> to vector<64xf32>
    %34 = vector.shape_cast %33 : vector<64xf32> to vector<64x1xf32>
    %35 = tpu.reciprocal %34 {approx = true} : vector<64x1xf32> -> vector<64x1xf32>
    %36 = vector.broadcast %35 : vector<64x1xf32> to vector<64x16xf32>
    %37 = arith.mulf %32, %36 : vector<64x16xf32>
    %38 = arith.truncf %37 : vector<64x16xf32> to vector<64x16xbf16>
    %39 = vector.extract_strided_slice %12 {offsets = [0, 256], sizes = [16, 32], strides = [1, 1]} : vector<16x384xbf16> to vector<16x32xbf16>
    %40 = vector.extract_strided_slice %38 {offsets = [0, 0], sizes = [16, 16], strides = [1, 1]} : vector<64x16xbf16> to vector<16x16xbf16>
    %cst_16 = arith.constant dense<0.000000e+00> : vector<16x32xf32>
    %41 = tpu.matmul %40, %39, %cst_16 {dimension_numbers = #tpu.dot_dimension_numbers<[1], [0], [0], [1], [0, 0, 1, 1], [], []>} : vector<16x16xbf16>, vector<16x32xbf16>, vector<16x32xf32> -> vector<16x32xf32>
    %42 = vector.extract_strided_slice %12 {offsets = [0, 288], sizes = [16, 32], strides = [1, 1]} : vector<16x384xbf16> to vector<16x32xbf16>
    %43 = vector.extract_strided_slice %38 {offsets = [16, 0], sizes = [16, 16], strides = [1, 1]} : vector<64x16xbf16> to vector<16x16xbf16>
    %cst_17 = arith.constant dense<0.000000e+00> : vector<16x32xf32>
    %44 = tpu.matmul %43, %42, %cst_17 {dimension_numbers = #tpu.dot_dimension_numbers<[1], [0], [0], [1], [0, 0, 1, 1], [], []>} : vector<16x16xbf16>, vector<16x32xbf16>, vector<16x32xf32> -> vector<16x32xf32>
    %45 = vector.extract_strided_slice %12 {offsets = [0, 320], sizes = [16, 32], strides = [1, 1]} : vector<16x384xbf16> to vector<16x32xbf16>
    %46 = vector.extract_strided_slice %38 {offsets = [32, 0], sizes = [16, 16], strides = [1, 1]} : vector<64x16xbf16> to vector<16x16xbf16>
    %cst_18 = arith.constant dense<0.000000e+00> : vector<16x32xf32>
    %47 = tpu.matmul %46, %45, %cst_18 {dimension_numbers = #tpu.dot_dimension_numbers<[1], [0], [0], [1], [0, 0, 1, 1], [], []>} : vector<16x16xbf16>, vector<16x32xbf16>, vector<16x32xf32> -> vector<16x32xf32>
    %48 = vector.extract_strided_slice %12 {offsets = [0, 352], sizes = [16, 32], strides = [1, 1]} : vector<16x384xbf16> to vector<16x32xbf16>
    %49 = vector.extract_strided_slice %38 {offsets = [48, 0], sizes = [16, 16], strides = [1, 1]} : vector<64x16xbf16> to vector<16x16xbf16>
    %cst_19 = arith.constant dense<0.000000e+00> : vector<16x32xf32>
    %50 = tpu.matmul %49, %48, %cst_19 {dimension_numbers = #tpu.dot_dimension_numbers<[1], [0], [0], [1], [0, 0, 1, 1], [], []>} : vector<16x16xbf16>, vector<16x32xbf16>, vector<16x32xf32> -> vector<16x32xf32>
    %51 = tpu.concatenate %41, %44, %47, %50 in 1 : vector<16x32xf32>, vector<16x32xf32>, vector<16x32xf32>, vector<16x32xf32> -> vector<16x128xf32>
    %52 = arith.truncf %51 : vector<16x128xf32> to vector<16x128xbf16>
    %c0_20 = arith.constant 0 : index
    %c0_21 = arith.constant 0 : index
    %c0_22 = arith.constant 0 : index
    %53 = vector.load %arg8[%c0_20, %c0_21, %c0_22] : memref<1x128x128xbf16, #tpu.memory_space<vmem>>, vector<1x128x128xbf16>
    %54 = vector.shape_cast %53 : vector<1x128x128xbf16> to vector<128x128xbf16>
    %cst_23 = arith.constant dense<0.000000e+00> : vector<16x128xf32>
    %55 = tpu.matmul %52, %54, %cst_23 {dimension_numbers = #tpu.dot_dimension_numbers<[1], [0], [0], [1], [0, 0, 1, 1], [], []>} : vector<16x128xbf16>, vector<128x128xbf16>, vector<16x128xf32> -> vector<16x128xf32>
    %c0_24 = arith.constant 0 : index
    %c0_25 = arith.constant 0 : index
    %c0_26 = arith.constant 0 : index
    %56 = vector.load %arg9[%c0_24, %c0_25, %c0_26] : memref<1x1x128xf32, #tpu.memory_space<vmem>>, vector<1x1x128xf32>
    %57 = vector.shape_cast %56 : vector<1x1x128xf32> to vector<1x128xf32>
    %58 = vector.broadcast %57 : vector<1x128xf32> to vector<16x128xf32>
    %59 = arith.addf %55, %58 : vector<16x128xf32>
    %60 = arith.addf %3, %59 : vector<16x128xf32>
    %c0_27 = arith.constant 0 : index
    %c0_28 = arith.constant 0 : index
    %c0_29 = arith.constant 0 : index
    %61 = vector.load %arg10[%c0_27, %c0_28, %c0_29] : memref<1x1x128xf32, #tpu.memory_space<vmem>>, vector<1x1x128xf32>
    %62 = vector.shape_cast %61 : vector<1x1x128xf32> to vector<1x128xf32>
    %c0_30 = arith.constant 0 : index
    %c0_31 = arith.constant 0 : index
    %c0_32 = arith.constant 0 : index
    %63 = vector.load %arg11[%c0_30, %c0_31, %c0_32] : memref<1x1x128xf32, #tpu.memory_space<vmem>>, vector<1x1x128xf32>
    %64 = vector.shape_cast %63 : vector<1x1x128xf32> to vector<1x128xf32>
    %cst_33 = arith.constant dense<0.000000e+00> : vector<16xf32>
    %65 = vector.multi_reduction <add>, %60, %cst_33 [1] : vector<16x128xf32> to vector<16xf32>
    %66 = vector.shape_cast %65 : vector<16xf32> to vector<16x1xf32>
    %cst_34 = arith.constant 1.280000e+02 : f32
    %67 = vector.broadcast %cst_34 : f32 to vector<16x1xf32>
    %68 = arith.divf %66, %67 : vector<16x1xf32>
    %69 = vector.broadcast %68 : vector<16x1xf32> to vector<16x128xf32>
    %70 = arith.subf %60, %69 : vector<16x128xf32>
    %71 = arith.mulf %70, %70 : vector<16x128xf32>
    %cst_35 = arith.constant dense<0.000000e+00> : vector<16xf32>
    %72 = vector.multi_reduction <add>, %71, %cst_35 [1] : vector<16x128xf32> to vector<16xf32>
    %73 = vector.shape_cast %72 : vector<16xf32> to vector<16x1xf32>
    %cst_36 = arith.constant 1.280000e+02 : f32
    %74 = vector.broadcast %cst_36 : f32 to vector<16x1xf32>
    %75 = arith.divf %73, %74 : vector<16x1xf32>
    %cst_37 = arith.constant 9.99999974E-6 : f32
    %76 = vector.broadcast %cst_37 : f32 to vector<16x1xf32>
    %77 = arith.addf %75, %76 : vector<16x1xf32>
    %78 = math.rsqrt %77 : vector<16x1xf32>
    %79 = vector.broadcast %78 : vector<16x1xf32> to vector<16x128xf32>
    %80 = arith.mulf %70, %79 : vector<16x128xf32>
    %81 = vector.broadcast %62 : vector<1x128xf32> to vector<16x128xf32>
    %82 = arith.mulf %80, %81 : vector<16x128xf32>
    %83 = vector.broadcast %64 : vector<1x128xf32> to vector<16x128xf32>
    %84 = arith.addf %82, %83 : vector<16x128xf32>
    %85 = arith.truncf %84 : vector<16x128xf32> to vector<16x128xbf16>
    %c0_38 = arith.constant 0 : index
    %c0_39 = arith.constant 0 : index
    %c0_40 = arith.constant 0 : index
    %86 = vector.load %arg12[%c0_38, %c0_39, %c0_40] : memref<1x128x128xbf16, #tpu.memory_space<vmem>>, vector<1x128x128xbf16>
    %87 = vector.shape_cast %86 : vector<1x128x128xbf16> to vector<128x128xbf16>
    %cst_41 = arith.constant dense<0.000000e+00> : vector<16x128xf32>
    %88 = tpu.matmul %85, %87, %cst_41 {dimension_numbers = #tpu.dot_dimension_numbers<[1], [0], [0], [1], [0, 0, 1, 1], [], []>} : vector<16x128xbf16>, vector<128x128xbf16>, vector<16x128xf32> -> vector<16x128xf32>
    %c0_42 = arith.constant 0 : index
    %c0_43 = arith.constant 0 : index
    %c0_44 = arith.constant 0 : index
    %89 = vector.load %arg13[%c0_42, %c0_43, %c0_44] : memref<1x1x128xf32, #tpu.memory_space<vmem>>, vector<1x1x128xf32>
    %90 = vector.shape_cast %89 : vector<1x1x128xf32> to vector<1x128xf32>
    %91 = vector.broadcast %90 : vector<1x128xf32> to vector<16x128xf32>
    %92 = arith.addf %88, %91 : vector<16x128xf32>
    %cst_45 = arith.constant 0.000000e+00 : f32
    %93 = vector.broadcast %cst_45 : f32 to vector<16x128xf32>
    %94 = arith.maximumf %92, %93 : vector<16x128xf32>
    %95 = arith.truncf %94 : vector<16x128xf32> to vector<16x128xbf16>
    %c0_46 = arith.constant 0 : index
    %c0_47 = arith.constant 0 : index
    %c0_48 = arith.constant 0 : index
    %96 = vector.load %arg14[%c0_46, %c0_47, %c0_48] : memref<1x128x128xbf16, #tpu.memory_space<vmem>>, vector<1x128x128xbf16>
    %97 = vector.shape_cast %96 : vector<1x128x128xbf16> to vector<128x128xbf16>
    %cst_49 = arith.constant dense<0.000000e+00> : vector<16x128xf32>
    %98 = tpu.matmul %95, %97, %cst_49 {dimension_numbers = #tpu.dot_dimension_numbers<[1], [0], [0], [1], [0, 0, 1, 1], [], []>} : vector<16x128xbf16>, vector<128x128xbf16>, vector<16x128xf32> -> vector<16x128xf32>
    %c0_50 = arith.constant 0 : index
    %c0_51 = arith.constant 0 : index
    %c0_52 = arith.constant 0 : index
    %99 = vector.load %arg15[%c0_50, %c0_51, %c0_52] : memref<1x1x128xf32, #tpu.memory_space<vmem>>, vector<1x1x128xf32>
    %100 = vector.shape_cast %99 : vector<1x1x128xf32> to vector<1x128xf32>
    %101 = vector.broadcast %100 : vector<1x128xf32> to vector<16x128xf32>
    %102 = arith.addf %98, %101 : vector<16x128xf32>
    %103 = arith.addf %84, %102 : vector<16x128xf32>
    %c0_53 = arith.constant 0 : index
    %c0_54 = arith.constant 0 : index
    %c0_55 = arith.constant 0 : index
    %104 = vector.load %arg16[%c0_53, %c0_54, %c0_55] : memref<1x1x128xf32, #tpu.memory_space<vmem>>, vector<1x1x128xf32>
    %105 = vector.shape_cast %104 : vector<1x1x128xf32> to vector<1x128xf32>
    %c0_56 = arith.constant 0 : index
    %c0_57 = arith.constant 0 : index
    %c0_58 = arith.constant 0 : index
    %106 = vector.load %arg17[%c0_56, %c0_57, %c0_58] : memref<1x1x128xf32, #tpu.memory_space<vmem>>, vector<1x1x128xf32>
    %107 = vector.shape_cast %106 : vector<1x1x128xf32> to vector<1x128xf32>
    %cst_59 = arith.constant dense<0.000000e+00> : vector<16xf32>
    %108 = vector.multi_reduction <add>, %103, %cst_59 [1] : vector<16x128xf32> to vector<16xf32>
    %109 = vector.shape_cast %108 : vector<16xf32> to vector<16x1xf32>
    %cst_60 = arith.constant 1.280000e+02 : f32
    %110 = vector.broadcast %cst_60 : f32 to vector<16x1xf32>
    %111 = arith.divf %109, %110 : vector<16x1xf32>
    %112 = vector.broadcast %111 : vector<16x1xf32> to vector<16x128xf32>
    %113 = arith.subf %103, %112 : vector<16x128xf32>
    %114 = arith.mulf %113, %113 : vector<16x128xf32>
    %cst_61 = arith.constant dense<0.000000e+00> : vector<16xf32>
    %115 = vector.multi_reduction <add>, %114, %cst_61 [1] : vector<16x128xf32> to vector<16xf32>
    %116 = vector.shape_cast %115 : vector<16xf32> to vector<16x1xf32>
    %cst_62 = arith.constant 1.280000e+02 : f32
    %117 = vector.broadcast %cst_62 : f32 to vector<16x1xf32>
    %118 = arith.divf %116, %117 : vector<16x1xf32>
    %cst_63 = arith.constant 9.99999974E-6 : f32
    %119 = vector.broadcast %cst_63 : f32 to vector<16x1xf32>
    %120 = arith.addf %118, %119 : vector<16x1xf32>
    %121 = math.rsqrt %120 : vector<16x1xf32>
    %122 = vector.broadcast %121 : vector<16x1xf32> to vector<16x128xf32>
    %123 = arith.mulf %113, %122 : vector<16x128xf32>
    %124 = vector.broadcast %105 : vector<1x128xf32> to vector<16x128xf32>
    %125 = arith.mulf %123, %124 : vector<16x128xf32>
    %126 = vector.broadcast %107 : vector<1x128xf32> to vector<16x128xf32>
    %127 = arith.addf %125, %126 : vector<16x128xf32>
    %c0_64 = arith.constant 0 : index
    %c0_65 = arith.constant 0 : index
    %128 = vector.load %arg21[%c0_64, %c0_65] : memref<16x128xf32, #tpu.memory_space<vmem>>, vector<16x128xf32>
    tpu.vector_store %arg21[%c0_64, %c0_65], %127 {strides = array<i32>} : memref<16x128xf32, #tpu.memory_space<vmem>>, vector<16x128xf32>,
    %c3_i32 = arith.constant 3 : i32
    %129 = arith.cmpi eq, %arg0, %c3_i32 : i32
    %130 = arith.extui %129 : i1 to i32
    %c0_i32_66 = arith.constant 0 : i32
    %131 = arith.cmpi ne, %130, %c0_i32_66 : i32
    scf.if %131 {
      %132 = arith.truncf %127 : vector<16x128xf32> to vector<16x128xbf16>
      %cst_67 = arith.constant 0.000000e+00 : f32
      %133 = vector.broadcast %cst_67 : f32 to vector<2x8xf32>
      %c0_68 = arith.constant 0 : index
      %c0_69 = arith.constant 0 : index
      %134 = vector.load %arg19[%c0_68, %c0_69] : memref<1x8xf32, #tpu.memory_space<vmem>>, vector<1x8xf32>
      %135 = vector.broadcast %134 : vector<1x8xf32> to vector<2x8xf32>
      %136 = arith.addf %133, %135 : vector<2x8xf32>
      %137 = vector.extract_strided_slice %132 {offsets = [0, 0], sizes = [2, 128], strides = [1, 1]} : vector<16x128xbf16> to vector<2x128xbf16>
      %c0_70 = arith.constant 0 : index
      %c0_71 = arith.constant 0 : index
      %c0_72 = arith.constant 0 : index
      %138 = vector.load %arg18[%c0_70, %c0_71, %c0_72] : memref<8x128x8xbf16, #tpu.memory_space<vmem>>, vector<1x128x8xbf16>
      %139 = vector.shape_cast %138 : vector<1x128x8xbf16> to vector<128x8xbf16>
      %cst_73 = arith.constant dense<0.000000e+00> : vector<2x8xf32>
      %140 = tpu.matmul %137, %139, %cst_73 {dimension_numbers = #tpu.dot_dimension_numbers<[1], [0], [0], [1], [0, 0, 1, 1], [], []>} : vector<2x128xbf16>, vector<128x8xbf16>, vector<2x8xf32> -> vector<2x8xf32>
      %141 = arith.addf %136, %140 : vector<2x8xf32>
      %142 = vector.extract_strided_slice %132 {offsets = [2, 0], sizes = [2, 128], strides = [1, 1]} : vector<16x128xbf16> to vector<2x128xbf16>
      %c1 = arith.constant 1 : index
      %c0_74 = arith.constant 0 : index
      %c0_75 = arith.constant 0 : index
      %143 = vector.load %arg18[%c1, %c0_74, %c0_75] : memref<8x128x8xbf16, #tpu.memory_space<vmem>>, vector<1x128x8xbf16>
      %144 = vector.shape_cast %143 : vector<1x128x8xbf16> to vector<128x8xbf16>
      %cst_76 = arith.constant dense<0.000000e+00> : vector<2x8xf32>
      %145 = tpu.matmul %142, %144, %cst_76 {dimension_numbers = #tpu.dot_dimension_numbers<[1], [0], [0], [1], [0, 0, 1, 1], [], []>} : vector<2x128xbf16>, vector<128x8xbf16>, vector<2x8xf32> -> vector<2x8xf32>
      %146 = arith.addf %141, %145 : vector<2x8xf32>
      %147 = vector.extract_strided_slice %132 {offsets = [4, 0], sizes = [2, 128], strides = [1, 1]} : vector<16x128xbf16> to vector<2x128xbf16>
      %c2 = arith.constant 2 : index
      %c0_77 = arith.constant 0 : index
      %c0_78 = arith.constant 0 : index
      %148 = vector.load %arg18[%c2, %c0_77, %c0_78] : memref<8x128x8xbf16, #tpu.memory_space<vmem>>, vector<1x128x8xbf16>
      %149 = vector.shape_cast %148 : vector<1x128x8xbf16> to vector<128x8xbf16>
      %cst_79 = arith.constant dense<0.000000e+00> : vector<2x8xf32>
      %150 = tpu.matmul %147, %149, %cst_79 {dimension_numbers = #tpu.dot_dimension_numbers<[1], [0], [0], [1], [0, 0, 1, 1], [], []>} : vector<2x128xbf16>, vector<128x8xbf16>, vector<2x8xf32> -> vector<2x8xf32>
      %151 = arith.addf %146, %150 : vector<2x8xf32>
      %152 = vector.extract_strided_slice %132 {offsets = [6, 0], sizes = [2, 128], strides = [1, 1]} : vector<16x128xbf16> to vector<2x128xbf16>
      %c3 = arith.constant 3 : index
      %c0_80 = arith.constant 0 : index
      %c0_81 = arith.constant 0 : index
      %153 = vector.load %arg18[%c3, %c0_80, %c0_81] : memref<8x128x8xbf16, #tpu.memory_space<vmem>>, vector<1x128x8xbf16>
      %154 = vector.shape_cast %153 : vector<1x128x8xbf16> to vector<128x8xbf16>
      %cst_82 = arith.constant dense<0.000000e+00> : vector<2x8xf32>
      %155 = tpu.matmul %152, %154, %cst_82 {dimension_numbers = #tpu.dot_dimension_numbers<[1], [0], [0], [1], [0, 0, 1, 1], [], []>} : vector<2x128xbf16>, vector<128x8xbf16>, vector<2x8xf32> -> vector<2x8xf32>
      %156 = arith.addf %151, %155 : vector<2x8xf32>
      %157 = vector.extract_strided_slice %132 {offsets = [8, 0], sizes = [2, 128], strides = [1, 1]} : vector<16x128xbf16> to vector<2x128xbf16>
      %c4 = arith.constant 4 : index
      %c0_83 = arith.constant 0 : index
      %c0_84 = arith.constant 0 : index
      %158 = vector.load %arg18[%c4, %c0_83, %c0_84] : memref<8x128x8xbf16, #tpu.memory_space<vmem>>, vector<1x128x8xbf16>
      %159 = vector.shape_cast %158 : vector<1x128x8xbf16> to vector<128x8xbf16>
      %cst_85 = arith.constant dense<0.000000e+00> : vector<2x8xf32>
      %160 = tpu.matmul %157, %159, %cst_85 {dimension_numbers = #tpu.dot_dimension_numbers<[1], [0], [0], [1], [0, 0, 1, 1], [], []>} : vector<2x128xbf16>, vector<128x8xbf16>, vector<2x8xf32> -> vector<2x8xf32>
      %161 = arith.addf %156, %160 : vector<2x8xf32>
      %162 = vector.extract_strided_slice %132 {offsets = [10, 0], sizes = [2, 128], strides = [1, 1]} : vector<16x128xbf16> to vector<2x128xbf16>
      %c5 = arith.constant 5 : index
      %c0_86 = arith.constant 0 : index
      %c0_87 = arith.constant 0 : index
      %163 = vector.load %arg18[%c5, %c0_86, %c0_87] : memref<8x128x8xbf16, #tpu.memory_space<vmem>>, vector<1x128x8xbf16>
      %164 = vector.shape_cast %163 : vector<1x128x8xbf16> to vector<128x8xbf16>
      %cst_88 = arith.constant dense<0.000000e+00> : vector<2x8xf32>
      %165 = tpu.matmul %162, %164, %cst_88 {dimension_numbers = #tpu.dot_dimension_numbers<[1], [0], [0], [1], [0, 0, 1, 1], [], []>} : vector<2x128xbf16>, vector<128x8xbf16>, vector<2x8xf32> -> vector<2x8xf32>
      %166 = arith.addf %161, %165 : vector<2x8xf32>
      %167 = vector.extract_strided_slice %132 {offsets = [12, 0], sizes = [2, 128], strides = [1, 1]} : vector<16x128xbf16> to vector<2x128xbf16>
      %c6 = arith.constant 6 : index
      %c0_89 = arith.constant 0 : index
      %c0_90 = arith.constant 0 : index
      %168 = vector.load %arg18[%c6, %c0_89, %c0_90] : memref<8x128x8xbf16, #tpu.memory_space<vmem>>, vector<1x128x8xbf16>
      %169 = vector.shape_cast %168 : vector<1x128x8xbf16> to vector<128x8xbf16>
      %cst_91 = arith.constant dense<0.000000e+00> : vector<2x8xf32>
      %170 = tpu.matmul %167, %169, %cst_91 {dimension_numbers = #tpu.dot_dimension_numbers<[1], [0], [0], [1], [0, 0, 1, 1], [], []>} : vector<2x128xbf16>, vector<128x8xbf16>, vector<2x8xf32> -> vector<2x8xf32>
      %171 = arith.addf %166, %170 : vector<2x8xf32>
      %172 = vector.extract_strided_slice %132 {offsets = [14, 0], sizes = [2, 128], strides = [1, 1]} : vector<16x128xbf16> to vector<2x128xbf16>
      %c7 = arith.constant 7 : index
      %c0_92 = arith.constant 0 : index
      %c0_93 = arith.constant 0 : index
      %173 = vector.load %arg18[%c7, %c0_92, %c0_93] : memref<8x128x8xbf16, #tpu.memory_space<vmem>>, vector<1x128x8xbf16>
      %174 = vector.shape_cast %173 : vector<1x128x8xbf16> to vector<128x8xbf16>
      %cst_94 = arith.constant dense<0.000000e+00> : vector<2x8xf32>
      %175 = tpu.matmul %172, %174, %cst_94 {dimension_numbers = #tpu.dot_dimension_numbers<[1], [0], [0], [1], [0, 0, 1, 1], [], []>} : vector<2x128xbf16>, vector<128x8xbf16>, vector<2x8xf32> -> vector<2x8xf32>
      %176 = arith.addf %171, %175 : vector<2x8xf32>
      %c0_95 = arith.constant 0 : index
      %c0_96 = arith.constant 0 : index
      %177 = vector.load %arg20[%c0_95, %c0_96] : memref<2x8xf32, #tpu.memory_space<vmem>>, vector<2x8xf32>
      tpu.vector_store %arg20[%c0_95, %c0_96], %176 {strides = array<i32>} : memref<2x8xf32, #tpu.memory_space<vmem>>, vector<2x8xf32>,
    } else {
    }
    return
  }
  func.func @transform_0(%arg0: i32) -> (i32, i32) {
    %c0_i32 = arith.constant 0 : i32
    %c0_i32_0 = arith.constant 0 : i32
    %c0_i32_1 = arith.constant 0 : i32
    return %c0_i32, %c0_i32_0 : i32, i32
  }
  func.func @transform_1(%arg0: i32) -> (i32, i32) {
    %c0_i32 = arith.constant 0 : i32
    %c0_i32_0 = arith.constant 0 : i32
    %c0_i32_1 = arith.constant 0 : i32
    return %c0_i32, %c0_i32_0 : i32, i32
  }
  func.func @transform_2(%arg0: i32) -> (i32, i32) {
    %c0_i32 = arith.constant 0 : i32
    %c0_i32_0 = arith.constant 0 : i32
    %c0_i32_1 = arith.constant 0 : i32
    return %c0_i32, %c0_i32_0 : i32, i32
  }
  func.func @transform_3(%arg0: i32) -> (i32, i32) {
    %c0_i32 = arith.constant 0 : i32
    %c0_i32_0 = arith.constant 0 : i32
    %c0_i32_1 = arith.constant 0 : i32
    return %c0_i32, %c0_i32_0 : i32, i32
  }
  func.func @transform_4(%arg0: i32) -> (i32, i32) {
    %c0_i32 = arith.constant 0 : i32
    %c0_i32_0 = arith.constant 0 : i32
    %c0_i32_1 = arith.constant 0 : i32
    return %c0_i32, %c0_i32_0 : i32, i32
  }
  func.func @transform_5(%arg0: i32) -> (i32, i32, i32) {
    %c0_i32 = arith.constant 0 : i32
    %c0_i32_0 = arith.constant 0 : i32
    %c0_i32_1 = arith.constant 0 : i32
    return %arg0, %c0_i32, %c0_i32_0 : i32, i32, i32
  }
  func.func @transform_6(%arg0: i32) -> (i32, i32, i32) {
    %c0_i32 = arith.constant 0 : i32
    %c0_i32_0 = arith.constant 0 : i32
    %c0_i32_1 = arith.constant 0 : i32
    return %arg0, %c0_i32, %c0_i32_0 : i32, i32, i32
  }
  func.func @transform_7(%arg0: i32) -> (i32, i32, i32) {
    %c0_i32 = arith.constant 0 : i32
    %c0_i32_0 = arith.constant 0 : i32
    %c0_i32_1 = arith.constant 0 : i32
    return %arg0, %c0_i32, %c0_i32_0 : i32, i32, i32
  }
  func.func @transform_8(%arg0: i32) -> (i32, i32, i32) {
    %c0_i32 = arith.constant 0 : i32
    %c0_i32_0 = arith.constant 0 : i32
    %c0_i32_1 = arith.constant 0 : i32
    return %arg0, %c0_i32, %c0_i32_0 : i32, i32, i32
  }
  func.func @transform_9(%arg0: i32) -> (i32, i32, i32) {
    %c0_i32 = arith.constant 0 : i32
    %c0_i32_0 = arith.constant 0 : i32
    %c0_i32_1 = arith.constant 0 : i32
    return %arg0, %c0_i32, %c0_i32_0 : i32, i32, i32
  }
  func.func @transform_10(%arg0: i32) -> (i32, i32, i32) {
    %c0_i32 = arith.constant 0 : i32
    %c0_i32_0 = arith.constant 0 : i32
    %c0_i32_1 = arith.constant 0 : i32
    return %arg0, %c0_i32, %c0_i32_0 : i32, i32, i32
  }
  func.func @transform_11(%arg0: i32) -> (i32, i32, i32) {
    %c0_i32 = arith.constant 0 : i32
    %c0_i32_0 = arith.constant 0 : i32
    %c0_i32_1 = arith.constant 0 : i32
    return %arg0, %c0_i32, %c0_i32_0 : i32, i32, i32
  }
  func.func @transform_12(%arg0: i32) -> (i32, i32, i32) {
    %c0_i32 = arith.constant 0 : i32
    %c0_i32_0 = arith.constant 0 : i32
    %c0_i32_1 = arith.constant 0 : i32
    return %arg0, %c0_i32, %c0_i32_0 : i32, i32, i32
  }
  func.func @transform_13(%arg0: i32) -> (i32, i32, i32) {
    %c0_i32 = arith.constant 0 : i32
    %c0_i32_0 = arith.constant 0 : i32
    %c0_i32_1 = arith.constant 0 : i32
    return %arg0, %c0_i32, %c0_i32_0 : i32, i32, i32
  }
  func.func @transform_14(%arg0: i32) -> (i32, i32, i32) {
    %c0_i32 = arith.constant 0 : i32
    %c0_i32_0 = arith.constant 0 : i32
    %c0_i32_1 = arith.constant 0 : i32
    return %arg0, %c0_i32, %c0_i32_0 : i32, i32, i32
  }
  func.func @transform_15(%arg0: i32) -> (i32, i32, i32) {
    %c0_i32 = arith.constant 0 : i32
    %c0_i32_0 = arith.constant 0 : i32
    %c0_i32_1 = arith.constant 0 : i32
    return %arg0, %c0_i32, %c0_i32_0 : i32, i32, i32
  }
  func.func @transform_16(%arg0: i32) -> (i32, i32, i32) {
    %c0_i32 = arith.constant 0 : i32
    %c0_i32_0 = arith.constant 0 : i32
    %c0_i32_1 = arith.constant 0 : i32
    return %arg0, %c0_i32, %c0_i32_0 : i32, i32, i32
  }
  func.func @transform_17(%arg0: i32) -> (i32, i32, i32) {
    %c0_i32 = arith.constant 0 : i32
    %c0_i32_0 = arith.constant 0 : i32
    %c0_i32_1 = arith.constant 0 : i32
    %c0_i32_2 = arith.constant 0 : i32
    return %c0_i32, %c0_i32_0, %c0_i32_1 : i32, i32, i32
  }
  func.func @transform_18(%arg0: i32) -> (i32, i32) {
    %c0_i32 = arith.constant 0 : i32
    %c0_i32_0 = arith.constant 0 : i32
    %c0_i32_1 = arith.constant 0 : i32
    return %c0_i32, %c0_i32_0 : i32, i32
  }
  func.func @transform_19(%arg0: i32) -> (i32, i32) {
    %c0_i32 = arith.constant 0 : i32
    %c0_i32_0 = arith.constant 0 : i32
    %c0_i32_1 = arith.constant 0 : i32
    return %c0_i32, %c0_i32_0 : i32, i32
  }
}

</mosaic_0001>

<llo_original>
// kernel: transformer_forward.1
$region0: #{transformer_forward.1}
  #allocation0 [shape = 'u32[]', space=smem, size = 0x4, offset = 0x4, fixed_abs, tag = 'smem constant byte address 0x4 - core index']
  #allocation1 [shape = 'u32[144,128]{1,0:T(1,128)}', space=vmem, size = 0x12000, scoped, tag = 'internal scratch']
  #allocation2 [shape = 'f32[16,128]{1,0:T(8,128)}', space=vmem, size = 0x2000, scoped, tag = 'scratch operand']
  %s0 = inlined_call_operand.vmem [shape: f32[16,16], index: 0, kind: input, shape index: {}]
  %s1 = inlined_call_operand.vmem [shape: bf16[16,128], index: 1, kind: input, shape index: {}]
  %s2 = inlined_call_operand.vmem [shape: f32[1,128], index: 2, kind: input, shape index: {}]
  %s3 = inlined_call_operand.vmem [shape: f32[16,128], index: 3, kind: input, shape index: {}]
  %s4 = inlined_call_operand.vmem [shape: f32[64,16], index: 4, kind: input, shape index: {}]
  %s5 = inlined_call_operand.hbm [shape: bf16[4,128,384], index: 5, kind: input, shape index: {}]
  %s6 = inlined_call_operand.vmem [shape: f32[4,1,384], index: 6, kind: input, shape index: {}]
  %s7 = inlined_call_operand.vmem [shape: bf16[4,128,128], index: 7, kind: input, shape index: {}]
  %s8 = inlined_call_operand.vmem [shape: f32[4,1,128], index: 8, kind: input, shape index: {}]
  %s9 = inlined_call_operand.vmem [shape: f32[4,1,128], index: 9, kind: input, shape index: {}]
  %s10 = inlined_call_operand.vmem [shape: f32[4,1,128], index: 10, kind: input, shape index: {}]
  %s11 = inlined_call_operand.vmem [shape: bf16[4,128,128], index: 11, kind: input, shape index: {}]
  %s12 = inlined_call_operand.vmem [shape: f32[4,1,128], index: 12, kind: input, shape index: {}]
  %s13 = inlined_call_operand.hbm [shape: bf16[4,128,128], index: 13, kind: input, shape index: {}]
  %s14 = inlined_call_operand.vmem [shape: f32[4,1,128], index: 14, kind: input, shape index: {}]
  %s15 = inlined_call_operand.vmem [shape: f32[4,1,128], index: 15, kind: input, shape index: {}]
  %s16 = inlined_call_operand.vmem [shape: f32[4,1,128], index: 16, kind: input, shape index: {}]
  %s17 = inlined_call_operand.vmem [shape: bf16[8,128,8], index: 17, kind: input, shape index: {}]
  %s18 = inlined_call_operand.vmem [shape: f32[1,8], index: 18, kind: input, shape index: {}]
  %s19 = inlined_call_operand.hbm [shape: f32[2,8], index: 19, kind: output, shape index: {}]
  %s20 = sld [smem:[#allocation0]]
  $region125: #{transformer_forward.1} parent=0
    _
  %s22 = ssub.s32 1, %s20
  %s23 = scalar_select 0, %s22, %s20
  $region1: #{transformer_forward.1} parent=0
    #allocation3 [shape = 'u8[196608]{0}', space=vmem, size = 0x30000, scoped, tag = 'input window, operand 5']
    #allocation4 [shape = 's32[2]{0}', space=sflag, size = 0x8, scoped, tag = 'scoped memory for transformer_forward.1']
    #allocation5 [shape = 's32[2]{0}', space=sflag, size = 0x8, scoped, tag = 'scoped memory for transformer_forward.1']
    #allocation6 [shape = 'u8[65536]{0}', space=vmem, size = 0x10000, scoped, tag = 'input window, operand 13']
    #allocation7 [shape = 's32[2]{0}', space=sflag, size = 0x8, scoped, tag = 'scoped memory for transformer_forward.1']
    #allocation8 [shape = 'u8[1024]{0}', space=vmem, size = 0x400, scoped, tag = 'output window, operand 0, single buffered']
    %24 = vsyncpa [#allocation4], 0
    %s25 = scalar_lea.sflag [#allocation4], 1
    %26 = vsyncpa %s25, 0
    %27 = vsyncpa [#allocation7], 0
    %s28 = scalar_lea.sflag [#allocation7], 1
    %29 = vsyncpa %s28, 0
    %30 = vsyncpa [#allocation5], 0
    loop: start=0, step=1, limit=6
    $region2: #{transformer_forward.1} parent=1 // loop_pre_header
      _
    $region3: #{transformer_forward.1} parent=1 // loop_header
      %s32 = sphi 0, %s36
      %p33 = scmp.ge.s32.totalorder %s32, 6
      %s40 = sphi 0, %s40
      %s42 = sphi 0, %s40
      %s43 = sphi 0, %s42
      %s57 = sphi 0, %s43
      %s61 = sphi 0, %s61
      %s63 = sphi 0, %s61
      %s64 = sphi 0, %s63
      %s78 = sphi 0, %s64
      %s82 = sphi 0, %s82
      %s84 = sphi 0, %s82
      %s85 = sphi 0, %s84
      %s99 = sphi 0, %s85
      %s103 = sphi 0, %s103
      %s105 = sphi 0, %s103
      %s106 = sphi 0, %s105
      %s120 = sphi 0, %s106
      %s124 = sphi 0, %s124
      %s126 = sphi 0, %s124
      %s127 = sphi 0, %s126
      %s141 = sphi 0, %s127
      %s147 = sphi 0, %s149
      %s150 = sphi 0, %s147
      %s151 = sphi 0, %s150
      %s167 = sphi 0, %s151
      %s173 = sphi 0, %s175
      %s176 = sphi 0, %s173
      %s177 = sphi 0, %s176
      %s193 = sphi 0, %s177
      %s199 = sphi 0, %s201
      %s202 = sphi 0, %s199
      %s203 = sphi 0, %s202
      %s219 = sphi 0, %s203
      %s225 = sphi 0, %s227
      %s228 = sphi 0, %s225
      %s229 = sphi 0, %s228
      %s245 = sphi 0, %s229
      %s251 = sphi 0, %s253
      %s254 = sphi 0, %s251
      %s255 = sphi 0, %s254
      %s271 = sphi 0, %s255
      %s277 = sphi 0, %s279
      %s280 = sphi 0, %s277
      %s281 = sphi 0, %s280
      %s297 = sphi 0, %s281
      %s303 = sphi 0, %s305
      %s306 = sphi 0, %s303
      %s307 = sphi 0, %s306
      %s323 = sphi 0, %s307
      %s329 = sphi 0, %s331
      %s332 = sphi 0, %s329
      %s333 = sphi 0, %s332
      %s349 = sphi 0, %s333
      %s355 = sphi 0, %s357
      %s358 = sphi 0, %s355
      %s359 = sphi 0, %s358
      %s375 = sphi 0, %s359
      %s381 = sphi 0, %s383
      %s384 = sphi 0, %s381
      %s385 = sphi 0, %s384
      %s401 = sphi 0, %s385
      %s407 = sphi 0, %s409
      %s410 = sphi 0, %s407
      %s411 = sphi 0, %s410
      %s427 = sphi 0, %s411
      %s433 = sphi 0, %s435
      %s436 = sphi 0, %s433
      %s437 = sphi 0, %s436
      %s453 = sphi 0, %s437
      %s457 = sphi 0, %s457
      %s459 = sphi 0, %s457
      %s460 = sphi 0, %s459
      %s474 = sphi 0, %s460
      %s478 = sphi 0, %s478
      %s480 = sphi 0, %s478
      %s481 = sphi 0, %s480
      %s495 = sphi 0, %s481
      %s499 = sphi 0, %s499
      %s501 = sphi 0, %s499
      %s502 = sphi 0, %s501
      %s516 = sphi 0, %s502
    $region4: #{transformer_forward.1} parent=1 // loop_header_branch
      %35 = sbr.rel (%p33) target = $region8
    $region5: #{transformer_forward.1} parent=1 // loop_body
      %s37 = ssub.s32 %s32, 1
      %s38 = ssub.s32 %s32, 2
      %s39 = sadd.s32 %s32, 1
      %s41 = sadd.s32 %s40, 1
      %p44 = scmp.eq.s32.totalorder %s32, 3
      %p45 = scmp.ne.s32.totalorder %s40, %s42
      %p46 = scmp.eq.s32.totalorder %s32, 0
      %p47 = por %p45, %p46
      %p48 = scmp.ne.s32.totalorder %s40, %s42
      %p49 = scmp.eq.s32.totalorder %s37, 3
      %p50 = por %p48, %p49
      %p51 = scmp.ne.s32.totalorder %s42, %s43
      %p52 = scmp.eq.s32.totalorder %s37, 0
      %p53 = por %p51, %p52
      %p54 = scmp.ne.s32.totalorder %s42, %s43
      %p55 = scmp.eq.s32.totalorder %s38, 3
      %p56 = por %p54, %p55
      %p58 = scmp.ne.s32.totalorder %s43, %s57
      %p59 = scmp.eq.s32.totalorder %s38, 0
      %p60 = por %p58, %p59
      %s62 = sadd.s32 %s61, 1
      %p65 = scmp.eq.s32.totalorder %s32, 3
      %p66 = scmp.ne.s32.totalorder %s61, %s63
      %p67 = scmp.eq.s32.totalorder %s32, 0
      %p68 = por %p66, %p67
      %p69 = scmp.ne.s32.totalorder %s61, %s63
      %p70 = scmp.eq.s32.totalorder %s37, 3
      %p71 = por %p69, %p70
      %p72 = scmp.ne.s32.totalorder %s63, %s64
      %p73 = scmp.eq.s32.totalorder %s37, 0
      %p74 = por %p72, %p73
      %p75 = scmp.ne.s32.totalorder %s63, %s64
      %p76 = scmp.eq.s32.totalorder %s38, 3
      %p77 = por %p75, %p76
      %p79 = scmp.ne.s32.totalorder %s64, %s78
      %p80 = scmp.eq.s32.totalorder %s38, 0
      %p81 = por %p79, %p80
      %s83 = sadd.s32 %s82, 1
      %p86 = scmp.eq.s32.totalorder %s32, 3
      %p87 = scmp.ne.s32.totalorder %s82, %s84
      %p88 = scmp.eq.s32.totalorder %s32, 0
      %p89 = por %p87, %p88
      %p90 = scmp.ne.s32.totalorder %s82, %s84
      %p91 = scmp.eq.s32.totalorder %s37, 3
      %p92 = por %p90, %p91
      %p93 = scmp.ne.s32.totalorder %s84, %s85
      %p94 = scmp.eq.s32.totalorder %s37, 0
      %p95 = por %p93, %p94
      %p96 = scmp.ne.s32.totalorder %s84, %s85
      %p97 = scmp.eq.s32.totalorder %s38, 3
      %p98 = por %p96, %p97
      %p100 = scmp.ne.s32.totalorder %s85, %s99
      %p101 = scmp.eq.s32.totalorder %s38, 0
      %p102 = por %p100, %p101
      %s104 = sadd.s32 %s103, 1
      %p107 = scmp.eq.s32.totalorder %s32, 3
      %p108 = scmp.ne.s32.totalorder %s103, %s105
      %p109 = scmp.eq.s32.totalorder %s32, 0
      %p110 = por %p108, %p109
      %p111 = scmp.ne.s32.totalorder %s103, %s105
      %p112 = scmp.eq.s32.totalorder %s37, 3
      %p113 = por %p111, %p112
      %p114 = scmp.ne.s32.totalorder %s105, %s106
      %p115 = scmp.eq.s32.totalorder %s37, 0
      %p116 = por %p114, %p115
      %p117 = scmp.ne.s32.totalorder %s105, %s106
      %p118 = scmp.eq.s32.totalorder %s38, 3
      %p119 = por %p117, %p118
      %p121 = scmp.ne.s32.totalorder %s106, %s120
      %p122 = scmp.eq.s32.totalorder %s38, 0
      %p123 = por %p121, %p122
      %s125 = sadd.s32 %s124, 1
      %p128 = scmp.eq.s32.totalorder %s32, 3
      %p129 = scmp.ne.s32.totalorder %s124, %s126
      %p130 = scmp.eq.s32.totalorder %s32, 0
      %p131 = por %p129, %p130
      %p132 = scmp.ne.s32.totalorder %s124, %s126
      %p133 = scmp.eq.s32.totalorder %s37, 3
      %p134 = por %p132, %p133
      %p135 = scmp.ne.s32.totalorder %s126, %s127
      %p136 = scmp.eq.s32.totalorder %s37, 0
      %p137 = por %p135, %p136
      %p138 = scmp.ne.s32.totalorder %s126, %s127
      %p139 = scmp.eq.s32.totalorder %s38, 3
      %p140 = por %p138, %p139
      %p142 = scmp.ne.s32.totalorder %s127, %s141
      %p143 = scmp.eq.s32.totalorder %s38, 0
      %p144 = por %p142, %p143
      %s145 = ssub.s32 %s32, %s39
      %p146 = scmp.eq.s32.totalorder %s145, 0
      %s148 = sadd.s32 %s147, 1
      %s149 = scalar_select %p146, %s147, %s148
      %p152 = pneg %p146
      %p153 = scmp.eq.s32.totalorder %s32, 3
      %p154 = por %p152, %p153
      %p155 = scmp.ne.s32.totalorder %s147, %s150
      %p156 = scmp.eq.s32.totalorder %s32, 0
      %p157 = por %p155, %p156
      %p158 = scmp.ne.s32.totalorder %s147, %s150
      %p159 = scmp.eq.s32.totalorder %s37, 3
      %p160 = por %p158, %p159
      %p161 = scmp.ne.s32.totalorder %s150, %s151
      %p162 = scmp.eq.s32.totalorder %s37, 0
      %p163 = por %p161, %p162
      %p164 = scmp.ne.s32.totalorder %s150, %s151
      %p165 = scmp.eq.s32.totalorder %s38, 3
      %p166 = por %p164, %p165
      %p168 = scmp.ne.s32.totalorder %s151, %s167
      %p169 = scmp.eq.s32.totalorder %s38, 0
      %p170 = por %p168, %p169
      %s171 = ssub.s32 %s32, %s39
      %p172 = scmp.eq.s32.totalorder %s171, 0
      %s174 = sadd.s32 %s173, 1
      %s175 = scalar_select %p172, %s173, %s174
      %p178 = pneg %p172
      %p179 = scmp.eq.s32.totalorder %s32, 3
      %p180 = por %p178, %p179
      %p181 = scmp.ne.s32.totalorder %s173, %s176
      %p182 = scmp.eq.s32.totalorder %s32, 0
      %p183 = por %p181, %p182
      %p184 = scmp.ne.s32.totalorder %s173, %s176
      %p185 = scmp.eq.s32.totalorder %s37, 3
      %p186 = por %p184, %p185
      %p187 = scmp.ne.s32.totalorder %s176, %s177
      %p188 = scmp.eq.s32.totalorder %s37, 0
      %p189 = por %p187, %p188
      %p190 = scmp.ne.s32.totalorder %s176, %s177
      %p191 = scmp.eq.s32.totalorder %s38, 3
      %p192 = por %p190, %p191
      %p194 = scmp.ne.s32.totalorder %s177, %s193
      %p195 = scmp.eq.s32.totalorder %s38, 0
      %p196 = por %p194, %p195
      %s197 = ssub.s32 %s32, %s39
      %p198 = scmp.eq.s32.totalorder %s197, 0
      %s200 = sadd.s32 %s199, 1
      %s201 = scalar_select %p198, %s199, %s200
      %p204 = pneg %p198
      %p205 = scmp.eq.s32.totalorder %s32, 3
      %p206 = por %p204, %p205
      %p207 = scmp.ne.s32.totalorder %s199, %s202
      %p208 = scmp.eq.s32.totalorder %s32, 0
      %p209 = por %p207, %p208
      %p210 = scmp.ne.s32.totalorder %s199, %s202
      %p211 = scmp.eq.s32.totalorder %s37, 3
      %p212 = por %p210, %p211
      %p213 = scmp.ne.s32.totalorder %s202, %s203
      %p214 = scmp.eq.s32.totalorder %s37, 0
      %p215 = por %p213, %p214
      %p216 = scmp.ne.s32.totalorder %s202, %s203
      %p217 = scmp.eq.s32.totalorder %s38, 3
      %p218 = por %p216, %p217
      %p220 = scmp.ne.s32.totalorder %s203, %s219
      %p221 = scmp.eq.s32.totalorder %s38, 0
      %p222 = por %p220, %p221
      %s223 = ssub.s32 %s32, %s39
      %p224 = scmp.eq.s32.totalorder %s223, 0
      %s226 = sadd.s32 %s225, 1
      %s227 = scalar_select %p224, %s225, %s226
      %p230 = pneg %p224
      %p231 = scmp.eq.s32.totalorder %s32, 3
      %p232 = por %p230, %p231
      %p233 = scmp.ne.s32.totalorder %s225, %s228
      %p234 = scmp.eq.s32.totalorder %s32, 0
      %p235 = por %p233, %p234
      %p236 = scmp.ne.s32.totalorder %s225, %s228
      %p237 = scmp.eq.s32.totalorder %s37, 3
      %p238 = por %p236, %p237
      %p239 = scmp.ne.s32.totalorder %s228, %s229
      %p240 = scmp.eq.s32.totalorder %s37, 0
      %p241 = por %p239, %p240
      %p242 = scmp.ne.s32.totalorder %s228, %s229
      %p243 = scmp.eq.s32.totalorder %s38, 3
      %p244 = por %p242, %p243
      %p246 = scmp.ne.s32.totalorder %s229, %s245
      %p247 = scmp.eq.s32.totalorder %s38, 0
      %p248 = por %p246, %p247
      %s249 = ssub.s32 %s32, %s39
      %p250 = scmp.eq.s32.totalorder %s249, 0
      %s252 = sadd.s32 %s251, 1
      %s253 = scalar_select %p250, %s251, %s252
      %p256 = pneg %p250
      %p257 = scmp.eq.s32.totalorder %s32, 3
      %p258 = por %p256, %p257
      %p259 = scmp.ne.s32.totalorder %s251, %s254
      %p260 = scmp.eq.s32.totalorder %s32, 0
      %p261 = por %p259, %p260
      %p262 = scmp.ne.s32.totalorder %s251, %s254
      %p263 = scmp.eq.s32.totalorder %s37, 3
      %p264 = por %p262, %p263
      %p265 = scmp.ne.s32.totalorder %s254, %s255
      %p266 = scmp.eq.s32.totalorder %s37, 0
      %p267 = por %p265, %p266
      %p268 = scmp.ne.s32.totalorder %s254, %s255
      %p269 = scmp.eq.s32.totalorder %s38, 3
      %p270 = por %p268, %p269
      %p272 = scmp.ne.s32.totalorder %s255, %s271
      %p273 = scmp.eq.s32.totalorder %s38, 0
      %p274 = por %p272, %p273
      %s275 = ssub.s32 %s32, %s39
      %p276 = scmp.eq.s32.totalorder %s275, 0
      %s278 = sadd.s32 %s277, 1
      %s279 = scalar_select %p276, %s277, %s278
      %p282 = pneg %p276
      %p283 = scmp.eq.s32.totalorder %s32, 3
      %p284 = por %p282, %p283
      %p285 = scmp.ne.s32.totalorder %s277, %s280
      %p286 = scmp.eq.s32.totalorder %s32, 0
      %p287 = por %p285, %p286
      %p288 = scmp.ne.s32.totalorder %s277, %s280
      %p289 = scmp.eq.s32.totalorder %s37, 3
      %p290 = por %p288, %p289
      %p291 = scmp.ne.s32.totalorder %s280, %s281
      %p292 = scmp.eq.s32.totalorder %s37, 0
      %p293 = por %p291, %p292
      %p294 = scmp.ne.s32.totalorder %s280, %s281
      %p295 = scmp.eq.s32.totalorder %s38, 3
      %p296 = por %p294, %p295
      %p298 = scmp.ne.s32.totalorder %s281, %s297
      %p299 = scmp.eq.s32.totalorder %s38, 0
      %p300 = por %p298, %p299
      %s301 = ssub.s32 %s32, %s39
      %p302 = scmp.eq.s32.totalorder %s301, 0
      %s304 = sadd.s32 %s303, 1
      %s305 = scalar_select %p302, %s303, %s304
      %p308 = pneg %p302
      %p309 = scmp.eq.s32.totalorder %s32, 3
      %p310 = por %p308, %p309
      %p311 = scmp.ne.s32.totalorder %s303, %s306
      %p312 = scmp.eq.s32.totalorder %s32, 0
      %p313 = por %p311, %p312
      %p314 = scmp.ne.s32.totalorder %s303, %s306
      %p315 = scmp.eq.s32.totalorder %s37, 3
      %p316 = por %p314, %p315
      %p317 = scmp.ne.s32.totalorder %s306, %s307
      %p318 = scmp.eq.s32.totalorder %s37, 0
      %p319 = por %p317, %p318
      %p320 = scmp.ne.s32.totalorder %s306, %s307
      %p321 = scmp.eq.s32.totalorder %s38, 3
      %p322 = por %p320, %p321
      %p324 = scmp.ne.s32.totalorder %s307, %s323
      %p325 = scmp.eq.s32.totalorder %s38, 0
      %p326 = por %p324, %p325
      %s327 = ssub.s32 %s32, %s39
      %p328 = scmp.eq.s32.totalorder %s327, 0
      %s330 = sadd.s32 %s329, 1
      %s331 = scalar_select %p328, %s329, %s330
      %p334 = pneg %p328
      %p335 = scmp.eq.s32.totalorder %s32, 3
      %p336 = por %p334, %p335
      %p337 = scmp.ne.s32.totalorder %s329, %s332
      %p338 = scmp.eq.s32.totalorder %s32, 0
      %p339 = por %p337, %p338
      %p340 = scmp.ne.s32.totalorder %s329, %s332
      %p341 = scmp.eq.s32.totalorder %s37, 3
      %p342 = por %p340, %p341
      %p343 = scmp.ne.s32.totalorder %s332, %s333
      %p344 = scmp.eq.s32.totalorder %s37, 0
      %p345 = por %p343, %p344
      %p346 = scmp.ne.s32.totalorder %s332, %s333
      %p347 = scmp.eq.s32.totalorder %s38, 3
      %p348 = por %p346, %p347
      %p350 = scmp.ne.s32.totalorder %s333, %s349
      %p351 = scmp.eq.s32.totalorder %s38, 0
      %p352 = por %p350, %p351
      %s353 = ssub.s32 %s32, %s39
      %p354 = scmp.eq.s32.totalorder %s353, 0
      %s356 = sadd.s32 %s355, 1
      %s357 = scalar_select %p354, %s355, %s356
      %p360 = pneg %p354
      %p361 = scmp.eq.s32.totalorder %s32, 3
      %p362 = por %p360, %p361
      %p363 = scmp.ne.s32.totalorder %s355, %s358
      %p364 = scmp.eq.s32.totalorder %s32, 0
      %p365 = por %p363, %p364
      %p366 = scmp.ne.s32.totalorder %s355, %s358
      %p367 = scmp.eq.s32.totalorder %s37, 3
      %p368 = por %p366, %p367
      %p369 = scmp.ne.s32.totalorder %s358, %s359
      %p370 = scmp.eq.s32.totalorder %s37, 0
      %p371 = por %p369, %p370
      %p372 = scmp.ne.s32.totalorder %s358, %s359
      %p373 = scmp.eq.s32.totalorder %s38, 3
      %p374 = por %p372, %p373
      %p376 = scmp.ne.s32.totalorder %s359, %s375
      %p377 = scmp.eq.s32.totalorder %s38, 0
      %p378 = por %p376, %p377
      %s379 = ssub.s32 %s32, %s39
      %p380 = scmp.eq.s32.totalorder %s379, 0
      %s382 = sadd.s32 %s381, 1
      %s383 = scalar_select %p380, %s381, %s382
      %p386 = pneg %p380
      %p387 = scmp.eq.s32.totalorder %s32, 3
      %p388 = por %p386, %p387
      %p389 = scmp.ne.s32.totalorder %s381, %s384
      %p390 = scmp.eq.s32.totalorder %s32, 0
      %p391 = por %p389, %p390
      %p392 = scmp.ne.s32.totalorder %s381, %s384
      %p393 = scmp.eq.s32.totalorder %s37, 3
      %p394 = por %p392, %p393
      %p395 = scmp.ne.s32.totalorder %s384, %s385
      %p396 = scmp.eq.s32.totalorder %s37, 0
      %p397 = por %p395, %p396
      %p398 = scmp.ne.s32.totalorder %s384, %s385
      %p399 = scmp.eq.s32.totalorder %s38, 3
      %p400 = por %p398, %p399
      %p402 = scmp.ne.s32.totalorder %s385, %s401
      %p403 = scmp.eq.s32.totalorder %s38, 0
      %p404 = por %p402, %p403
      %s405 = ssub.s32 %s32, %s39
      %p406 = scmp.eq.s32.totalorder %s405, 0
      %s408 = sadd.s32 %s407, 1
      %s409 = scalar_select %p406, %s407, %s408
      %p412 = pneg %p406
      %p413 = scmp.eq.s32.totalorder %s32, 3
      %p414 = por %p412, %p413
      %p415 = scmp.ne.s32.totalorder %s407, %s410
      %p416 = scmp.eq.s32.totalorder %s32, 0
      %p417 = por %p415, %p416
      %p418 = scmp.ne.s32.totalorder %s407, %s410
      %p419 = scmp.eq.s32.totalorder %s37, 3
      %p420 = por %p418, %p419
      %p421 = scmp.ne.s32.totalorder %s410, %s411
      %p422 = scmp.eq.s32.totalorder %s37, 0
      %p423 = por %p421, %p422
      %p424 = scmp.ne.s32.totalorder %s410, %s411
      %p425 = scmp.eq.s32.totalorder %s38, 3
      %p426 = por %p424, %p425
      %p428 = scmp.ne.s32.totalorder %s411, %s427
      %p429 = scmp.eq.s32.totalorder %s38, 0
      %p430 = por %p428, %p429
      %s431 = ssub.s32 %s32, %s39
      %p432 = scmp.eq.s32.totalorder %s431, 0
      %s434 = sadd.s32 %s433, 1
      %s435 = scalar_select %p432, %s433, %s434
      %p438 = pneg %p432
      %p439 = scmp.eq.s32.totalorder %s32, 3
      %p440 = por %p438, %p439
      %p441 = scmp.ne.s32.totalorder %s433, %s436
      %p442 = scmp.eq.s32.totalorder %s32, 0
      %p443 = por %p441, %p442
      %p444 = scmp.ne.s32.totalorder %s433, %s436
      %p445 = scmp.eq.s32.totalorder %s37, 3
      %p446 = por %p444, %p445
      %p447 = scmp.ne.s32.totalorder %s436, %s437
      %p448 = scmp.eq.s32.totalorder %s37, 0
      %p449 = por %p447, %p448
      %p450 = scmp.ne.s32.totalorder %s436, %s437
      %p451 = scmp.eq.s32.totalorder %s38, 3
      %p452 = por %p450, %p451
      %p454 = scmp.ne.s32.totalorder %s437, %s453
      %p455 = scmp.eq.s32.totalorder %s38, 0
      %p456 = por %p454, %p455
      %s458 = sadd.s32 %s457, 1
      %p461 = scmp.eq.s32.totalorder %s32, 3
      %p462 = scmp.ne.s32.totalorder %s457, %s459
      %p463 = scmp.eq.s32.totalorder %s32, 0
      %p464 = por %p462, %p463
      %p465 = scmp.ne.s32.totalorder %s457, %s459
      %p466 = scmp.eq.s32.totalorder %s37, 3
      %p467 = por %p465, %p466
      %p468 = scmp.ne.s32.totalorder %s459, %s460
      %p469 = scmp.eq.s32.totalorder %s37, 0
      %p470 = por %p468, %p469
      %p471 = scmp.ne.s32.totalorder %s459, %s460
      %p472 = scmp.eq.s32.totalorder %s38, 3
      %p473 = por %p471, %p472
      %p475 = scmp.ne.s32.totalorder %s460, %s474
      %p476 = scmp.eq.s32.totalorder %s38, 0
      %p477 = por %p475, %p476
      %s479 = sadd.s32 %s478, 1
      %p482 = scmp.eq.s32.totalorder %s32, 3
      %p483 = scmp.ne.s32.totalorder %s478, %s480
      %p484 = scmp.eq.s32.totalorder %s32, 0
      %p485 = por %p483, %p484
      %p486 = scmp.ne.s32.totalorder %s478, %s480
      %p487 = scmp.eq.s32.totalorder %s37, 3
      %p488 = por %p486, %p487
      %p489 = scmp.ne.s32.totalorder %s480, %s481
      %p490 = scmp.eq.s32.totalorder %s37, 0
      %p491 = por %p489, %p490
      %p492 = scmp.ne.s32.totalorder %s480, %s481
      %p493 = scmp.eq.s32.totalorder %s38, 3
      %p494 = por %p492, %p493
      %p496 = scmp.ne.s32.totalorder %s481, %s495
      %p497 = scmp.eq.s32.totalorder %s38, 0
      %p498 = por %p496, %p497
      %s500 = sadd.s32 %s499, 1
      %p503 = scmp.eq.s32.totalorder %s32, 3
      %p504 = scmp.ne.s32.totalorder %s499, %s501
      %p505 = scmp.eq.s32.totalorder %s32, 0
      %p506 = por %p504, %p505
      %p507 = scmp.ne.s32.totalorder %s499, %s501
      %p508 = scmp.eq.s32.totalorder %s37, 3
      %p509 = por %p507, %p508
      %p510 = scmp.ne.s32.totalorder %s501, %s502
      %p511 = scmp.eq.s32.totalorder %s37, 0
      %p512 = por %p510, %p511
      %p513 = scmp.ne.s32.totalorder %s501, %s502
      %p514 = scmp.eq.s32.totalorder %s38, 3
      %p515 = por %p513, %p514
      %p517 = scmp.ne.s32.totalorder %s502, %s516
      %p518 = scmp.eq.s32.totalorder %s38, 0
      %p519 = por %p517, %p518
      %p520 = scmp.le.s32.totalorder 1, %s32
      %p521 = scmp.lt.s32.totalorder %s32, 5
      %p522 = pnand %p520, %p521
      %p523 = pneg %p522
      // Predicated region
      $region9: #{transformer_forward.1} parent=5 // pred_check
        _
      $region10: #{transformer_forward.1} parent=5 // pred_check_branch
        %525 = sbr.rel (%p522) target = $region12
      $region11: #{transformer_forward.1} parent=5 // pred_region
        %s526 = ssub.s32 %s32, 1
        // Predicated region
        $region13: #{transformer_forward.1} parent=11 // pred_check
          %p527 = pneg %p53
        $region14: #{transformer_forward.1} parent=11 // pred_check_branch
          %529 = sbr.rel (%p527) target = $region16
        $region15: #{transformer_forward.1} parent=11 // pred_region
          _
        $region16: #{transformer_forward.1} parent=11 // pred_fallthru
          _
        // Predicated region
        $region17: #{transformer_forward.1} parent=11 // pred_check
          %p530 = pneg %p74
        $region18: #{transformer_forward.1} parent=11 // pred_check_branch
          %532 = sbr.rel (%p530) target = $region20
        $region19: #{transformer_forward.1} parent=11 // pred_region
          _
        $region20: #{transformer_forward.1} parent=11 // pred_fallthru
          _
        // Predicated region
        $region21: #{transformer_forward.1} parent=11 // pred_check
          %p533 = pneg %p95
        $region22: #{transformer_forward.1} parent=11 // pred_check_branch
          %535 = sbr.rel (%p533) target = $region24
        $region23: #{transformer_forward.1} parent=11 // pred_region
          _
        $region24: #{transformer_forward.1} parent=11 // pred_fallthru
          _
        // Predicated region
        $region25: #{transformer_forward.1} parent=11 // pred_check
          %p536 = pneg %p116
        $region26: #{transformer_forward.1} parent=11 // pred_check_branch
          %538 = sbr.rel (%p536) target = $region28
        $region27: #{transformer_forward.1} parent=11 // pred_region
          _
        $region28: #{transformer_forward.1} parent=11 // pred_fallthru
          _
        // Predicated region
        $region29: #{transformer_forward.1} parent=11 // pred_check
          %p539 = pneg %p137
        $region30: #{transformer_forward.1} parent=11 // pred_check_branch
          %541 = sbr.rel (%p539) target = $region32
        $region31: #{transformer_forward.1} parent=11 // pred_region
          _
        $region32: #{transformer_forward.1} parent=11 // pred_fallthru
          _
        // Predicated region
        $region33: #{transformer_forward.1} parent=11 // pred_check
          %p542 = pneg %p470
        $region34: #{transformer_forward.1} parent=11 // pred_check_branch
          %544 = sbr.rel (%p542) target = $region36
        $region35: #{transformer_forward.1} parent=11 // pred_region
          _
        $region36: #{transformer_forward.1} parent=11 // pred_fallthru
          _
        // Predicated region
        $region37: #{transformer_forward.1} parent=11 // pred_check
          %p545 = pneg %p491
        $region38: #{transformer_forward.1} parent=11 // pred_check_branch
          %547 = sbr.rel (%p545) target = $region40
        $region39: #{transformer_forward.1} parent=11 // pred_region
          _
        $region40: #{transformer_forward.1} parent=11 // pred_fallthru
          _
      $region12: #{transformer_forward.1} parent=5 // pred_fallthru
        _
      %p548 = scmp.lt.s32.totalorder %s32, 4
      // Predicated region
      $region41: #{transformer_forward.1} parent=5 // pred_check
        %p549 = pneg %p548
      $region42: #{transformer_forward.1} parent=5 // pred_check_branch
        %551 = sbr.rel (%p549) target = $region44
      $region43: #{transformer_forward.1} parent=5 // pred_region
        // Predicated region
        $region45: #{transformer_forward.1} parent=43 // pred_check
          %p552 = pneg %p157
        $region46: #{transformer_forward.1} parent=43 // pred_check_branch
          %554 = sbr.rel (%p552) target = $region48
        $region47: #{transformer_forward.1} parent=43 // pred_region
          %s555 = sand.u32 %s147, 1
          %s556 = scalar_lea.sflag [#allocation4], %s555
          %s557 = sand.u32 %s147, 1
          %s558 = smul.addr %s557, 192
          %s559 = scalar_lea.vmem [#allocation3], %s558
          %s561 = ssub.s32 3072, 3072
          %562 = vsyncadd %s556, %s561
          %s563 = smul.addr %s32, 48
          %s564 = smul.addr %s563, 64
          %s565 = scalar_lea.hbm %s5, %s564
          %s566 = sshll.u32 %s559, 4
          %s567 = int_to_ptr.vmem [resolvable:$true] %s566
          %572 = dma.hbm_to_vmem [thread:$0]  %s565, 3072, %s567, %s556, 192, 192, 12
        $region48: #{transformer_forward.1} parent=43 // pred_fallthru
          _
        // Predicated region
        $region49: #{transformer_forward.1} parent=43 // pred_check
          %p573 = pneg %p183
        $region50: #{transformer_forward.1} parent=43 // pred_check_branch
          %575 = sbr.rel (%p573) target = $region52
        $region51: #{transformer_forward.1} parent=43 // pred_region
          %p576 = scmp.lt.s32.totalorder %s32, 3
          %s577 = scalar_select %p576, %s32, 3
          %s578 = smul.addr %s577, 3
          %s579 = scalar_lea.vmem %s6, %s578
        $region52: #{transformer_forward.1} parent=43 // pred_fallthru
          _
        // Predicated region
        $region53: #{transformer_forward.1} parent=43 // pred_check
          %p580 = pneg %p209
        $region54: #{transformer_forward.1} parent=43 // pred_check_branch
          %582 = sbr.rel (%p580) target = $region56
        $region55: #{transformer_forward.1} parent=43 // pred_region
          %p583 = scmp.lt.s32.totalorder %s32, 3
          %s584 = scalar_select %p583, %s32, 3
          %s585 = smul.addr %s584, 16
          %s586 = smul.addr %s585, 4
          %s587 = scalar_lea.vmem %s7, %s586
        $region56: #{transformer_forward.1} parent=43 // pred_fallthru
          _
        // Predicated region
        $region57: #{transformer_forward.1} parent=43 // pred_check
          %p588 = pneg %p235
        $region58: #{transformer_forward.1} parent=43 // pred_check_branch
          %590 = sbr.rel (%p588) target = $region60
        $region59: #{transformer_forward.1} parent=43 // pred_region
          %p591 = scmp.lt.s32.totalorder %s32, 3
          %s592 = scalar_select %p591, %s32, 3
          %s593 = scalar_lea.vmem %s8, %s592
        $region60: #{transformer_forward.1} parent=43 // pred_fallthru
          _
        // Predicated region
        $region61: #{transformer_forward.1} parent=43 // pred_check
          %p594 = pneg %p261
        $region62: #{transformer_forward.1} parent=43 // pred_check_branch
          %596 = sbr.rel (%p594) target = $region64
        $region63: #{transformer_forward.1} parent=43 // pred_region
          %p597 = scmp.lt.s32.totalorder %s32, 3
          %s598 = scalar_select %p597, %s32, 3
          %s599 = scalar_lea.vmem %s9, %s598
        $region64: #{transformer_forward.1} parent=43 // pred_fallthru
          _
        // Predicated region
        $region65: #{transformer_forward.1} parent=43 // pred_check
          %p600 = pneg %p287
        $region66: #{transformer_forward.1} parent=43 // pred_check_branch
          %602 = sbr.rel (%p600) target = $region68
        $region67: #{transformer_forward.1} parent=43 // pred_region
          %p603 = scmp.lt.s32.totalorder %s32, 3
          %s604 = scalar_select %p603, %s32, 3
          %s605 = scalar_lea.vmem %s10, %s604
        $region68: #{transformer_forward.1} parent=43 // pred_fallthru
          _
        // Predicated region
        $region69: #{transformer_forward.1} parent=43 // pred_check
          %p606 = pneg %p313
        $region70: #{transformer_forward.1} parent=43 // pred_check_branch
          %608 = sbr.rel (%p606) target = $region72
        $region71: #{transformer_forward.1} parent=43 // pred_region
          %p609 = scmp.lt.s32.totalorder %s32, 3
          %s610 = scalar_select %p609, %s32, 3
          %s611 = smul.addr %s610, 16
          %s612 = smul.addr %s611, 4
          %s613 = scalar_lea.vmem %s11, %s612
        $region72: #{transformer_forward.1} parent=43 // pred_fallthru
          _
        // Predicated region
        $region73: #{transformer_forward.1} parent=43 // pred_check
          %p614 = pneg %p339
        $region74: #{transformer_forward.1} parent=43 // pred_check_branch
          %616 = sbr.rel (%p614) target = $region76
        $region75: #{transformer_forward.1} parent=43 // pred_region
          %p617 = scmp.lt.s32.totalorder %s32, 3
          %s618 = scalar_select %p617, %s32, 3
          %s619 = scalar_lea.vmem %s12, %s618
        $region76: #{transformer_forward.1} parent=43 // pred_fallthru
          _
        // Predicated region
        $region77: #{transformer_forward.1} parent=43 // pred_check
          %p620 = pneg %p365
        $region78: #{transformer_forward.1} parent=43 // pred_check_branch
          %622 = sbr.rel (%p620) target = $region80
        $region79: #{transformer_forward.1} parent=43 // pred_region
          %s623 = sand.u32 %s355, 1
          %s624 = scalar_lea.sflag [#allocation7], %s623
          %s625 = sand.u32 %s355, 1
          %s626 = smul.addr %s625, 64
          %s627 = scalar_lea.vmem [#allocation6], %s626
          %s629 = ssub.s32 1024, 1024
          %630 = vsyncadd %s624, %s629
          %s631 = smul.addr %s32, 16
          %s632 = smul.addr %s631, 64
          %s633 = scalar_lea.hbm %s13, %s632
          %s634 = sshll.u32 %s627, 4
          %s635 = int_to_ptr.vmem [resolvable:$true] %s634
          %640 = dma.hbm_to_vmem [thread:$0]  %s633, 1024, %s635, %s624, 64, 64, 4
        $region80: #{transformer_forward.1} parent=43 // pred_fallthru
          _
        // Predicated region
        $region81: #{transformer_forward.1} parent=43 // pred_check
          %p641 = pneg %p391
        $region82: #{transformer_forward.1} parent=43 // pred_check_branch
          %643 = sbr.rel (%p641) target = $region84
        $region83: #{transformer_forward.1} parent=43 // pred_region
          %p644 = scmp.lt.s32.totalorder %s32, 3
          %s645 = scalar_select %p644, %s32, 3
          %s646 = scalar_lea.vmem %s14, %s645
        $region84: #{transformer_forward.1} parent=43 // pred_fallthru
          _
        // Predicated region
        $region85: #{transformer_forward.1} parent=43 // pred_check
          %p647 = pneg %p417
        $region86: #{transformer_forward.1} parent=43 // pred_check_branch
          %649 = sbr.rel (%p647) target = $region88
        $region87: #{transformer_forward.1} parent=43 // pred_region
          %p650 = scmp.lt.s32.totalorder %s32, 3
          %s651 = scalar_select %p650, %s32, 3
          %s652 = scalar_lea.vmem %s15, %s651
        $region88: #{transformer_forward.1} parent=43 // pred_fallthru
          _
        // Predicated region
        $region89: #{transformer_forward.1} parent=43 // pred_check
          %p653 = pneg %p443
        $region90: #{transformer_forward.1} parent=43 // pred_check_branch
          %655 = sbr.rel (%p653) target = $region92
        $region91: #{transformer_forward.1} parent=43 // pred_region
          %p656 = scmp.lt.s32.totalorder %s32, 3
          %s657 = scalar_select %p656, %s32, 3
          %s658 = scalar_lea.vmem %s16, %s657
        $region92: #{transformer_forward.1} parent=43 // pred_fallthru
          _
      $region44: #{transformer_forward.1} parent=5 // pred_fallthru
        _
      %p659 = scmp.le.s32.totalorder 1, %s32
      %p660 = scmp.lt.s32.totalorder %s32, 5
      %p661 = pnand %p659, %p660
      %p662 = pneg %p661
      // Predicated region
      $region93: #{transformer_forward.1} parent=5 // pred_check
        _
      $region94: #{transformer_forward.1} parent=5 // pred_check_branch
        %664 = sbr.rel (%p661) target = $region96
      $region95: #{transformer_forward.1} parent=5 // pred_region
        %s665 = ssub.s32 %s32, 1
        %s666 = sand.u32 %s150, 1
        %s667 = scalar_lea.sflag [#allocation4], %s666
        %s668 = sand.u32 %s150, 1
        %s669 = smul.addr %s668, 192
        %s670 = scalar_lea.vmem [#allocation3], %s669
        // Predicated region
        $region97: #{transformer_forward.1} parent=95 // pred_check
          %p671 = pneg %p163
        $region98: #{transformer_forward.1} parent=95 // pred_check_branch
          %673 = sbr.rel (%p671) target = $region100
        $region99: #{transformer_forward.1} parent=95 // pred_region
          %674 = dma.done %s667, 3072
        $region100: #{transformer_forward.1} parent=95 // pred_fallthru
          _
        %s675 = sand.u32 %s358, 1
        %s676 = scalar_lea.sflag [#allocation7], %s675
        %s677 = sand.u32 %s358, 1
        %s678 = smul.addr %s677, 64
        %s679 = scalar_lea.vmem [#allocation6], %s678
        // Predicated region
        $region101: #{transformer_forward.1} parent=95 // pred_check
          %p680 = pneg %p371
        $region102: #{transformer_forward.1} parent=95 // pred_check_branch
          %682 = sbr.rel (%p680) target = $region104
        $region103: #{transformer_forward.1} parent=95 // pred_region
          %683 = dma.done %s676, 1024
        $region104: #{transformer_forward.1} parent=95 // pred_fallthru
          _
        %p684 = pneg %p53
        %p685 = pneg %p50
        %p686 = pneg %p74
        %p687 = pneg %p71
        %p688 = pneg %p95
        %p689 = pneg %p92
        %p690 = pneg %p116
        %p691 = pneg %p113
        %p692 = pneg %p137
        %p693 = pneg %p134
        %s694 = sand.u32 %s150, 1
        %s695 = scalar_lea.sflag [#allocation4], %s694
        %s696 = sand.u32 %s150, 1
        %s697 = smul.addr %s696, 192
        %s698 = scalar_lea.vmem [#allocation3], %s697
        %p699 = pneg %p163
        %p700 = pneg %p160
        %p701 = scmp.lt.s32.totalorder %s37, 3
        %s702 = scalar_select %p701, %s37, 3
        %s703 = smul.addr %s702, 3
        %s704 = scalar_lea.vmem %s6, %s703
        %p705 = pneg %p189
        %p706 = pneg %p186
        %p707 = scmp.lt.s32.totalorder %s37, 3
        %s708 = scalar_select %p707, %s37, 3
        %s709 = smul.addr %s708, 16
        %s710 = smul.addr %s709, 4
        %s711 = scalar_lea.vmem %s7, %s710
        %p712 = pneg %p215
        %p713 = pneg %p212
        %p714 = scmp.lt.s32.totalorder %s37, 3
        %s715 = scalar_select %p714, %s37, 3
        %s716 = scalar_lea.vmem %s8, %s715
        %p717 = pneg %p241
        %p718 = pneg %p238
        %p719 = scmp.lt.s32.totalorder %s37, 3
        %s720 = scalar_select %p719, %s37, 3
        %s721 = scalar_lea.vmem %s9, %s720
        %p722 = pneg %p267
        %p723 = pneg %p264
        %p724 = scmp.lt.s32.totalorder %s37, 3
        %s725 = scalar_select %p724, %s37, 3
        %s726 = scalar_lea.vmem %s10, %s725
        %p727 = pneg %p293
        %p728 = pneg %p290
        %p729 = scmp.lt.s32.totalorder %s37, 3
        %s730 = scalar_select %p729, %s37, 3
        %s731 = smul.addr %s730, 16
        %s732 = smul.addr %s731, 4
        %s733 = scalar_lea.vmem %s11, %s732
        %p734 = pneg %p319
        %p735 = pneg %p316
        %p736 = scmp.lt.s32.totalorder %s37, 3
        %s737 = scalar_select %p736, %s37, 3
        %s738 = scalar_lea.vmem %s12, %s737
        %p739 = pneg %p345
        %p740 = pneg %p342
        %s741 = sand.u32 %s358, 1
        %s742 = scalar_lea.sflag [#allocation7], %s741
        %s743 = sand.u32 %s358, 1
        %s744 = smul.addr %s743, 64
        %s745 = scalar_lea.vmem [#allocation6], %s744
        %p746 = pneg %p371
        %p747 = pneg %p368
        %p748 = scmp.lt.s32.totalorder %s37, 3
        %s749 = scalar_select %p748, %s37, 3
        %s750 = scalar_lea.vmem %s14, %s749
        %p751 = pneg %p397
        %p752 = pneg %p394
        %p753 = scmp.lt.s32.totalorder %s37, 3
        %s754 = scalar_select %p753, %s37, 3
        %s755 = scalar_lea.vmem %s15, %s754
        %p756 = pneg %p423
        %p757 = pneg %p420
        %p758 = scmp.lt.s32.totalorder %s37, 3
        %s759 = scalar_select %p758, %s37, 3
        %s760 = scalar_lea.vmem %s16, %s759
        %p761 = pneg %p449
        %p762 = pneg %p446
        %p763 = pneg %p470
        %p764 = pneg %p467
        %p765 = pneg %p491
        %p766 = pneg %p488
        %p767 = pneg %p512
        %p768 = pneg %p509
        %p769 = scmp.lt.s32.totalorder %s37, 3
        %s770 = scalar_select %p769, %s37, 3
        %s771 = smul.addr %s770, 3
        %s772 = scalar_lea.vmem %s6, %s771
        %p773 = scmp.lt.s32.totalorder %s37, 3
        %s774 = scalar_select %p773, %s37, 3
        %s775 = smul.addr %s774, 16
        %s776 = smul.addr %s775, 4
        %s777 = scalar_lea.vmem %s7, %s776
        %p778 = scmp.lt.s32.totalorder %s37, 3
        %s779 = scalar_select %p778, %s37, 3
        %s780 = scalar_lea.vmem %s8, %s779
        %p781 = scmp.lt.s32.totalorder %s37, 3
        %s782 = scalar_select %p781, %s37, 3
        %s783 = scalar_lea.vmem %s9, %s782
        %p784 = scmp.lt.s32.totalorder %s37, 3
        %s785 = scalar_select %p784, %s37, 3
        %s786 = scalar_lea.vmem %s10, %s785
        %p787 = scmp.lt.s32.totalorder %s37, 3
        %s788 = scalar_select %p787, %s37, 3
        %s789 = smul.addr %s788, 16
        %s790 = smul.addr %s789, 4
        %s791 = scalar_lea.vmem %s11, %s790
        %p792 = scmp.lt.s32.totalorder %s37, 3
        %s793 = scalar_select %p792, %s37, 3
        %s794 = scalar_lea.vmem %s12, %s793
        %p795 = scmp.lt.s32.totalorder %s37, 3
        %s796 = scalar_select %p795, %s37, 3
        %s797 = scalar_lea.vmem %s14, %s796
        %p798 = scmp.lt.s32.totalorder %s37, 3
        %s799 = scalar_select %p798, %s37, 3
        %s800 = scalar_lea.vmem %s15, %s799
        %p801 = scmp.lt.s32.totalorder %s37, 3
        %s802 = scalar_select %p801, %s37, 3
        %s803 = scalar_lea.vmem %s16, %s802
        %p805 = scmp.eq.s32.totalorder %s37, 0
        // Predicated region
        $region105: #{transformer_forward.1} parent=95 // pred_check
          %p806 = pneg %p805
        $region106: #{transformer_forward.1} parent=95 // pred_check_branch
          %808 = sbr.rel (%p806) target = $region108
        $region107: #{transformer_forward.1} parent=95 // pred_region
          %v809 = vld [vmem:[%s0] sm:$0xff]
          %v810 = vld [vmem:[%s0 + $0x8] sm:$0xff]
          %v811 = vpack.c.bf16 %v810, %v809
          %v812 = vld [vmem:[%s1] sm:$0xf]
          %v813 = vld [vmem:[%s1 + $0x4] sm:$0xf]
          %v814 = vld [vmem:[%s2] sm:$0x1]
          %v816 = vlaneseq
          %v817 = vshrl.u32 %v816, 7
          %v818 = vsub.s32 0, %v817
          %v819 = vrot.slane %v814, %v818
          %v823 = vunpack.c.l.b16 %v812
          %v824 = vunpack.c.l.b16 %v813
          %v825 = vpack.c.b16 %v824, %v823
          %vm827 = vcmask 130048
          %v829 = vsel %vm827, %v811, 0
          %831 = vmatprep.subr.bf16.mxu0 0
          %832 = vmatpush1.bf16.msra.mxu0 %v825
          %833 = vmatprep.subr.bf16.mxu0 0
          %834 = vmatpush1.bf16.msra.mxu0 0
          %835 = vmatprep.subr.bf16.mxu0 0
          %836 = vmatpush1.bf16.msra.mxu0 0
          %837 = vmatprep.subr.bf16.mxu0 0
          %838 = vmatpush1.bf16.msra.mxu0 0
          %839 = vmatprep.subr.bf16.mxu0 0
          %840 = vmatpush1.bf16.msra.mxu0 0
          %841 = vmatprep.subr.bf16.mxu0 0
          %842 = vmatpush1.bf16.msra.mxu0 0
          %843 = vmatprep.subr.bf16.mxu0 0
          %844 = vmatpush1.bf16.msra.mxu0 0
          %845 = vmatprep.subr.bf16.mxu0 0
          %846 = vmatpush1.bf16.msra.mxu0 0
          %847 = vmatprep.subr.bf16.mxu0 0
          %848 = vmatpush1.bf16.msra.mxu0 0
          %849 = vmatprep.subr.bf16.mxu0 0
          %850 = vmatpush1.bf16.msra.mxu0 0
          %851 = vmatprep.subr.bf16.mxu0 0
          %852 = vmatpush1.bf16.msra.mxu0 0
          %853 = vmatprep.subr.bf16.mxu0 0
          %854 = vmatpush1.bf16.msra.mxu0 0
          %855 = vmatprep.subr.bf16.mxu0 0
          %856 = vmatpush1.bf16.msra.mxu0 0
          %857 = vmatprep.subr.bf16.mxu0 0
          %858 = vmatpush1.bf16.msra.mxu0 0
          %859 = vmatprep.subr.bf16.mxu0 0
          %860 = vmatpush1.bf16.msra.mxu0 0
          %861 = vmatprep.subr.bf16.mxu0 0
          %862 = vmatpush1.bf16.msra.mxu0 0
          %863 = vmatprep.mubr.bf16.mxu0 0
          %864 = vmatmul.mubr.bf16.gmra.mrb[0].mxu0 %v829
          %v865 = vpop.f32.mrb[0].mxu0
          %v866 = vadd.f32 %v819, %v865
          %v867 = vpop.f32.mrb[0].mxu0
          %v868 = vpop.f32.mrb[0].mxu0
          %v869 = vadd.f32 %v819, %v868
          %v870 = vpop.f32.mrb[0].mxu0
          %871 = vdwg.mxu0
          %v872 = vld [vmem:[%s3] sm:$0xff]
          %v873 = vld [vmem:[%s3 + $0x8] sm:$0xff]
          %v874 = vadd.f32 %v866, %v872
          %v875 = vadd.f32 %v869, %v873
          %876 = vst [vmem:[#allocation2] sm:$0xff] %v874
          %877 = vst [vmem:[#allocation2 + $0x8] sm:$0xff] %v875
        $region108: #{transformer_forward.1} parent=95 // pred_fallthru
          _
        %v878 = vld [vmem:[#allocation2] sm:$0xff]
        %v879 = vld [vmem:[#allocation2 + $0x8] sm:$0xff]
        %v880 = vpack.c.bf16 %v879, %v878
        %v881 = vld [vmem:[%s670] sm:$0xff]
        %v882 = vld [vmem:[%s670 + $0x8] sm:$0xf]
        %v883 = vld [vmem:[%s670 + $0xc] sm:$0xff]
        %v884 = vld [vmem:[%s670 + $0x14] sm:$0xf]
        %v885 = vld [vmem:[%s670 + $0x18] sm:$0xff]
        %v886 = vld [vmem:[%s670 + $0x20] sm:$0xf]
        %v887 = vld [vmem:[%s670 + $0x24] sm:$0xff]
        %v888 = vld [vmem:[%s670 + $0x2c] sm:$0xf]
        %v889 = vld [vmem:[%s670 + $0x30] sm:$0xff]
        %v890 = vld [vmem:[%s670 + $0x38] sm:$0xf]
        %v891 = vld [vmem:[%s670 + $0x3c] sm:$0xff]
        %v892 = vld [vmem:[%s670 + $0x44] sm:$0xf]
        %v893 = vld [vmem:[%s670 + $0x48] sm:$0xff]
        %v894 = vld [vmem:[%s670 + $0x50] sm:$0xf]
        %v895 = vld [vmem:[%s670 + $0x54] sm:$0xff]
        %v896 = vld [vmem:[%s670 + $0x5c] sm:$0xf]
        %v897 = vld [vmem:[%s670 + $0x60] sm:$0xff]
        %v898 = vld [vmem:[%s670 + $0x68] sm:$0xf]
        %v899 = vld [vmem:[%s670 + $0x6c] sm:$0xff]
        %v900 = vld [vmem:[%s670 + $0x74] sm:$0xf]
        %v901 = vld [vmem:[%s670 + $0x78] sm:$0xff]
        %v902 = vld [vmem:[%s670 + $0x80] sm:$0xf]
        %v903 = vld [vmem:[%s670 + $0x84] sm:$0xff]
        %v904 = vld [vmem:[%s670 + $0x8c] sm:$0xf]
        %v905 = vld [vmem:[%s670 + $0x90] sm:$0xff]
        %v906 = vld [vmem:[%s670 + $0x98] sm:$0xf]
        %v907 = vld [vmem:[%s670 + $0x9c] sm:$0xff]
        %v908 = vld [vmem:[%s670 + $0xa4] sm:$0xf]
        %v909 = vld [vmem:[%s670 + $0xa8] sm:$0xff]
        %v910 = vld [vmem:[%s670 + $0xb0] sm:$0xf]
        %v911 = vld [vmem:[%s670 + $0xb4] sm:$0xff]
        %v912 = vld [vmem:[%s670 + $0xbc] sm:$0xf]
        %v913 = vld [vmem:[%s772] sm:$0x7]
        %v915 = vlaneseq
        %v916 = vshrl.u32 %v915, 7
        %v917 = vsub.s32 0, %v916
        %v918 = vrot.slane %v913, %v917
        %v919 = vlaneseq
        %v920 = vshrl.u32 %v919, 7
        %v921 = vsub.s32 1, %v920
        %v922 = vrot.slane %v913, %v921
        %v923 = vlaneseq
        %v924 = vshrl.u32 %v923, 7
        %v925 = vsub.s32 2, %v924
        %v926 = vrot.slane %v913, %v925
        %v962 = vunpack.c.l.b16 %v881
        %v963 = vunpack.c.h.b16 %v881
        %v964 = vunpack.c.l.b16 %v882
        %v965 = vunpack.c.l.b16 %v883
        %v966 = vunpack.c.h.b16 %v883
        %v967 = vunpack.c.l.b16 %v884
        %v968 = vunpack.c.l.b16 %v885
        %v969 = vunpack.c.h.b16 %v885
        %v970 = vunpack.c.l.b16 %v886
        %v971 = vunpack.c.l.b16 %v887
        %v972 = vunpack.c.h.b16 %v887
        %v973 = vunpack.c.l.b16 %v888
        %v974 = vunpack.c.l.b16 %v889
        %v975 = vunpack.c.h.b16 %v889
        %v976 = vunpack.c.l.b16 %v890
        %v977 = vunpack.c.l.b16 %v891
        %v978 = vunpack.c.h.b16 %v891
        %v979 = vunpack.c.l.b16 %v892
        %v980 = vunpack.c.l.b16 %v893
        %v981 = vunpack.c.h.b16 %v893
        %v982 = vunpack.c.l.b16 %v894
        %v983 = vunpack.c.l.b16 %v895
        %v984 = vunpack.c.h.b16 %v895
        %v985 = vunpack.c.l.b16 %v896
        %v986 = vunpack.c.l.b16 %v897
        %v987 = vunpack.c.h.b16 %v897
        %v988 = vunpack.c.l.b16 %v898
        %v989 = vunpack.c.l.b16 %v899
        %v990 = vunpack.c.h.b16 %v899
        %v991 = vunpack.c.l.b16 %v900
        %v992 = vunpack.c.l.b16 %v901
        %v993 = vunpack.c.h.b16 %v901
        %v994 = vunpack.c.l.b16 %v902
        %v995 = vunpack.c.l.b16 %v903
        %v996 = vunpack.c.h.b16 %v903
        %v997 = vunpack.c.l.b16 %v904
        %v998 = vunpack.c.l.b16 %v905
        %v999 = vunpack.c.h.b16 %v905
        %v1000 = vunpack.c.l.b16 %v906
        %v1001 = vunpack.c.l.b16 %v907
        %v1002 = vunpack.c.h.b16 %v907
        %v1003 = vunpack.c.l.b16 %v908
        %v1004 = vunpack.c.l.b16 %v909
        %v1005 = vunpack.c.h.b16 %v909
        %v1006 = vunpack.c.l.b16 %v910
        %v1007 = vunpack.c.l.b16 %v911
        %v1008 = vunpack.c.h.b16 %v911
        %v1009 = vunpack.c.l.b16 %v912
        %v1010 = vpack.c.b16 %v965, %v962
        %v1011 = vpack.c.b16 %v966, %v963
        %v1012 = vpack.c.b16 %v967, %v964
        %v1013 = vpack.c.b16 %v971, %v968
        %v1014 = vpack.c.b16 %v972, %v969
        %v1015 = vpack.c.b16 %v973, %v970
        %v1016 = vpack.c.b16 %v977, %v974
        %v1017 = vpack.c.b16 %v978, %v975
        %v1018 = vpack.c.b16 %v979, %v976
        %v1019 = vpack.c.b16 %v983, %v980
        %v1020 = vpack.c.b16 %v984, %v981
        %v1021 = vpack.c.b16 %v985, %v982
        %v1022 = vpack.c.b16 %v989, %v986
        %v1023 = vpack.c.b16 %v990, %v987
        %v1024 = vpack.c.b16 %v991, %v988
        %v1025 = vpack.c.b16 %v995, %v992
        %v1026 = vpack.c.b16 %v996, %v993
        %v1027 = vpack.c.b16 %v997, %v994
        %v1028 = vpack.c.b16 %v1001, %v998
        %v1029 = vpack.c.b16 %v1002, %v999
        %v1030 = vpack.c.b16 %v1003, %v1000
        %v1031 = vpack.c.b16 %v1007, %v1004
        %v1032 = vpack.c.b16 %v1008, %v1005
        %v1033 = vpack.c.b16 %v1009, %v1006
        %1058 = vmatprep.subr.bf16.mxu0 %v1011
        %1059 = vmatpush1.bf16.msra.mxu0 %v1010
        %1060 = vmatprep.subr.bf16.mxu0 %v1014
        %1061 = vmatpush1.bf16.msra.mxu0 %v1013
        %1062 = vmatprep.subr.bf16.mxu0 %v1017
        %1063 = vmatpush1.bf16.msra.mxu0 %v1016
        %1064 = vmatprep.subr.bf16.mxu0 %v1020
        %1065 = vmatpush1.bf16.msra.mxu0 %v1019
        %1066 = vmatprep.subr.bf16.mxu0 %v1023
        %1067 = vmatpush1.bf16.msra.mxu0 %v1022
        %1068 = vmatprep.subr.bf16.mxu0 %v1026
        %1069 = vmatpush1.bf16.msra.mxu0 %v1025
        %1070 = vmatprep.subr.bf16.mxu0 %v1029
        %1071 = vmatpush1.bf16.msra.mxu0 %v1028
        %1072 = vmatprep.subr.bf16.mxu0 %v1032
        %1073 = vmatpush1.bf16.msra.mxu0 %v1031
        %1074 = vmatprep.subr.bf16.mxu0 0
        %1075 = vmatpush1.bf16.msra.mxu0 0
        %1076 = vmatprep.subr.bf16.mxu0 0
        %1077 = vmatpush1.bf16.msra.mxu0 0
        %1078 = vmatprep.subr.bf16.mxu0 0
        %1079 = vmatpush1.bf16.msra.mxu0 0
        %1080 = vmatprep.subr.bf16.mxu0 0
        %1081 = vmatpush1.bf16.msra.mxu0 0
        %1082 = vmatprep.subr.bf16.mxu0 0
        %1083 = vmatpush1.bf16.msra.mxu0 0
        %1084 = vmatprep.subr.bf16.mxu0 0
        %1085 = vmatpush1.bf16.msra.mxu0 0
        %1086 = vmatprep.subr.bf16.mxu0 0
        %1087 = vmatpush1.bf16.msra.mxu0 0
        %1088 = vmatprep.subr.bf16.mxu0 0
        %1089 = vmatpush1.bf16.msra.mxu0 0
        %1090 = vmatprep.mubr.bf16.mxu0 0
        %1091 = vmatmul.mubr.bf16.gmra.mrb[0].mxu0 %v880
        %v1092 = vpop.f32.mrb[0].mxu0
        %v1093 = vadd.f32 %v918, %v1092
        %v1094 = vpop.f32.mrb[0].mxu0
        %v1095 = vadd.f32 %v922, %v1094
        %v1096 = vpop.f32.mrb[0].mxu0
        %v1097 = vadd.f32 %v918, %v1096
        %v1098 = vpop.f32.mrb[0].mxu0
        %v1099 = vadd.f32 %v922, %v1098
        %1100 = vdwg.mxu0
        %1101 = vmatprep.subr.bf16.mxu0 0
        %1102 = vmatpush1.bf16.msra.mxu0 %v1012
        %1103 = vmatprep.subr.bf16.mxu0 0
        %1104 = vmatpush1.bf16.msra.mxu0 %v1015
        %1105 = vmatprep.subr.bf16.mxu0 0
        %1106 = vmatpush1.bf16.msra.mxu0 %v1018
        %1107 = vmatprep.subr.bf16.mxu0 0
        %1108 = vmatpush1.bf16.msra.mxu0 %v1021
        %1109 = vmatprep.subr.bf16.mxu0 0
        %1110 = vmatpush1.bf16.msra.mxu0 %v1024
        %1111 = vmatprep.subr.bf16.mxu0 0
        %1112 = vmatpush1.bf16.msra.mxu0 %v1027
        %1113 = vmatprep.subr.bf16.mxu0 0
        %1114 = vmatpush1.bf16.msra.mxu0 %v1030
        %1115 = vmatprep.subr.bf16.mxu0 0
        %1116 = vmatpush1.bf16.msra.mxu0 %v1033
        %1117 = vmatprep.subr.bf16.mxu0 0
        %1118 = vmatpush1.bf16.msra.mxu0 0
        %1119 = vmatprep.subr.bf16.mxu0 0
        %1120 = vmatpush1.bf16.msra.mxu0 0
        %1121 = vmatprep.subr.bf16.mxu0 0
        %1122 = vmatpush1.bf16.msra.mxu0 0
        %1123 = vmatprep.subr.bf16.mxu0 0
        %1124 = vmatpush1.bf16.msra.mxu0 0
        %1125 = vmatprep.subr.bf16.mxu0 0
        %1126 = vmatpush1.bf16.msra.mxu0 0
        %1127 = vmatprep.subr.bf16.mxu0 0
        %1128 = vmatpush1.bf16.msra.mxu0 0
        %1129 = vmatprep.subr.bf16.mxu0 0
        %1130 = vmatpush1.bf16.msra.mxu0 0
        %1131 = vmatprep.subr.bf16.mxu0 0
        %1132 = vmatpush1.bf16.msra.mxu0 0
        %1133 = vmatprep.mubr.bf16.mxu0 0
        %1134 = vmatmul.mubr.bf16.gmra.mrb[0].mxu0 %v880
        %v1135 = vpop.f32.mrb[0].mxu0
        %v1136 = vadd.f32 %v926, %v1135
        %v1137 = vpop.f32.mrb[0].mxu0
        %v1138 = vpop.f32.mrb[0].mxu0
        %v1139 = vadd.f32 %v926, %v1138
        %v1140 = vpop.f32.mrb[0].mxu0
        %1141 = vdwg.mxu0
        %v1142 = vpack.c.bf16 %v1097, %v1093
        %v1143 = vpack.c.bf16 %v1099, %v1095
        %v1144 = vpack.c.bf16 %v1139, %v1136
        %vm1145 = vcmask 261120
        %v1147 = vsel %vm1145, %v1142, 0
        %v1150 = vsel %vm1145, %v1143, 0
        %1152 = vmatprep.subr.bf16.mxu0 0
        %1153 = vmatpush1.bf16.xpose.msra.mxu0 %v1150
        %1154 = vmatprep.subr.bf16.mxu0 0
        %1155 = vmatpush1.bf16.xpose.msra.mxu0 0
        %1156 = vmatprep.subr.bf16.mxu0 0
        %1157 = vmatpush1.bf16.xpose.msra.mxu0 0
        %1158 = vmatprep.subr.bf16.mxu0 0
        %1159 = vmatpush1.bf16.xpose.msra.mxu0 0
        %1160 = vmatprep.subr.bf16.mxu0 0
        %1161 = vmatpush1.bf16.xpose.msra.mxu0 0
        %1162 = vmatprep.subr.bf16.mxu0 0
        %1163 = vmatpush1.bf16.xpose.msra.mxu0 0
        %1164 = vmatprep.subr.bf16.mxu0 0
        %1165 = vmatpush1.bf16.xpose.msra.mxu0 0
        %1166 = vmatprep.subr.bf16.mxu0 0
        %1167 = vmatpush1.bf16.xpose.msra.mxu0 0
        %1168 = vmatprep.subr.bf16.mxu0 0
        %1169 = vmatpush1.bf16.xpose.msra.mxu0 0
        %1170 = vmatprep.subr.bf16.mxu0 0
        %1171 = vmatpush1.bf16.xpose.msra.mxu0 0
        %1172 = vmatprep.subr.bf16.mxu0 0
        %1173 = vmatpush1.bf16.xpose.msra.mxu0 0
        %1174 = vmatprep.subr.bf16.mxu0 0
        %1175 = vmatpush1.bf16.xpose.msra.mxu0 0
        %1176 = vmatprep.subr.bf16.mxu0 0
        %1177 = vmatpush1.bf16.xpose.msra.mxu0 0
        %1178 = vmatprep.subr.bf16.mxu0 0
        %1179 = vmatpush1.bf16.xpose.msra.mxu0 0
        %1180 = vmatprep.subr.bf16.mxu0 0
        %1181 = vmatpush1.bf16.xpose.msra.mxu0 0
        %1182 = vmatprep.subr.bf16.mxu0 0
        %1183 = vmatpush1.bf16.xpose.msra.mxu0 0
        %1184 = vmatprep.mubr.bf16.mxu0 0
        %1185 = vmatmul.mubr.bf16.gmra.mrb[0].mxu0 %v1147
        %v1186 = vpop.f32.mrb[0].mxu0
        %v1187 = vadd.f32 0.0, %v1186
        %v1188 = vpop.f32.mrb[0].mxu0
        %v1189 = vpop.f32.mrb[0].mxu0
        %v1190 = vadd.f32 0.0, %v1189
        %v1191 = vpop.f32.mrb[0].mxu0
        %1192 = vdwg.mxu0
        %1194 = vrot.lane.b32.xlu0 %v1142, 96
        %v1195 = vpop.permute.xlu0 %1194
        %1197 = vrot.lane.b32.xlu0 %v1143, 96
        %v1198 = vpop.permute.xlu0 %1197
        %v1200 = vsel %vm1145, %v1195, 0
        %v1203 = vsel %vm1145, %v1198, 0
        %1205 = vmatprep.subr.bf16.mxu0 0
        %1206 = vmatpush1.bf16.xpose.msra.mxu0 %v1203
        %1207 = vmatprep.subr.bf16.mxu0 0
        %1208 = vmatpush1.bf16.xpose.msra.mxu0 0
        %1209 = vmatprep.subr.bf16.mxu0 0
        %1210 = vmatpush1.bf16.xpose.msra.mxu0 0
        %1211 = vmatprep.subr.bf16.mxu0 0
        %1212 = vmatpush1.bf16.xpose.msra.mxu0 0
        %1213 = vmatprep.subr.bf16.mxu0 0
        %1214 = vmatpush1.bf16.xpose.msra.mxu0 0
        %1215 = vmatprep.subr.bf16.mxu0 0
        %1216 = vmatpush1.bf16.xpose.msra.mxu0 0
        %1217 = vmatprep.subr.bf16.mxu0 0
        %1218 = vmatpush1.bf16.xpose.msra.mxu0 0
        %1219 = vmatprep.subr.bf16.mxu0 0
        %1220 = vmatpush1.bf16.xpose.msra.mxu0 0
        %1221 = vmatprep.subr.bf16.mxu0 0
        %1222 = vmatpush1.bf16.xpose.msra.mxu0 0
        %1223 = vmatprep.subr.bf16.mxu0 0
        %1224 = vmatpush1.bf16.xpose.msra.mxu0 0
        %1225 = vmatprep.subr.bf16.mxu0 0
        %1226 = vmatpush1.bf16.xpose.msra.mxu0 0
        %1227 = vmatprep.subr.bf16.mxu0 0
        %1228 = vmatpush1.bf16.xpose.msra.mxu0 0
        %1229 = vmatprep.subr.bf16.mxu0 0
        %1230 = vmatpush1.bf16.xpose.msra.mxu0 0
        %1231 = vmatprep.subr.bf16.mxu0 0
        %1232 = vmatpush1.bf16.xpose.msra.mxu0 0
        %1233 = vmatprep.subr.bf16.mxu0 0
        %1234 = vmatpush1.bf16.xpose.msra.mxu0 0
        %1235 = vmatprep.subr.bf16.mxu0 0
        %1236 = vmatpush1.bf16.xpose.msra.mxu0 0
        %1237 = vmatprep.mubr.bf16.mxu0 0
        %1238 = vmatmul.mubr.bf16.gmra.mrb[0].mxu0 %v1200
        %v1239 = vpop.f32.mrb[0].mxu0
        %v1240 = vadd.f32 0.0, %v1239
        %v1241 = vpop.f32.mrb[0].mxu0
        %v1242 = vpop.f32.mrb[0].mxu0
        %v1243 = vadd.f32 0.0, %v1242
        %v1244 = vpop.f32.mrb[0].mxu0
        %1245 = vdwg.mxu0
        %1246 = vrot.lane.b32.xlu0 %v1142, 64
        %v1247 = vpop.permute.xlu0 %1246
        %1248 = vrot.lane.b32.xlu0 %v1143, 64
        %v1249 = vpop.permute.xlu0 %1248
        %v1251 = vsel %vm1145, %v1247, 0
        %v1254 = vsel %vm1145, %v1249, 0
        %1256 = vmatprep.subr.bf16.mxu0 0
        %1257 = vmatpush1.bf16.xpose.msra.mxu0 %v1254
        %1258 = vmatprep.subr.bf16.mxu0 0
        %1259 = vmatpush1.bf16.xpose.msra.mxu0 0
        %1260 = vmatprep.subr.bf16.mxu0 0
        %1261 = vmatpush1.bf16.xpose.msra.mxu0 0
        %1262 = vmatprep.subr.bf16.mxu0 0
        %1263 = vmatpush1.bf16.xpose.msra.mxu0 0
        %1264 = vmatprep.subr.bf16.mxu0 0
        %1265 = vmatpush1.bf16.xpose.msra.mxu0 0
        %1266 = vmatprep.subr.bf16.mxu0 0
        %1267 = vmatpush1.bf16.xpose.msra.mxu0 0
        %1268 = vmatprep.subr.bf16.mxu0 0
        %1269 = vmatpush1.bf16.xpose.msra.mxu0 0
        %1270 = vmatprep.subr.bf16.mxu0 0
        %1271 = vmatpush1.bf16.xpose.msra.mxu0 0
        %1272 = vmatprep.subr.bf16.mxu0 0
        %1273 = vmatpush1.bf16.xpose.msra.mxu0 0
        %1274 = vmatprep.subr.bf16.mxu0 0
        %1275 = vmatpush1.bf16.xpose.msra.mxu0 0
        %1276 = vmatprep.subr.bf16.mxu0 0
        %1277 = vmatpush1.bf16.xpose.msra.mxu0 0
        %1278 = vmatprep.subr.bf16.mxu0 0
        %1279 = vmatpush1.bf16.xpose.msra.mxu0 0
        %1280 = vmatprep.subr.bf16.mxu0 0
        %1281 = vmatpush1.bf16.xpose.msra.mxu0 0
        %1282 = vmatprep.subr.bf16.mxu0 0
        %1283 = vmatpush1.bf16.xpose.msra.mxu0 0
        %1284 = vmatprep.subr.bf16.mxu0 0
        %1285 = vmatpush1.bf16.xpose.msra.mxu0 0
        %1286 = vmatprep.subr.bf16.mxu0 0
        %1287 = vmatpush1.bf16.xpose.msra.mxu0 0
        %1288 = vmatprep.mubr.bf16.mxu0 0
        %1289 = vmatmul.mubr.bf16.gmra.mrb[0].mxu0 %v1251
        %v1290 = vpop.f32.mrb[0].mxu0
        %v1291 = vadd.f32 0.0, %v1290
        %v1292 = vpop.f32.mrb[0].mxu0
        %v1293 = vpop.f32.mrb[0].mxu0
        %v1294 = vadd.f32 0.0, %v1293
        %v1295 = vpop.f32.mrb[0].mxu0
        %1296 = vdwg.mxu0
        %1297 = vrot.lane.b32.xlu0 %v1142, 32
        %v1298 = vpop.permute.xlu0 %1297
        %1299 = vrot.lane.b32.xlu0 %v1143, 32
        %v1300 = vpop.permute.xlu0 %1299
        %v1302 = vsel %vm1145, %v1298, 0
        %v1305 = vsel %vm1145, %v1300, 0
        %1307 = vmatprep.subr.bf16.mxu0 0
        %1308 = vmatpush1.bf16.xpose.msra.mxu0 %v1305
        %1309 = vmatprep.subr.bf16.mxu0 0
        %1310 = vmatpush1.bf16.xpose.msra.mxu0 0
        %1311 = vmatprep.subr.bf16.mxu0 0
        %1312 = vmatpush1.bf16.xpose.msra.mxu0 0
        %1313 = vmatprep.subr.bf16.mxu0 0
        %1314 = vmatpush1.bf16.xpose.msra.mxu0 0
        %1315 = vmatprep.subr.bf16.mxu0 0
        %1316 = vmatpush1.bf16.xpose.msra.mxu0 0
        %1317 = vmatprep.subr.bf16.mxu0 0
        %1318 = vmatpush1.bf16.xpose.msra.mxu0 0
        %1319 = vmatprep.subr.bf16.mxu0 0
        %1320 = vmatpush1.bf16.xpose.msra.mxu0 0
        %1321 = vmatprep.subr.bf16.mxu0 0
        %1322 = vmatpush1.bf16.xpose.msra.mxu0 0
        %1323 = vmatprep.subr.bf16.mxu0 0
        %1324 = vmatpush1.bf16.xpose.msra.mxu0 0
        %1325 = vmatprep.subr.bf16.mxu0 0
        %1326 = vmatpush1.bf16.xpose.msra.mxu0 0
        %1327 = vmatprep.subr.bf16.mxu0 0
        %1328 = vmatpush1.bf16.xpose.msra.mxu0 0
        %1329 = vmatprep.subr.bf16.mxu0 0
        %1330 = vmatpush1.bf16.xpose.msra.mxu0 0
        %1331 = vmatprep.subr.bf16.mxu0 0
        %1332 = vmatpush1.bf16.xpose.msra.mxu0 0
        %1333 = vmatprep.subr.bf16.mxu0 0
        %1334 = vmatpush1.bf16.xpose.msra.mxu0 0
        %1335 = vmatprep.subr.bf16.mxu0 0
        %1336 = vmatpush1.bf16.xpose.msra.mxu0 0
        %1337 = vmatprep.subr.bf16.mxu0 0
        %1338 = vmatpush1.bf16.xpose.msra.mxu0 0
        %1339 = vmatprep.mubr.bf16.mxu0 0
        %1340 = vmatmul.mubr.bf16.gmra.mrb[0].mxu0 %v1302
        %v1341 = vpop.f32.mrb[0].mxu0
        %v1342 = vadd.f32 0.0, %v1341
        %v1343 = vpop.f32.mrb[0].mxu0
        %v1344 = vpop.f32.mrb[0].mxu0
        %v1345 = vadd.f32 0.0, %v1344
        %v1346 = vpop.f32.mrb[0].mxu0
        %1347 = vdwg.mxu0
        %v1348 = vld [vmem:[%s4] sm:$0xff]
        %v1349 = vld [vmem:[%s4 + $0x8] sm:$0xff]
        %v1350 = vld [vmem:[%s4 + $0x10] sm:$0xff]
        %v1351 = vld [vmem:[%s4 + $0x18] sm:$0xff]
        %v1352 = vld [vmem:[%s4 + $0x20] sm:$0xff]
        %v1353 = vld [vmem:[%s4 + $0x28] sm:$0xff]
        %v1354 = vld [vmem:[%s4 + $0x30] sm:$0xff]
        %v1355 = vld [vmem:[%s4 + $0x38] sm:$0xff]
        %v1356 = vadd.f32 %v1187, %v1348
        %v1357 = vadd.f32 %v1190, %v1349
        %v1358 = vadd.f32 %v1240, %v1350
        %v1359 = vadd.f32 %v1243, %v1351
        %v1360 = vadd.f32 %v1291, %v1352
        %v1361 = vadd.f32 %v1294, %v1353
        %v1362 = vadd.f32 %v1342, %v1354
        %v1363 = vadd.f32 %v1345, %v1355
        %vm1364 = vcmask 130048
        %v1365 = vsel %vm1364, %v1356, -inf
        %1366 = vmax.xlane.f32.xlu0 %v1365
        %v1367 = vpop.xlane.xlu0 %1366
        %v1368 = vsel %vm1364, %v1357, -inf
        %1369 = vmax.xlane.f32.xlu0 %v1368
        %v1370 = vpop.xlane.xlu0 %1369
        %v1371 = vsel %vm1364, %v1358, -inf
        %1372 = vmax.xlane.f32.xlu0 %v1371
        %v1373 = vpop.xlane.xlu0 %1372
        %v1374 = vsel %vm1364, %v1359, -inf
        %1375 = vmax.xlane.f32.xlu0 %v1374
        %v1376 = vpop.xlane.xlu0 %1375
        %v1377 = vsel %vm1364, %v1360, -inf
        %1378 = vmax.xlane.f32.xlu0 %v1377
        %v1379 = vpop.xlane.xlu0 %1378
        %v1380 = vsel %vm1364, %v1361, -inf
        %1381 = vmax.xlane.f32.xlu0 %v1380
        %v1382 = vpop.xlane.xlu0 %1381
        %v1383 = vsel %vm1364, %v1362, -inf
        %1384 = vmax.xlane.f32.xlu0 %v1383
        %v1385 = vpop.xlane.xlu0 %1384
        %v1386 = vsel %vm1364, %v1363, -inf
        %1387 = vmax.xlane.f32.xlu0 %v1386
        %v1388 = vpop.xlane.xlu0 %1387
        %v1389 = vsub.f32 %v1356, %v1367
        %v1390 = vsub.f32 %v1357, %v1370
        %v1391 = vsub.f32 %v1358, %v1373
        %v1392 = vsub.f32 %v1359, %v1376
        %v1393 = vsub.f32 %v1360, %v1379
        %v1394 = vsub.f32 %v1361, %v1382
        %v1395 = vsub.f32 %v1362, %v1385
        %v1396 = vsub.f32 %v1363, %v1388
        %v1397 = vmul.f32 %v1389, 1.442695
        %v1398 = vpow.pop %v1397
        %v1399 = vmul.f32 %v1390, 1.442695
        %v1400 = vpow.pop %v1399
        %v1401 = vmul.f32 %v1391, 1.442695
        %v1402 = vpow.pop %v1401
        %v1403 = vmul.f32 %v1392, 1.442695
        %v1404 = vpow.pop %v1403
        %v1405 = vmul.f32 %v1393, 1.442695
        %v1406 = vpow.pop %v1405
        %v1407 = vmul.f32 %v1394, 1.442695
        %v1408 = vpow.pop %v1407
        %v1409 = vmul.f32 %v1395, 1.442695
        %v1410 = vpow.pop %v1409
        %v1411 = vmul.f32 %v1396, 1.442695
        %v1412 = vpow.pop %v1411
        %v1413 = vsel %vm1364, %v1398, 0.0
        %1414 = vadd.xlane.f32.xlu0 %v1413
        %v1415 = vpop.xlane.xlu0 %1414
        %v1416 = vsel %vm1364, %v1400, 0.0
        %1417 = vadd.xlane.f32.xlu0 %v1416
        %v1418 = vpop.xlane.xlu0 %1417
        %v1419 = vsel %vm1364, %v1402, 0.0
        %1420 = vadd.xlane.f32.xlu0 %v1419
        %v1421 = vpop.xlane.xlu0 %1420
        %v1422 = vsel %vm1364, %v1404, 0.0
        %1423 = vadd.xlane.f32.xlu0 %v1422
        %v1424 = vpop.xlane.xlu0 %1423
        %v1425 = vsel %vm1364, %v1406, 0.0
        %1426 = vadd.xlane.f32.xlu0 %v1425
        %v1427 = vpop.xlane.xlu0 %1426
        %v1428 = vsel %vm1364, %v1408, 0.0
        %1429 = vadd.xlane.f32.xlu0 %v1428
        %v1430 = vpop.xlane.xlu0 %1429
        %v1431 = vsel %vm1364, %v1410, 0.0
        %1432 = vadd.xlane.f32.xlu0 %v1431
        %v1433 = vpop.xlane.xlu0 %1432
        %v1434 = vsel %vm1364, %v1412, 0.0
        %1435 = vadd.xlane.f32.xlu0 %v1434
        %v1436 = vpop.xlane.xlu0 %1435
        %v1437 = vrcp.pop %v1415
        %v1438 = vrcp.pop %v1418
        %v1439 = vrcp.pop %v1421
        %v1440 = vrcp.pop %v1424
        %v1441 = vrcp.pop %v1427
        %v1442 = vrcp.pop %v1430
        %v1443 = vrcp.pop %v1433
        %v1444 = vrcp.pop %v1436
        %v1445 = vmul.f32 %v1398, %v1437
        %v1446 = vmul.f32 %v1400, %v1438
        %v1447 = vmul.f32 %v1402, %v1439
        %v1448 = vmul.f32 %v1404, %v1440
        %v1449 = vmul.f32 %v1406, %v1441
        %v1450 = vmul.f32 %v1408, %v1442
        %v1451 = vmul.f32 %v1410, %v1443
        %v1452 = vmul.f32 %v1412, %v1444
        %v1453 = vpack.c.bf16 %v1446, %v1445
        %v1454 = vpack.c.bf16 %v1448, %v1447
        %v1455 = vpack.c.bf16 %v1450, %v1449
        %v1456 = vpack.c.bf16 %v1452, %v1451
        %v1458 = vsel %vm1364, %v1453, 0
        %1460 = vmatprep.subr.bf16.mxu0 0
        %1461 = vmatpush1.bf16.msra.mxu0 %v1144
        %1462 = vmatprep.subr.bf16.mxu0 0
        %1463 = vmatpush1.bf16.msra.mxu0 0
        %1464 = vmatprep.subr.bf16.mxu0 0
        %1465 = vmatpush1.bf16.msra.mxu0 0
        %1466 = vmatprep.subr.bf16.mxu0 0
        %1467 = vmatpush1.bf16.msra.mxu0 0
        %1468 = vmatprep.subr.bf16.mxu0 0
        %1469 = vmatpush1.bf16.msra.mxu0 0
        %1470 = vmatprep.subr.bf16.mxu0 0
        %1471 = vmatpush1.bf16.msra.mxu0 0
        %1472 = vmatprep.subr.bf16.mxu0 0
        %1473 = vmatpush1.bf16.msra.mxu0 0
        %1474 = vmatprep.subr.bf16.mxu0 0
        %1475 = vmatpush1.bf16.msra.mxu0 0
        %1476 = vmatprep.subr.bf16.mxu0 0
        %1477 = vmatpush1.bf16.msra.mxu0 0
        %1478 = vmatprep.subr.bf16.mxu0 0
        %1479 = vmatpush1.bf16.msra.mxu0 0
        %1480 = vmatprep.subr.bf16.mxu0 0
        %1481 = vmatpush1.bf16.msra.mxu0 0
        %1482 = vmatprep.subr.bf16.mxu0 0
        %1483 = vmatpush1.bf16.msra.mxu0 0
        %1484 = vmatprep.subr.bf16.mxu0 0
        %1485 = vmatpush1.bf16.msra.mxu0 0
        %1486 = vmatprep.subr.bf16.mxu0 0
        %1487 = vmatpush1.bf16.msra.mxu0 0
        %1488 = vmatprep.subr.bf16.mxu0 0
        %1489 = vmatpush1.bf16.msra.mxu0 0
        %1490 = vmatprep.subr.bf16.mxu0 0
        %1491 = vmatpush1.bf16.msra.mxu0 0
        %1492 = vmatprep.mubr.bf16.mxu0 0
        %1493 = vmatmul.mubr.bf16.gmra.mrb[0].mxu0 %v1458
        %v1494 = vpop.f32.mrb[0].mxu0
        %v1495 = vadd.f32 0.0, %v1494
        %v1496 = vpop.f32.mrb[0].mxu0
        %v1497 = vpop.f32.mrb[0].mxu0
        %v1498 = vadd.f32 0.0, %v1497
        %v1499 = vpop.f32.mrb[0].mxu0
        %1500 = vdwg.mxu0
        %1502 = vrot.lane.b32.xlu0 %v1144, 96
        %v1503 = vpop.permute.xlu0 %1502
        %v1506 = vsel %vm1364, %v1454, 0
        %1508 = vmatprep.subr.bf16.mxu0 0
        %1509 = vmatpush1.bf16.msra.mxu0 %v1503
        %1510 = vmatprep.subr.bf16.mxu0 0
        %1511 = vmatpush1.bf16.msra.mxu0 0
        %1512 = vmatprep.subr.bf16.mxu0 0
        %1513 = vmatpush1.bf16.msra.mxu0 0
        %1514 = vmatprep.subr.bf16.mxu0 0
        %1515 = vmatpush1.bf16.msra.mxu0 0
        %1516 = vmatprep.subr.bf16.mxu0 0
        %1517 = vmatpush1.bf16.msra.mxu0 0
        %1518 = vmatprep.subr.bf16.mxu0 0
        %1519 = vmatpush1.bf16.msra.mxu0 0
        %1520 = vmatprep.subr.bf16.mxu0 0
        %1521 = vmatpush1.bf16.msra.mxu0 0
        %1522 = vmatprep.subr.bf16.mxu0 0
        %1523 = vmatpush1.bf16.msra.mxu0 0
        %1524 = vmatprep.subr.bf16.mxu0 0
        %1525 = vmatpush1.bf16.msra.mxu0 0
        %1526 = vmatprep.subr.bf16.mxu0 0
        %1527 = vmatpush1.bf16.msra.mxu0 0
        %1528 = vmatprep.subr.bf16.mxu0 0
        %1529 = vmatpush1.bf16.msra.mxu0 0
        %1530 = vmatprep.subr.bf16.mxu0 0
        %1531 = vmatpush1.bf16.msra.mxu0 0
        %1532 = vmatprep.subr.bf16.mxu0 0
        %1533 = vmatpush1.bf16.msra.mxu0 0
        %1534 = vmatprep.subr.bf16.mxu0 0
        %1535 = vmatpush1.bf16.msra.mxu0 0
        %1536 = vmatprep.subr.bf16.mxu0 0
        %1537 = vmatpush1.bf16.msra.mxu0 0
        %1538 = vmatprep.subr.bf16.mxu0 0
        %1539 = vmatpush1.bf16.msra.mxu0 0
        %1540 = vmatprep.mubr.bf16.mxu0 0
        %1541 = vmatmul.mubr.bf16.gmra.mrb[0].mxu0 %v1506
        %v1542 = vpop.f32.mrb[0].mxu0
        %v1543 = vadd.f32 0.0, %v1542
        %v1544 = vpop.f32.mrb[0].mxu0
        %v1545 = vpop.f32.mrb[0].mxu0
        %v1546 = vadd.f32 0.0, %v1545
        %v1547 = vpop.f32.mrb[0].mxu0
        %1548 = vdwg.mxu0
        %1549 = vrot.lane.b32.xlu0 %v1144, 64
        %v1550 = vpop.permute.xlu0 %1549
        %v1553 = vsel %vm1364, %v1455, 0
        %1555 = vmatprep.subr.bf16.mxu0 0
        %1556 = vmatpush1.bf16.msra.mxu0 %v1550
        %1557 = vmatprep.subr.bf16.mxu0 0
        %1558 = vmatpush1.bf16.msra.mxu0 0
        %1559 = vmatprep.subr.bf16.mxu0 0
        %1560 = vmatpush1.bf16.msra.mxu0 0
        %1561 = vmatprep.subr.bf16.mxu0 0
        %1562 = vmatpush1.bf16.msra.mxu0 0
        %1563 = vmatprep.subr.bf16.mxu0 0
        %1564 = vmatpush1.bf16.msra.mxu0 0
        %1565 = vmatprep.subr.bf16.mxu0 0
        %1566 = vmatpush1.bf16.msra.mxu0 0
        %1567 = vmatprep.subr.bf16.mxu0 0
        %1568 = vmatpush1.bf16.msra.mxu0 0
        %1569 = vmatprep.subr.bf16.mxu0 0
        %1570 = vmatpush1.bf16.msra.mxu0 0
        %1571 = vmatprep.subr.bf16.mxu0 0
        %1572 = vmatpush1.bf16.msra.mxu0 0
        %1573 = vmatprep.subr.bf16.mxu0 0
        %1574 = vmatpush1.bf16.msra.mxu0 0
        %1575 = vmatprep.subr.bf16.mxu0 0
        %1576 = vmatpush1.bf16.msra.mxu0 0
        %1577 = vmatprep.subr.bf16.mxu0 0
        %1578 = vmatpush1.bf16.msra.mxu0 0
        %1579 = vmatprep.subr.bf16.mxu0 0
        %1580 = vmatpush1.bf16.msra.mxu0 0
        %1581 = vmatprep.subr.bf16.mxu0 0
        %1582 = vmatpush1.bf16.msra.mxu0 0
        %1583 = vmatprep.subr.bf16.mxu0 0
        %1584 = vmatpush1.bf16.msra.mxu0 0
        %1585 = vmatprep.subr.bf16.mxu0 0
        %1586 = vmatpush1.bf16.msra.mxu0 0
        %1587 = vmatprep.mubr.bf16.mxu0 0
        %1588 = vmatmul.mubr.bf16.gmra.mrb[0].mxu0 %v1553
        %v1589 = vpop.f32.mrb[0].mxu0
        %v1590 = vadd.f32 0.0, %v1589
        %v1591 = vpop.f32.mrb[0].mxu0
        %v1592 = vpop.f32.mrb[0].mxu0
        %v1593 = vadd.f32 0.0, %v1592
        %v1594 = vpop.f32.mrb[0].mxu0
        %1595 = vdwg.mxu0
        %1596 = vrot.lane.b32.xlu0 %v1144, 32
        %v1597 = vpop.permute.xlu0 %1596
        %v1600 = vsel %vm1364, %v1456, 0
        %1602 = vmatprep.subr.bf16.mxu0 0
        %1603 = vmatpush1.bf16.msra.mxu0 %v1597
        %1604 = vmatprep.subr.bf16.mxu0 0
        %1605 = vmatpush1.bf16.msra.mxu0 0
        %1606 = vmatprep.subr.bf16.mxu0 0
        %1607 = vmatpush1.bf16.msra.mxu0 0
        %1608 = vmatprep.subr.bf16.mxu0 0
        %1609 = vmatpush1.bf16.msra.mxu0 0
        %1610 = vmatprep.subr.bf16.mxu0 0
        %1611 = vmatpush1.bf16.msra.mxu0 0
        %1612 = vmatprep.subr.bf16.mxu0 0
        %1613 = vmatpush1.bf16.msra.mxu0 0
        %1614 = vmatprep.subr.bf16.mxu0 0
        %1615 = vmatpush1.bf16.msra.mxu0 0
        %1616 = vmatprep.subr.bf16.mxu0 0
        %1617 = vmatpush1.bf16.msra.mxu0 0
        %1618 = vmatprep.subr.bf16.mxu0 0
        %1619 = vmatpush1.bf16.msra.mxu0 0
        %1620 = vmatprep.subr.bf16.mxu0 0
        %1621 = vmatpush1.bf16.msra.mxu0 0
        %1622 = vmatprep.subr.bf16.mxu0 0
        %1623 = vmatpush1.bf16.msra.mxu0 0
        %1624 = vmatprep.subr.bf16.mxu0 0
        %1625 = vmatpush1.bf16.msra.mxu0 0
        %1626 = vmatprep.subr.bf16.mxu0 0
        %1627 = vmatpush1.bf16.msra.mxu0 0
        %1628 = vmatprep.subr.bf16.mxu0 0
        %1629 = vmatpush1.bf16.msra.mxu0 0
        %1630 = vmatprep.subr.bf16.mxu0 0
        %1631 = vmatpush1.bf16.msra.mxu0 0
        %1632 = vmatprep.subr.bf16.mxu0 0
        %1633 = vmatpush1.bf16.msra.mxu0 0
        %1634 = vmatprep.mubr.bf16.mxu0 0
        %1635 = vmatmul.mubr.bf16.gmra.mrb[0].mxu0 %v1600
        %v1636 = vpop.f32.mrb[0].mxu0
        %v1637 = vadd.f32 0.0, %v1636
        %v1638 = vpop.f32.mrb[0].mxu0
        %v1639 = vpop.f32.mrb[0].mxu0
        %v1640 = vadd.f32 0.0, %v1639
        %v1641 = vpop.f32.mrb[0].mxu0
        %1642 = vdwg.mxu0
        %1645 = vrot.lane.b32.xlu0 %v1543, 32
        %v1646 = vpop.permute.xlu0 %1645
        %1647 = vrot.lane.b32.xlu0 %v1546, 32
        %v1648 = vpop.permute.xlu0 %1647
        %1653 = vrot.lane.b32.xlu0 %v1590, 64
        %v1654 = vpop.permute.xlu0 %1653
        %1655 = vrot.lane.b32.xlu0 %v1593, 64
        %v1656 = vpop.permute.xlu0 %1655
        %1661 = vrot.lane.b32.xlu0 %v1637, 96
        %v1662 = vpop.permute.xlu0 %1661
        %1663 = vrot.lane.b32.xlu0 %v1640, 96
        %v1664 = vpop.permute.xlu0 %1663
        %v1667 = vsel %vm1145, %v1495, %v1646
        %v1668 = vsel %vm1145, %v1498, %v1648
        %vm1669 = vcmask 523264
        %v1670 = vsel %vm1669, %v1667, %v1654
        %v1671 = vsel %vm1669, %v1668, %v1656
        %vm1672 = vcmask 785408
        %v1673 = vsel %vm1672, %v1670, %v1662
        %v1674 = vsel %vm1672, %v1671, %v1664
        %v1675 = vpack.c.bf16 %v1674, %v1673
        %v1676 = vld [vmem:[%s777] sm:$0xf]
        %v1677 = vld [vmem:[%s777 + $0x4] sm:$0xf]
        %v1678 = vld [vmem:[%s777 + $0x8] sm:$0xf]
        %v1679 = vld [vmem:[%s777 + $0xc] sm:$0xf]
        %v1680 = vld [vmem:[%s777 + $0x10] sm:$0xf]
        %v1681 = vld [vmem:[%s777 + $0x14] sm:$0xf]
        %v1682 = vld [vmem:[%s777 + $0x18] sm:$0xf]
        %v1683 = vld [vmem:[%s777 + $0x1c] sm:$0xf]
        %v1684 = vld [vmem:[%s777 + $0x20] sm:$0xf]
        %v1685 = vld [vmem:[%s777 + $0x24] sm:$0xf]
        %v1686 = vld [vmem:[%s777 + $0x28] sm:$0xf]
        %v1687 = vld [vmem:[%s777 + $0x2c] sm:$0xf]
        %v1688 = vld [vmem:[%s777 + $0x30] sm:$0xf]
        %v1689 = vld [vmem:[%s777 + $0x34] sm:$0xf]
        %v1690 = vld [vmem:[%s777 + $0x38] sm:$0xf]
        %v1691 = vld [vmem:[%s777 + $0x3c] sm:$0xf]
        %v1692 = vld [vmem:[%s780] sm:$0x1]
        %v1694 = vlaneseq
        %v1695 = vshrl.u32 %v1694, 7
        %v1696 = vsub.s32 0, %v1695
        %v1697 = vrot.slane %v1692, %v1696
        %v1715 = vunpack.c.l.b16 %v1676
        %v1716 = vunpack.c.l.b16 %v1677
        %v1717 = vunpack.c.l.b16 %v1678
        %v1718 = vunpack.c.l.b16 %v1679
        %v1719 = vunpack.c.l.b16 %v1680
        %v1720 = vunpack.c.l.b16 %v1681
        %v1721 = vunpack.c.l.b16 %v1682
        %v1722 = vunpack.c.l.b16 %v1683
        %v1723 = vunpack.c.l.b16 %v1684
        %v1724 = vunpack.c.l.b16 %v1685
        %v1725 = vunpack.c.l.b16 %v1686
        %v1726 = vunpack.c.l.b16 %v1687
        %v1727 = vunpack.c.l.b16 %v1688
        %v1728 = vunpack.c.l.b16 %v1689
        %v1729 = vunpack.c.l.b16 %v1690
        %v1730 = vunpack.c.l.b16 %v1691
        %v1731 = vpack.c.b16 %v1716, %v1715
        %v1732 = vpack.c.b16 %v1718, %v1717
        %v1733 = vpack.c.b16 %v1720, %v1719
        %v1734 = vpack.c.b16 %v1722, %v1721
        %v1735 = vpack.c.b16 %v1724, %v1723
        %v1736 = vpack.c.b16 %v1726, %v1725
        %v1737 = vpack.c.b16 %v1728, %v1727
        %v1738 = vpack.c.b16 %v1730, %v1729
        %1747 = vmatprep.subr.bf16.mxu0 0
        %1748 = vmatpush1.bf16.msra.mxu0 %v1731
        %1749 = vmatprep.subr.bf16.mxu0 0
        %1750 = vmatpush1.bf16.msra.mxu0 %v1732
        %1751 = vmatprep.subr.bf16.mxu0 0
        %1752 = vmatpush1.bf16.msra.mxu0 %v1733
        %1753 = vmatprep.subr.bf16.mxu0 0
        %1754 = vmatpush1.bf16.msra.mxu0 %v1734
        %1755 = vmatprep.subr.bf16.mxu0 0
        %1756 = vmatpush1.bf16.msra.mxu0 %v1735
        %1757 = vmatprep.subr.bf16.mxu0 0
        %1758 = vmatpush1.bf16.msra.mxu0 %v1736
        %1759 = vmatprep.subr.bf16.mxu0 0
        %1760 = vmatpush1.bf16.msra.mxu0 %v1737
        %1761 = vmatprep.subr.bf16.mxu0 0
        %1762 = vmatpush1.bf16.msra.mxu0 %v1738
        %1763 = vmatprep.subr.bf16.mxu0 0
        %1764 = vmatpush1.bf16.msra.mxu0 0
        %1765 = vmatprep.subr.bf16.mxu0 0
        %1766 = vmatpush1.bf16.msra.mxu0 0
        %1767 = vmatprep.subr.bf16.mxu0 0
        %1768 = vmatpush1.bf16.msra.mxu0 0
        %1769 = vmatprep.subr.bf16.mxu0 0
        %1770 = vmatpush1.bf16.msra.mxu0 0
        %1771 = vmatprep.subr.bf16.mxu0 0
        %1772 = vmatpush1.bf16.msra.mxu0 0
        %1773 = vmatprep.subr.bf16.mxu0 0
        %1774 = vmatpush1.bf16.msra.mxu0 0
        %1775 = vmatprep.subr.bf16.mxu0 0
        %1776 = vmatpush1.bf16.msra.mxu0 0
        %1777 = vmatprep.subr.bf16.mxu0 0
        %1778 = vmatpush1.bf16.msra.mxu0 0
        %1779 = vmatprep.mubr.bf16.mxu0 0
        %1780 = vmatmul.mubr.bf16.gmra.mrb[0].mxu0 %v1675
        %v1781 = vpop.f32.mrb[0].mxu0
        %v1782 = vadd.f32 %v1697, %v1781
        %v1783 = vpop.f32.mrb[0].mxu0
        %v1784 = vpop.f32.mrb[0].mxu0
        %v1785 = vadd.f32 %v1697, %v1784
        %v1786 = vpop.f32.mrb[0].mxu0
        %1787 = vdwg.mxu0
        %v1788 = vadd.f32 %v878, %v1782
        %v1789 = vadd.f32 %v879, %v1785
        %v1790 = vld [vmem:[%s783] sm:$0x1]
        %v1791 = vld [vmem:[%s786] sm:$0x1]
        %1792 = vadd.xlane.f32.xlu0 %v1788
        %v1793 = vpop.xlane.xlu0 %1792
        %1794 = vadd.xlane.f32.xlu0 %v1789
        %v1795 = vpop.xlane.xlu0 %1794
        %v1796 = vrcp.pop 128.0
        %v1797 = vmul.f32 %v1793, %v1796
        %v1798 = vmul.f32 %v1795, %v1796
        %v1799 = vsub.f32 %v1788, %v1797
        %v1800 = vsub.f32 %v1789, %v1798
        %v1801 = vmul.f32 %v1799, %v1799
        %v1802 = vmul.f32 %v1800, %v1800
        %1803 = vadd.xlane.f32.xlu0 %v1801
        %v1804 = vpop.xlane.xlu0 %1803
        %1805 = vadd.xlane.f32.xlu0 %v1802
        %v1806 = vpop.xlane.xlu0 %1805
        %v1807 = vmul.f32 %v1804, %v1796
        %v1808 = vmul.f32 %v1806, %v1796
        %v1809 = vadd.f32 %v1807, 1e-05
        %v1810 = vadd.f32 %v1808, 1e-05
        %v1811 = vrsqrt.pop %v1809
        %v1812 = vrsqrt.pop %v1810
        %v1813 = vmul.f32 %v1799, %v1811
        %v1814 = vmul.f32 %v1800, %v1812
        %v1816 = vlaneseq
        %v1817 = vshrl.u32 %v1816, 7
        %v1818 = vsub.s32 0, %v1817
        %v1819 = vrot.slane %v1790, %v1818
        %v1821 = vmul.f32 %v1813, %v1819
        %v1822 = vmul.f32 %v1814, %v1819
        %v1824 = vlaneseq
        %v1825 = vshrl.u32 %v1824, 7
        %v1826 = vsub.s32 0, %v1825
        %v1827 = vrot.slane %v1791, %v1826
        %v1829 = vadd.f32 %v1821, %v1827
        %v1830 = vadd.f32 %v1822, %v1827
        %v1831 = vpack.c.bf16 %v1830, %v1829
        %v1832 = vld [vmem:[%s791] sm:$0xf]
        %v1833 = vld [vmem:[%s791 + $0x4] sm:$0xf]
        %v1834 = vld [vmem:[%s791 + $0x8] sm:$0xf]
        %v1835 = vld [vmem:[%s791 + $0xc] sm:$0xf]
        %v1836 = vld [vmem:[%s791 + $0x10] sm:$0xf]
        %v1837 = vld [vmem:[%s791 + $0x14] sm:$0xf]
        %v1838 = vld [vmem:[%s791 + $0x18] sm:$0xf]
        %v1839 = vld [vmem:[%s791 + $0x1c] sm:$0xf]
        %v1840 = vld [vmem:[%s791 + $0x20] sm:$0xf]
        %v1841 = vld [vmem:[%s791 + $0x24] sm:$0xf]
        %v1842 = vld [vmem:[%s791 + $0x28] sm:$0xf]
        %v1843 = vld [vmem:[%s791 + $0x2c] sm:$0xf]
        %v1844 = vld [vmem:[%s791 + $0x30] sm:$0xf]
        %v1845 = vld [vmem:[%s791 + $0x34] sm:$0xf]
        %v1846 = vld [vmem:[%s791 + $0x38] sm:$0xf]
        %v1847 = vld [vmem:[%s791 + $0x3c] sm:$0xf]
        %v1848 = vld [vmem:[%s794] sm:$0x1]
        %v1850 = vlaneseq
        %v1851 = vshrl.u32 %v1850, 7
        %v1852 = vsub.s32 0, %v1851
        %v1853 = vrot.slane %v1848, %v1852
        %v1871 = vunpack.c.l.b16 %v1832
        %v1872 = vunpack.c.l.b16 %v1833
        %v1873 = vunpack.c.l.b16 %v1834
        %v1874 = vunpack.c.l.b16 %v1835
        %v1875 = vunpack.c.l.b16 %v1836
        %v1876 = vunpack.c.l.b16 %v1837
        %v1877 = vunpack.c.l.b16 %v1838
        %v1878 = vunpack.c.l.b16 %v1839
        %v1879 = vunpack.c.l.b16 %v1840
        %v1880 = vunpack.c.l.b16 %v1841
        %v1881 = vunpack.c.l.b16 %v1842
        %v1882 = vunpack.c.l.b16 %v1843
        %v1883 = vunpack.c.l.b16 %v1844
        %v1884 = vunpack.c.l.b16 %v1845
        %v1885 = vunpack.c.l.b16 %v1846
        %v1886 = vunpack.c.l.b16 %v1847
        %v1887 = vpack.c.b16 %v1872, %v1871
        %v1888 = vpack.c.b16 %v1874, %v1873
        %v1889 = vpack.c.b16 %v1876, %v1875
        %v1890 = vpack.c.b16 %v1878, %v1877
        %v1891 = vpack.c.b16 %v1880, %v1879
        %v1892 = vpack.c.b16 %v1882, %v1881
        %v1893 = vpack.c.b16 %v1884, %v1883
        %v1894 = vpack.c.b16 %v1886, %v1885
        %1903 = vmatprep.subr.bf16.mxu0 0
        %1904 = vmatpush1.bf16.msra.mxu0 %v1887
        %1905 = vmatprep.subr.bf16.mxu0 0
        %1906 = vmatpush1.bf16.msra.mxu0 %v1888
        %1907 = vmatprep.subr.bf16.mxu0 0
        %1908 = vmatpush1.bf16.msra.mxu0 %v1889
        %1909 = vmatprep.subr.bf16.mxu0 0
        %1910 = vmatpush1.bf16.msra.mxu0 %v1890
        %1911 = vmatprep.subr.bf16.mxu0 0
        %1912 = vmatpush1.bf16.msra.mxu0 %v1891
        %1913 = vmatprep.subr.bf16.mxu0 0
        %1914 = vmatpush1.bf16.msra.mxu0 %v1892
        %1915 = vmatprep.subr.bf16.mxu0 0
        %1916 = vmatpush1.bf16.msra.mxu0 %v1893
        %1917 = vmatprep.subr.bf16.mxu0 0
        %1918 = vmatpush1.bf16.msra.mxu0 %v1894
        %1919 = vmatprep.subr.bf16.mxu0 0
        %1920 = vmatpush1.bf16.msra.mxu0 0
        %1921 = vmatprep.subr.bf16.mxu0 0
        %1922 = vmatpush1.bf16.msra.mxu0 0
        %1923 = vmatprep.subr.bf16.mxu0 0
        %1924 = vmatpush1.bf16.msra.mxu0 0
        %1925 = vmatprep.subr.bf16.mxu0 0
        %1926 = vmatpush1.bf16.msra.mxu0 0
        %1927 = vmatprep.subr.bf16.mxu0 0
        %1928 = vmatpush1.bf16.msra.mxu0 0
        %1929 = vmatprep.subr.bf16.mxu0 0
        %1930 = vmatpush1.bf16.msra.mxu0 0
        %1931 = vmatprep.subr.bf16.mxu0 0
        %1932 = vmatpush1.bf16.msra.mxu0 0
        %1933 = vmatprep.subr.bf16.mxu0 0
        %1934 = vmatpush1.bf16.msra.mxu0 0
        %1935 = vmatprep.mubr.bf16.mxu0 0
        %1936 = vmatmul.mubr.bf16.gmra.mrb[0].mxu0 %v1831
        %v1937 = vpop.f32.mrb[0].mxu0
        %v1938 = vadd.f32 %v1853, %v1937
        %v1939 = vpop.f32.mrb[0].mxu0
        %v1940 = vpop.f32.mrb[0].mxu0
        %v1941 = vadd.f32 %v1853, %v1940
        %v1942 = vpop.f32.mrb[0].mxu0
        %1943 = vdwg.mxu0
        %v1944 = vmax.f32 %v1938, 0.0
        %v1945 = vmax.f32 %v1941, 0.0
        %v1946 = vpack.c.bf16 %v1945, %v1944
        %v1947 = vld [vmem:[%s679] sm:$0xf]
        %v1948 = vld [vmem:[%s679 + $0x4] sm:$0xf]
        %v1949 = vld [vmem:[%s679 + $0x8] sm:$0xf]
        %v1950 = vld [vmem:[%s679 + $0xc] sm:$0xf]
        %v1951 = vld [vmem:[%s679 + $0x10] sm:$0xf]
        %v1952 = vld [vmem:[%s679 + $0x14] sm:$0xf]
        %v1953 = vld [vmem:[%s679 + $0x18] sm:$0xf]
        %v1954 = vld [vmem:[%s679 + $0x1c] sm:$0xf]
        %v1955 = vld [vmem:[%s679 + $0x20] sm:$0xf]
        %v1956 = vld [vmem:[%s679 + $0x24] sm:$0xf]
        %v1957 = vld [vmem:[%s679 + $0x28] sm:$0xf]
        %v1958 = vld [vmem:[%s679 + $0x2c] sm:$0xf]
        %v1959 = vld [vmem:[%s679 + $0x30] sm:$0xf]
        %v1960 = vld [vmem:[%s679 + $0x34] sm:$0xf]
        %v1961 = vld [vmem:[%s679 + $0x38] sm:$0xf]
        %v1962 = vld [vmem:[%s679 + $0x3c] sm:$0xf]
        %v1963 = vld [vmem:[%s797] sm:$0x1]
        %v1965 = vlaneseq
        %v1966 = vshrl.u32 %v1965, 7
        %v1967 = vsub.s32 0, %v1966
        %v1968 = vrot.slane %v1963, %v1967
        %v1986 = vunpack.c.l.b16 %v1947
        %v1987 = vunpack.c.l.b16 %v1948
        %v1988 = vunpack.c.l.b16 %v1949
        %v1989 = vunpack.c.l.b16 %v1950
        %v1990 = vunpack.c.l.b16 %v1951
        %v1991 = vunpack.c.l.b16 %v1952
        %v1992 = vunpack.c.l.b16 %v1953
        %v1993 = vunpack.c.l.b16 %v1954
        %v1994 = vunpack.c.l.b16 %v1955
        %v1995 = vunpack.c.l.b16 %v1956
        %v1996 = vunpack.c.l.b16 %v1957
        %v1997 = vunpack.c.l.b16 %v1958
        %v1998 = vunpack.c.l.b16 %v1959
        %v1999 = vunpack.c.l.b16 %v1960
        %v2000 = vunpack.c.l.b16 %v1961
        %v2001 = vunpack.c.l.b16 %v1962
        %v2002 = vpack.c.b16 %v1987, %v1986
        %v2003 = vpack.c.b16 %v1989, %v1988
        %v2004 = vpack.c.b16 %v1991, %v1990
        %v2005 = vpack.c.b16 %v1993, %v1992
        %v2006 = vpack.c.b16 %v1995, %v1994
        %v2007 = vpack.c.b16 %v1997, %v1996
        %v2008 = vpack.c.b16 %v1999, %v1998
        %v2009 = vpack.c.b16 %v2001, %v2000
        %2018 = vmatprep.subr.bf16.mxu0 0
        %2019 = vmatpush1.bf16.msra.mxu0 %v2002
        %2020 = vmatprep.subr.bf16.mxu0 0
        %2021 = vmatpush1.bf16.msra.mxu0 %v2003
        %2022 = vmatprep.subr.bf16.mxu0 0
        %2023 = vmatpush1.bf16.msra.mxu0 %v2004
        %2024 = vmatprep.subr.bf16.mxu0 0
        %2025 = vmatpush1.bf16.msra.mxu0 %v2005
        %2026 = vmatprep.subr.bf16.mxu0 0
        %2027 = vmatpush1.bf16.msra.mxu0 %v2006
        %2028 = vmatprep.subr.bf16.mxu0 0
        %2029 = vmatpush1.bf16.msra.mxu0 %v2007
        %2030 = vmatprep.subr.bf16.mxu0 0
        %2031 = vmatpush1.bf16.msra.mxu0 %v2008
        %2032 = vmatprep.subr.bf16.mxu0 0
        %2033 = vmatpush1.bf16.msra.mxu0 %v2009
        %2034 = vmatprep.subr.bf16.mxu0 0
        %2035 = vmatpush1.bf16.msra.mxu0 0
        %2036 = vmatprep.subr.bf16.mxu0 0
        %2037 = vmatpush1.bf16.msra.mxu0 0
        %2038 = vmatprep.subr.bf16.mxu0 0
        %2039 = vmatpush1.bf16.msra.mxu0 0
        %2040 = vmatprep.subr.bf16.mxu0 0
        %2041 = vmatpush1.bf16.msra.mxu0 0
        %2042 = vmatprep.subr.bf16.mxu0 0
        %2043 = vmatpush1.bf16.msra.mxu0 0
        %2044 = vmatprep.subr.bf16.mxu0 0
        %2045 = vmatpush1.bf16.msra.mxu0 0
        %2046 = vmatprep.subr.bf16.mxu0 0
        %2047 = vmatpush1.bf16.msra.mxu0 0
        %2048 = vmatprep.subr.bf16.mxu0 0
        %2049 = vmatpush1.bf16.msra.mxu0 0
        %2050 = vmatprep.mubr.bf16.mxu0 0
        %2051 = vmatmul.mubr.bf16.gmra.mrb[0].mxu0 %v1946
        %v2052 = vpop.f32.mrb[0].mxu0
        %v2053 = vadd.f32 %v1968, %v2052
        %v2054 = vpop.f32.mrb[0].mxu0
        %v2055 = vpop.f32.mrb[0].mxu0
        %v2056 = vadd.f32 %v1968, %v2055
        %v2057 = vpop.f32.mrb[0].mxu0
        %2058 = vdwg.mxu0
        %v2059 = vadd.f32 %v1829, %v2053
        %v2060 = vadd.f32 %v1830, %v2056
        %v2061 = vld [vmem:[%s800] sm:$0x1]
        %v2062 = vld [vmem:[%s803] sm:$0x1]
        %2063 = vadd.xlane.f32.xlu0 %v2059
        %v2064 = vpop.xlane.xlu0 %2063
        %2065 = vadd.xlane.f32.xlu0 %v2060
        %v2066 = vpop.xlane.xlu0 %2065
        %v2067 = vmul.f32 %v2064, %v1796
        %v2068 = vmul.f32 %v2066, %v1796
        %v2069 = vsub.f32 %v2059, %v2067
        %v2070 = vsub.f32 %v2060, %v2068
        %v2071 = vmul.f32 %v2069, %v2069
        %v2072 = vmul.f32 %v2070, %v2070
        %2073 = vadd.xlane.f32.xlu0 %v2071
        %v2074 = vpop.xlane.xlu0 %2073
        %2075 = vadd.xlane.f32.xlu0 %v2072
        %v2076 = vpop.xlane.xlu0 %2075
        %v2077 = vmul.f32 %v2074, %v1796
        %v2078 = vmul.f32 %v2076, %v1796
        %v2079 = vadd.f32 %v2077, 1e-05
        %v2080 = vadd.f32 %v2078, 1e-05
        %v2081 = vrsqrt.pop %v2079
        %v2082 = vrsqrt.pop %v2080
        %v2083 = vmul.f32 %v2069, %v2081
        %v2084 = vmul.f32 %v2070, %v2082
        %v2086 = vlaneseq
        %v2087 = vshrl.u32 %v2086, 7
        %v2088 = vsub.s32 0, %v2087
        %v2089 = vrot.slane %v2061, %v2088
        %v2091 = vmul.f32 %v2083, %v2089
        %v2092 = vmul.f32 %v2084, %v2089
        %v2094 = vlaneseq
        %v2095 = vshrl.u32 %v2094, 7
        %v2096 = vsub.s32 0, %v2095
        %v2097 = vrot.slane %v2062, %v2096
        %v2099 = vadd.f32 %v2091, %v2097
        %v2100 = vadd.f32 %v2092, %v2097
        %2101 = vst [vmem:[#allocation2] sm:$0xff] %v2099
        %2102 = vst [vmem:[#allocation2 + $0x8] sm:$0xff] %v2100
        %p2103 = scmp.eq.s32.totalorder %s37, 3
        // Predicated region
        $region109: #{transformer_forward.1} parent=95 // pred_check
          %p2104 = pneg %p2103
        $region110: #{transformer_forward.1} parent=95 // pred_check_branch
          %2106 = sbr.rel (%p2104) target = $region112
        $region111: #{transformer_forward.1} parent=95 // pred_region
          %v2107 = vpack.c.bf16 %v2100, %v2099
          %v2108 = vld [vmem:[%s18] sm:$0x1]
          %v2110 = vlaneseq
          %v2111 = vshrl.u32 %v2110, 7
          %v2112 = vsub.s32 0, %v2111
          %v2113 = vrot.slane %v2108, %v2112
          %v2115 = vadd.f32 %v2113, 0.0
          %v2116 = vld [vmem:[%s17] sm:$0xf]
          %v2117 = vld [vmem:[%s17 + $0x4] sm:$0xf]
          %v2118 = vld [vmem:[%s17 + $0x8] sm:$0xf]
          %v2119 = vld [vmem:[%s17 + $0xc] sm:$0xf]
          %v2120 = vld [vmem:[%s17 + $0x10] sm:$0xf]
          %v2121 = vld [vmem:[%s17 + $0x14] sm:$0xf]
          %v2122 = vld [vmem:[%s17 + $0x18] sm:$0xf]
          %v2123 = vld [vmem:[%s17 + $0x1c] sm:$0xf]
          %v2124 = vld [vmem:[%s17 + $0x20] sm:$0xf]
          %v2125 = vld [vmem:[%s17 + $0x24] sm:$0xf]
          %v2126 = vld [vmem:[%s17 + $0x28] sm:$0xf]
          %v2127 = vld [vmem:[%s17 + $0x2c] sm:$0xf]
          %v2128 = vld [vmem:[%s17 + $0x30] sm:$0xf]
          %v2129 = vld [vmem:[%s17 + $0x34] sm:$0xf]
          %v2130 = vld [vmem:[%s17 + $0x38] sm:$0xf]
          %v2131 = vld [vmem:[%s17 + $0x3c] sm:$0xf]
          %v2148 = vunpack.c.l.b16 %v2116
          %v2149 = vunpack.c.l.b16 %v2117
          %v2150 = vunpack.c.l.b16 %v2118
          %v2151 = vunpack.c.l.b16 %v2119
          %v2152 = vunpack.c.l.b16 %v2120
          %v2153 = vunpack.c.l.b16 %v2121
          %v2154 = vunpack.c.l.b16 %v2122
          %v2155 = vunpack.c.l.b16 %v2123
          %v2156 = vunpack.c.l.b16 %v2124
          %v2157 = vunpack.c.l.b16 %v2125
          %v2158 = vunpack.c.l.b16 %v2126
          %v2159 = vunpack.c.l.b16 %v2127
          %v2160 = vunpack.c.l.b16 %v2128
          %v2161 = vunpack.c.l.b16 %v2129
          %v2162 = vunpack.c.l.b16 %v2130
          %v2163 = vunpack.c.l.b16 %v2131
          %v2164 = vpack.c.b16 %v2149, %v2148
          %v2165 = vpack.c.b16 %v2151, %v2150
          %v2166 = vpack.c.b16 %v2153, %v2152
          %v2167 = vpack.c.b16 %v2155, %v2154
          %v2168 = vpack.c.b16 %v2157, %v2156
          %v2169 = vpack.c.b16 %v2159, %v2158
          %v2170 = vpack.c.b16 %v2161, %v2160
          %v2171 = vpack.c.b16 %v2163, %v2162
          %2180 = vmatprep.subr.bf16.mxu0 0
          %2181 = vmatpush1.bf16.msra.mxu0 %v2164
          %2182 = vmatprep.subr.bf16.mxu0 0
          %2183 = vmatpush1.bf16.msra.mxu0 %v2165
          %2184 = vmatprep.subr.bf16.mxu0 0
          %2185 = vmatpush1.bf16.msra.mxu0 %v2166
          %2186 = vmatprep.subr.bf16.mxu0 0
          %2187 = vmatpush1.bf16.msra.mxu0 %v2167
          %2188 = vmatprep.subr.bf16.mxu0 0
          %2189 = vmatpush1.bf16.msra.mxu0 %v2168
          %2190 = vmatprep.subr.bf16.mxu0 0
          %2191 = vmatpush1.bf16.msra.mxu0 %v2169
          %2192 = vmatprep.subr.bf16.mxu0 0
          %2193 = vmatpush1.bf16.msra.mxu0 %v2170
          %2194 = vmatprep.subr.bf16.mxu0 0
          %2195 = vmatpush1.bf16.msra.mxu0 %v2171
          %2196 = vmatprep.subr.bf16.mxu0 0
          %2197 = vmatpush1.bf16.msra.mxu0 0
          %2198 = vmatprep.subr.bf16.mxu0 0
          %2199 = vmatpush1.bf16.msra.mxu0 0
          %2200 = vmatprep.subr.bf16.mxu0 0
          %2201 = vmatpush1.bf16.msra.mxu0 0
          %2202 = vmatprep.subr.bf16.mxu0 0
          %2203 = vmatpush1.bf16.msra.mxu0 0
          %2204 = vmatprep.subr.bf16.mxu0 0
          %2205 = vmatpush1.bf16.msra.mxu0 0
          %2206 = vmatprep.subr.bf16.mxu0 0
          %2207 = vmatpush1.bf16.msra.mxu0 0
          %2208 = vmatprep.subr.bf16.mxu0 0
          %2209 = vmatpush1.bf16.msra.mxu0 0
          %2210 = vmatprep.subr.bf16.mxu0 0
          %2211 = vmatpush1.bf16.msra.mxu0 0
          %2212 = vmatprep.mubr.bf16.mxu0 0
          %2213 = vmatmul.mubr.bf16.gmra.mrb[0].mxu0 %v2107
          %v2214 = vpop.f32.mrb[0].mxu0
          %v2215 = vadd.f32 0.0, %v2214
          %v2216 = vpop.f32.mrb[0].mxu0
          %v2217 = vpop.f32.mrb[0].mxu0
          %v2218 = vpop.f32.mrb[0].mxu0
          %2219 = vdwg.mxu0
          %v2220 = vadd.f32 %v2115, %v2215
          %s2221 = scalar_lea.vmem %s17, 64
          %v2222 = vld [vmem:[%s2221] sm:$0xf]
          %v2223 = vld [vmem:[%s2221 + $0x4] sm:$0xf]
          %v2224 = vld [vmem:[%s2221 + $0x8] sm:$0xf]
          %v2225 = vld [vmem:[%s2221 + $0xc] sm:$0xf]
          %v2226 = vld [vmem:[%s2221 + $0x10] sm:$0xf]
          %v2227 = vld [vmem:[%s2221 + $0x14] sm:$0xf]
          %v2228 = vld [vmem:[%s2221 + $0x18] sm:$0xf]
          %v2229 = vld [vmem:[%s2221 + $0x1c] sm:$0xf]
          %v2230 = vld [vmem:[%s2221 + $0x20] sm:$0xf]
          %v2231 = vld [vmem:[%s2221 + $0x24] sm:$0xf]
          %v2232 = vld [vmem:[%s2221 + $0x28] sm:$0xf]
          %v2233 = vld [vmem:[%s2221 + $0x2c] sm:$0xf]
          %v2234 = vld [vmem:[%s2221 + $0x30] sm:$0xf]
          %v2235 = vld [vmem:[%s2221 + $0x34] sm:$0xf]
          %v2236 = vld [vmem:[%s2221 + $0x38] sm:$0xf]
          %v2237 = vld [vmem:[%s2221 + $0x3c] sm:$0xf]
          %v2239 = vrot.slane %v2107, 1
          %v2257 = vunpack.c.l.b16 %v2222
          %v2258 = vunpack.c.l.b16 %v2223
          %v2259 = vunpack.c.l.b16 %v2224
          %v2260 = vunpack.c.l.b16 %v2225
          %v2261 = vunpack.c.l.b16 %v2226
          %v2262 = vunpack.c.l.b16 %v2227
          %v2263 = vunpack.c.l.b16 %v2228
          %v2264 = vunpack.c.l.b16 %v2229
          %v2265 = vunpack.c.l.b16 %v2230
          %v2266 = vunpack.c.l.b16 %v2231
          %v2267 = vunpack.c.l.b16 %v2232
          %v2268 = vunpack.c.l.b16 %v2233
          %v2269 = vunpack.c.l.b16 %v2234
          %v2270 = vunpack.c.l.b16 %v2235
          %v2271 = vunpack.c.l.b16 %v2236
          %v2272 = vunpack.c.l.b16 %v2237
          %v2273 = vpack.c.b16 %v2258, %v2257
          %v2274 = vpack.c.b16 %v2260, %v2259
          %v2275 = vpack.c.b16 %v2262, %v2261
          %v2276 = vpack.c.b16 %v2264, %v2263
          %v2277 = vpack.c.b16 %v2266, %v2265
          %v2278 = vpack.c.b16 %v2268, %v2267
          %v2279 = vpack.c.b16 %v2270, %v2269
          %v2280 = vpack.c.b16 %v2272, %v2271
          %2289 = vmatprep.subr.bf16.mxu0 0
          %2290 = vmatpush1.bf16.msra.mxu0 %v2273
          %2291 = vmatprep.subr.bf16.mxu0 0
          %2292 = vmatpush1.bf16.msra.mxu0 %v2274
          %2293 = vmatprep.subr.bf16.mxu0 0
          %2294 = vmatpush1.bf16.msra.mxu0 %v2275
          %2295 = vmatprep.subr.bf16.mxu0 0
          %2296 = vmatpush1.bf16.msra.mxu0 %v2276
          %2297 = vmatprep.subr.bf16.mxu0 0
          %2298 = vmatpush1.bf16.msra.mxu0 %v2277
          %2299 = vmatprep.subr.bf16.mxu0 0
          %2300 = vmatpush1.bf16.msra.mxu0 %v2278
          %2301 = vmatprep.subr.bf16.mxu0 0
          %2302 = vmatpush1.bf16.msra.mxu0 %v2279
          %2303 = vmatprep.subr.bf16.mxu0 0
          %2304 = vmatpush1.bf16.msra.mxu0 %v2280
          %2305 = vmatprep.subr.bf16.mxu0 0
          %2306 = vmatpush1.bf16.msra.mxu0 0
          %2307 = vmatprep.subr.bf16.mxu0 0
          %2308 = vmatpush1.bf16.msra.mxu0 0
          %2309 = vmatprep.subr.bf16.mxu0 0
          %2310 = vmatpush1.bf16.msra.mxu0 0
          %2311 = vmatprep.subr.bf16.mxu0 0
          %2312 = vmatpush1.bf16.msra.mxu0 0
          %2313 = vmatprep.subr.bf16.mxu0 0
          %2314 = vmatpush1.bf16.msra.mxu0 0
          %2315 = vmatprep.subr.bf16.mxu0 0
          %2316 = vmatpush1.bf16.msra.mxu0 0
          %2317 = vmatprep.subr.bf16.mxu0 0
          %2318 = vmatpush1.bf16.msra.mxu0 0
          %2319 = vmatprep.subr.bf16.mxu0 0
          %2320 = vmatpush1.bf16.msra.mxu0 0
          %2321 = vmatprep.mubr.bf16.mxu0 0
          %2322 = vmatmul.mubr.bf16.gmra.mrb[0].mxu0 %v2239
          %v2323 = vpop.f32.mrb[0].mxu0
          %v2324 = vadd.f32 0.0, %v2323
          %v2325 = vpop.f32.mrb[0].mxu0
          %v2326 = vpop.f32.mrb[0].mxu0
          %v2327 = vpop.f32.mrb[0].mxu0
          %2328 = vdwg.mxu0
          %v2329 = vadd.f32 %v2220, %v2324
          %s2330 = scalar_lea.vmem %s17, 128
          %v2331 = vld [vmem:[%s2330] sm:$0xf]
          %v2332 = vld [vmem:[%s2330 + $0x4] sm:$0xf]
          %v2333 = vld [vmem:[%s2330 + $0x8] sm:$0xf]
          %v2334 = vld [vmem:[%s2330 + $0xc] sm:$0xf]
          %v2335 = vld [vmem:[%s2330 + $0x10] sm:$0xf]
          %v2336 = vld [vmem:[%s2330 + $0x14] sm:$0xf]
          %v2337 = vld [vmem:[%s2330 + $0x18] sm:$0xf]
          %v2338 = vld [vmem:[%s2330 + $0x1c] sm:$0xf]
          %v2339 = vld [vmem:[%s2330 + $0x20] sm:$0xf]
          %v2340 = vld [vmem:[%s2330 + $0x24] sm:$0xf]
          %v2341 = vld [vmem:[%s2330 + $0x28] sm:$0xf]
          %v2342 = vld [vmem:[%s2330 + $0x2c] sm:$0xf]
          %v2343 = vld [vmem:[%s2330 + $0x30] sm:$0xf]
          %v2344 = vld [vmem:[%s2330 + $0x34] sm:$0xf]
          %v2345 = vld [vmem:[%s2330 + $0x38] sm:$0xf]
          %v2346 = vld [vmem:[%s2330 + $0x3c] sm:$0xf]
          %v2347 = vrot.slane %v2107, 2
          %v2365 = vunpack.c.l.b16 %v2331
          %v2366 = vunpack.c.l.b16 %v2332
          %v2367 = vunpack.c.l.b16 %v2333
          %v2368 = vunpack.c.l.b16 %v2334
          %v2369 = vunpack.c.l.b16 %v2335
          %v2370 = vunpack.c.l.b16 %v2336
          %v2371 = vunpack.c.l.b16 %v2337
          %v2372 = vunpack.c.l.b16 %v2338
          %v2373 = vunpack.c.l.b16 %v2339
          %v2374 = vunpack.c.l.b16 %v2340
          %v2375 = vunpack.c.l.b16 %v2341
          %v2376 = vunpack.c.l.b16 %v2342
          %v2377 = vunpack.c.l.b16 %v2343
          %v2378 = vunpack.c.l.b16 %v2344
          %v2379 = vunpack.c.l.b16 %v2345
          %v2380 = vunpack.c.l.b16 %v2346
          %v2381 = vpack.c.b16 %v2366, %v2365
          %v2382 = vpack.c.b16 %v2368, %v2367
          %v2383 = vpack.c.b16 %v2370, %v2369
          %v2384 = vpack.c.b16 %v2372, %v2371
          %v2385 = vpack.c.b16 %v2374, %v2373
          %v2386 = vpack.c.b16 %v2376, %v2375
          %v2387 = vpack.c.b16 %v2378, %v2377
          %v2388 = vpack.c.b16 %v2380, %v2379
          %2397 = vmatprep.subr.bf16.mxu0 0
          %2398 = vmatpush1.bf16.msra.mxu0 %v2381
          %2399 = vmatprep.subr.bf16.mxu0 0
          %2400 = vmatpush1.bf16.msra.mxu0 %v2382
          %2401 = vmatprep.subr.bf16.mxu0 0
          %2402 = vmatpush1.bf16.msra.mxu0 %v2383
          %2403 = vmatprep.subr.bf16.mxu0 0
          %2404 = vmatpush1.bf16.msra.mxu0 %v2384
          %2405 = vmatprep.subr.bf16.mxu0 0
          %2406 = vmatpush1.bf16.msra.mxu0 %v2385
          %2407 = vmatprep.subr.bf16.mxu0 0
          %2408 = vmatpush1.bf16.msra.mxu0 %v2386
          %2409 = vmatprep.subr.bf16.mxu0 0
          %2410 = vmatpush1.bf16.msra.mxu0 %v2387
          %2411 = vmatprep.subr.bf16.mxu0 0
          %2412 = vmatpush1.bf16.msra.mxu0 %v2388
          %2413 = vmatprep.subr.bf16.mxu0 0
          %2414 = vmatpush1.bf16.msra.mxu0 0
          %2415 = vmatprep.subr.bf16.mxu0 0
          %2416 = vmatpush1.bf16.msra.mxu0 0
          %2417 = vmatprep.subr.bf16.mxu0 0
          %2418 = vmatpush1.bf16.msra.mxu0 0
          %2419 = vmatprep.subr.bf16.mxu0 0
          %2420 = vmatpush1.bf16.msra.mxu0 0
          %2421 = vmatprep.subr.bf16.mxu0 0
          %2422 = vmatpush1.bf16.msra.mxu0 0
          %2423 = vmatprep.subr.bf16.mxu0 0
          %2424 = vmatpush1.bf16.msra.mxu0 0
          %2425 = vmatprep.subr.bf16.mxu0 0
          %2426 = vmatpush1.bf16.msra.mxu0 0
          %2427 = vmatprep.subr.bf16.mxu0 0
          %2428 = vmatpush1.bf16.msra.mxu0 0
          %2429 = vmatprep.mubr.bf16.mxu0 0
          %2430 = vmatmul.mubr.bf16.gmra.mrb[0].mxu0 %v2347
          %v2431 = vpop.f32.mrb[0].mxu0
          %v2432 = vadd.f32 0.0, %v2431
          %v2433 = vpop.f32.mrb[0].mxu0
          %v2434 = vpop.f32.mrb[0].mxu0
          %v2435 = vpop.f32.mrb[0].mxu0
          %2436 = vdwg.mxu0
          %v2437 = vadd.f32 %v2329, %v2432
          %s2438 = scalar_lea.vmem %s17, 192
          %v2439 = vld [vmem:[%s2438] sm:$0xf]
          %v2440 = vld [vmem:[%s2438 + $0x4] sm:$0xf]
          %v2441 = vld [vmem:[%s2438 + $0x8] sm:$0xf]
          %v2442 = vld [vmem:[%s2438 + $0xc] sm:$0xf]
          %v2443 = vld [vmem:[%s2438 + $0x10] sm:$0xf]
          %v2444 = vld [vmem:[%s2438 + $0x14] sm:$0xf]
          %v2445 = vld [vmem:[%s2438 + $0x18] sm:$0xf]
          %v2446 = vld [vmem:[%s2438 + $0x1c] sm:$0xf]
          %v2447 = vld [vmem:[%s2438 + $0x20] sm:$0xf]
          %v2448 = vld [vmem:[%s2438 + $0x24] sm:$0xf]
          %v2449 = vld [vmem:[%s2438 + $0x28] sm:$0xf]
          %v2450 = vld [vmem:[%s2438 + $0x2c] sm:$0xf]
          %v2451 = vld [vmem:[%s2438 + $0x30] sm:$0xf]
          %v2452 = vld [vmem:[%s2438 + $0x34] sm:$0xf]
          %v2453 = vld [vmem:[%s2438 + $0x38] sm:$0xf]
          %v2454 = vld [vmem:[%s2438 + $0x3c] sm:$0xf]
          %v2455 = vrot.slane %v2107, 3
          %v2473 = vunpack.c.l.b16 %v2439
          %v2474 = vunpack.c.l.b16 %v2440
          %v2475 = vunpack.c.l.b16 %v2441
          %v2476 = vunpack.c.l.b16 %v2442
          %v2477 = vunpack.c.l.b16 %v2443
          %v2478 = vunpack.c.l.b16 %v2444
          %v2479 = vunpack.c.l.b16 %v2445
          %v2480 = vunpack.c.l.b16 %v2446
          %v2481 = vunpack.c.l.b16 %v2447
          %v2482 = vunpack.c.l.b16 %v2448
          %v2483 = vunpack.c.l.b16 %v2449
          %v2484 = vunpack.c.l.b16 %v2450
          %v2485 = vunpack.c.l.b16 %v2451
          %v2486 = vunpack.c.l.b16 %v2452
          %v2487 = vunpack.c.l.b16 %v2453
          %v2488 = vunpack.c.l.b16 %v2454
          %v2489 = vpack.c.b16 %v2474, %v2473
          %v2490 = vpack.c.b16 %v2476, %v2475
          %v2491 = vpack.c.b16 %v2478, %v2477
          %v2492 = vpack.c.b16 %v2480, %v2479
          %v2493 = vpack.c.b16 %v2482, %v2481
          %v2494 = vpack.c.b16 %v2484, %v2483
          %v2495 = vpack.c.b16 %v2486, %v2485
          %v2496 = vpack.c.b16 %v2488, %v2487
          %2505 = vmatprep.subr.bf16.mxu0 0
          %2506 = vmatpush1.bf16.msra.mxu0 %v2489
          %2507 = vmatprep.subr.bf16.mxu0 0
          %2508 = vmatpush1.bf16.msra.mxu0 %v2490
          %2509 = vmatprep.subr.bf16.mxu0 0
          %2510 = vmatpush1.bf16.msra.mxu0 %v2491
          %2511 = vmatprep.subr.bf16.mxu0 0
          %2512 = vmatpush1.bf16.msra.mxu0 %v2492
          %2513 = vmatprep.subr.bf16.mxu0 0
          %2514 = vmatpush1.bf16.msra.mxu0 %v2493
          %2515 = vmatprep.subr.bf16.mxu0 0
          %2516 = vmatpush1.bf16.msra.mxu0 %v2494
          %2517 = vmatprep.subr.bf16.mxu0 0
          %2518 = vmatpush1.bf16.msra.mxu0 %v2495
          %2519 = vmatprep.subr.bf16.mxu0 0
          %2520 = vmatpush1.bf16.msra.mxu0 %v2496
          %2521 = vmatprep.subr.bf16.mxu0 0
          %2522 = vmatpush1.bf16.msra.mxu0 0
          %2523 = vmatprep.subr.bf16.mxu0 0
          %2524 = vmatpush1.bf16.msra.mxu0 0
          %2525 = vmatprep.subr.bf16.mxu0 0
          %2526 = vmatpush1.bf16.msra.mxu0 0
          %2527 = vmatprep.subr.bf16.mxu0 0
          %2528 = vmatpush1.bf16.msra.mxu0 0
          %2529 = vmatprep.subr.bf16.mxu0 0
          %2530 = vmatpush1.bf16.msra.mxu0 0
          %2531 = vmatprep.subr.bf16.mxu0 0
          %2532 = vmatpush1.bf16.msra.mxu0 0
          %2533 = vmatprep.subr.bf16.mxu0 0
          %2534 = vmatpush1.bf16.msra.mxu0 0
          %2535 = vmatprep.subr.bf16.mxu0 0
          %2536 = vmatpush1.bf16.msra.mxu0 0
          %2537 = vmatprep.mubr.bf16.mxu0 0
          %2538 = vmatmul.mubr.bf16.gmra.mrb[0].mxu0 %v2455
          %v2539 = vpop.f32.mrb[0].mxu0
          %v2540 = vadd.f32 0.0, %v2539
          %v2541 = vpop.f32.mrb[0].mxu0
          %v2542 = vpop.f32.mrb[0].mxu0
          %v2543 = vpop.f32.mrb[0].mxu0
          %2544 = vdwg.mxu0
          %v2545 = vadd.f32 %v2437, %v2540
          %s2546 = scalar_lea.vmem %s17, 256
          %v2547 = vld [vmem:[%s2546] sm:$0xf]
          %v2548 = vld [vmem:[%s2546 + $0x4] sm:$0xf]
          %v2549 = vld [vmem:[%s2546 + $0x8] sm:$0xf]
          %v2550 = vld [vmem:[%s2546 + $0xc] sm:$0xf]
          %v2551 = vld [vmem:[%s2546 + $0x10] sm:$0xf]
          %v2552 = vld [vmem:[%s2546 + $0x14] sm:$0xf]
          %v2553 = vld [vmem:[%s2546 + $0x18] sm:$0xf]
          %v2554 = vld [vmem:[%s2546 + $0x1c] sm:$0xf]
          %v2555 = vld [vmem:[%s2546 + $0x20] sm:$0xf]
          %v2556 = vld [vmem:[%s2546 + $0x24] sm:$0xf]
          %v2557 = vld [vmem:[%s2546 + $0x28] sm:$0xf]
          %v2558 = vld [vmem:[%s2546 + $0x2c] sm:$0xf]
          %v2559 = vld [vmem:[%s2546 + $0x30] sm:$0xf]
          %v2560 = vld [vmem:[%s2546 + $0x34] sm:$0xf]
          %v2561 = vld [vmem:[%s2546 + $0x38] sm:$0xf]
          %v2562 = vld [vmem:[%s2546 + $0x3c] sm:$0xf]
          %v2563 = vrot.slane %v2107, 4
          %v2581 = vunpack.c.l.b16 %v2547
          %v2582 = vunpack.c.l.b16 %v2548
          %v2583 = vunpack.c.l.b16 %v2549
          %v2584 = vunpack.c.l.b16 %v2550
          %v2585 = vunpack.c.l.b16 %v2551
          %v2586 = vunpack.c.l.b16 %v2552
          %v2587 = vunpack.c.l.b16 %v2553
          %v2588 = vunpack.c.l.b16 %v2554
          %v2589 = vunpack.c.l.b16 %v2555
          %v2590 = vunpack.c.l.b16 %v2556
          %v2591 = vunpack.c.l.b16 %v2557
          %v2592 = vunpack.c.l.b16 %v2558
          %v2593 = vunpack.c.l.b16 %v2559
          %v2594 = vunpack.c.l.b16 %v2560
          %v2595 = vunpack.c.l.b16 %v2561
          %v2596 = vunpack.c.l.b16 %v2562
          %v2597 = vpack.c.b16 %v2582, %v2581
          %v2598 = vpack.c.b16 %v2584, %v2583
          %v2599 = vpack.c.b16 %v2586, %v2585
          %v2600 = vpack.c.b16 %v2588, %v2587
          %v2601 = vpack.c.b16 %v2590, %v2589
          %v2602 = vpack.c.b16 %v2592, %v2591
          %v2603 = vpack.c.b16 %v2594, %v2593
          %v2604 = vpack.c.b16 %v2596, %v2595
          %2613 = vmatprep.subr.bf16.mxu0 0
          %2614 = vmatpush1.bf16.msra.mxu0 %v2597
          %2615 = vmatprep.subr.bf16.mxu0 0
          %2616 = vmatpush1.bf16.msra.mxu0 %v2598
          %2617 = vmatprep.subr.bf16.mxu0 0
          %2618 = vmatpush1.bf16.msra.mxu0 %v2599
          %2619 = vmatprep.subr.bf16.mxu0 0
          %2620 = vmatpush1.bf16.msra.mxu0 %v2600
          %2621 = vmatprep.subr.bf16.mxu0 0
          %2622 = vmatpush1.bf16.msra.mxu0 %v2601
          %2623 = vmatprep.subr.bf16.mxu0 0
          %2624 = vmatpush1.bf16.msra.mxu0 %v2602
          %2625 = vmatprep.subr.bf16.mxu0 0
          %2626 = vmatpush1.bf16.msra.mxu0 %v2603
          %2627 = vmatprep.subr.bf16.mxu0 0
          %2628 = vmatpush1.bf16.msra.mxu0 %v2604
          %2629 = vmatprep.subr.bf16.mxu0 0
          %2630 = vmatpush1.bf16.msra.mxu0 0
          %2631 = vmatprep.subr.bf16.mxu0 0
          %2632 = vmatpush1.bf16.msra.mxu0 0
          %2633 = vmatprep.subr.bf16.mxu0 0
          %2634 = vmatpush1.bf16.msra.mxu0 0
          %2635 = vmatprep.subr.bf16.mxu0 0
          %2636 = vmatpush1.bf16.msra.mxu0 0
          %2637 = vmatprep.subr.bf16.mxu0 0
          %2638 = vmatpush1.bf16.msra.mxu0 0
          %2639 = vmatprep.subr.bf16.mxu0 0
          %2640 = vmatpush1.bf16.msra.mxu0 0
          %2641 = vmatprep.subr.bf16.mxu0 0
          %2642 = vmatpush1.bf16.msra.mxu0 0
          %2643 = vmatprep.subr.bf16.mxu0 0
          %2644 = vmatpush1.bf16.msra.mxu0 0
          %2645 = vmatprep.mubr.bf16.mxu0 0
          %2646 = vmatmul.mubr.bf16.gmra.mrb[0].mxu0 %v2563
          %v2647 = vpop.f32.mrb[0].mxu0
          %v2648 = vadd.f32 0.0, %v2647
          %v2649 = vpop.f32.mrb[0].mxu0
          %v2650 = vpop.f32.mrb[0].mxu0
          %v2651 = vpop.f32.mrb[0].mxu0
          %2652 = vdwg.mxu0
          %v2653 = vadd.f32 %v2545, %v2648
          %s2654 = scalar_lea.vmem %s17, 320
          %v2655 = vld [vmem:[%s2654] sm:$0xf]
          %v2656 = vld [vmem:[%s2654 + $0x4] sm:$0xf]
          %v2657 = vld [vmem:[%s2654 + $0x8] sm:$0xf]
          %v2658 = vld [vmem:[%s2654 + $0xc] sm:$0xf]
          %v2659 = vld [vmem:[%s2654 + $0x10] sm:$0xf]
          %v2660 = vld [vmem:[%s2654 + $0x14] sm:$0xf]
          %v2661 = vld [vmem:[%s2654 + $0x18] sm:$0xf]
          %v2662 = vld [vmem:[%s2654 + $0x1c] sm:$0xf]
          %v2663 = vld [vmem:[%s2654 + $0x20] sm:$0xf]
          %v2664 = vld [vmem:[%s2654 + $0x24] sm:$0xf]
          %v2665 = vld [vmem:[%s2654 + $0x28] sm:$0xf]
          %v2666 = vld [vmem:[%s2654 + $0x2c] sm:$0xf]
          %v2667 = vld [vmem:[%s2654 + $0x30] sm:$0xf]
          %v2668 = vld [vmem:[%s2654 + $0x34] sm:$0xf]
          %v2669 = vld [vmem:[%s2654 + $0x38] sm:$0xf]
          %v2670 = vld [vmem:[%s2654 + $0x3c] sm:$0xf]
          %v2671 = vrot.slane %v2107, 5
          %v2689 = vunpack.c.l.b16 %v2655
          %v2690 = vunpack.c.l.b16 %v2656
          %v2691 = vunpack.c.l.b16 %v2657
          %v2692 = vunpack.c.l.b16 %v2658
          %v2693 = vunpack.c.l.b16 %v2659
          %v2694 = vunpack.c.l.b16 %v2660
          %v2695 = vunpack.c.l.b16 %v2661
          %v2696 = vunpack.c.l.b16 %v2662
          %v2697 = vunpack.c.l.b16 %v2663
          %v2698 = vunpack.c.l.b16 %v2664
          %v2699 = vunpack.c.l.b16 %v2665
          %v2700 = vunpack.c.l.b16 %v2666
          %v2701 = vunpack.c.l.b16 %v2667
          %v2702 = vunpack.c.l.b16 %v2668
          %v2703 = vunpack.c.l.b16 %v2669
          %v2704 = vunpack.c.l.b16 %v2670
          %v2705 = vpack.c.b16 %v2690, %v2689
          %v2706 = vpack.c.b16 %v2692, %v2691
          %v2707 = vpack.c.b16 %v2694, %v2693
          %v2708 = vpack.c.b16 %v2696, %v2695
          %v2709 = vpack.c.b16 %v2698, %v2697
          %v2710 = vpack.c.b16 %v2700, %v2699
          %v2711 = vpack.c.b16 %v2702, %v2701
          %v2712 = vpack.c.b16 %v2704, %v2703
          %2721 = vmatprep.subr.bf16.mxu0 0
          %2722 = vmatpush1.bf16.msra.mxu0 %v2705
          %2723 = vmatprep.subr.bf16.mxu0 0
          %2724 = vmatpush1.bf16.msra.mxu0 %v2706
          %2725 = vmatprep.subr.bf16.mxu0 0
          %2726 = vmatpush1.bf16.msra.mxu0 %v2707
          %2727 = vmatprep.subr.bf16.mxu0 0
          %2728 = vmatpush1.bf16.msra.mxu0 %v2708
          %2729 = vmatprep.subr.bf16.mxu0 0
          %2730 = vmatpush1.bf16.msra.mxu0 %v2709
          %2731 = vmatprep.subr.bf16.mxu0 0
          %2732 = vmatpush1.bf16.msra.mxu0 %v2710
          %2733 = vmatprep.subr.bf16.mxu0 0
          %2734 = vmatpush1.bf16.msra.mxu0 %v2711
          %2735 = vmatprep.subr.bf16.mxu0 0
          %2736 = vmatpush1.bf16.msra.mxu0 %v2712
          %2737 = vmatprep.subr.bf16.mxu0 0
          %2738 = vmatpush1.bf16.msra.mxu0 0
          %2739 = vmatprep.subr.bf16.mxu0 0
          %2740 = vmatpush1.bf16.msra.mxu0 0
          %2741 = vmatprep.subr.bf16.mxu0 0
          %2742 = vmatpush1.bf16.msra.mxu0 0
          %2743 = vmatprep.subr.bf16.mxu0 0
          %2744 = vmatpush1.bf16.msra.mxu0 0
          %2745 = vmatprep.subr.bf16.mxu0 0
          %2746 = vmatpush1.bf16.msra.mxu0 0
          %2747 = vmatprep.subr.bf16.mxu0 0
          %2748 = vmatpush1.bf16.msra.mxu0 0
          %2749 = vmatprep.subr.bf16.mxu0 0
          %2750 = vmatpush1.bf16.msra.mxu0 0
          %2751 = vmatprep.subr.bf16.mxu0 0
          %2752 = vmatpush1.bf16.msra.mxu0 0
          %2753 = vmatprep.mubr.bf16.mxu0 0
          %2754 = vmatmul.mubr.bf16.gmra.mrb[0].mxu0 %v2671
          %v2755 = vpop.f32.mrb[0].mxu0
          %v2756 = vadd.f32 0.0, %v2755
          %v2757 = vpop.f32.mrb[0].mxu0
          %v2758 = vpop.f32.mrb[0].mxu0
          %v2759 = vpop.f32.mrb[0].mxu0
          %2760 = vdwg.mxu0
          %v2761 = vadd.f32 %v2653, %v2756
          %s2762 = scalar_lea.vmem %s17, 384
          %v2763 = vld [vmem:[%s2762] sm:$0xf]
          %v2764 = vld [vmem:[%s2762 + $0x4] sm:$0xf]
          %v2765 = vld [vmem:[%s2762 + $0x8] sm:$0xf]
          %v2766 = vld [vmem:[%s2762 + $0xc] sm:$0xf]
          %v2767 = vld [vmem:[%s2762 + $0x10] sm:$0xf]
          %v2768 = vld [vmem:[%s2762 + $0x14] sm:$0xf]
          %v2769 = vld [vmem:[%s2762 + $0x18] sm:$0xf]
          %v2770 = vld [vmem:[%s2762 + $0x1c] sm:$0xf]
          %v2771 = vld [vmem:[%s2762 + $0x20] sm:$0xf]
          %v2772 = vld [vmem:[%s2762 + $0x24] sm:$0xf]
          %v2773 = vld [vmem:[%s2762 + $0x28] sm:$0xf]
          %v2774 = vld [vmem:[%s2762 + $0x2c] sm:$0xf]
          %v2775 = vld [vmem:[%s2762 + $0x30] sm:$0xf]
          %v2776 = vld [vmem:[%s2762 + $0x34] sm:$0xf]
          %v2777 = vld [vmem:[%s2762 + $0x38] sm:$0xf]
          %v2778 = vld [vmem:[%s2762 + $0x3c] sm:$0xf]
          %v2779 = vrot.slane %v2107, 6
          %v2797 = vunpack.c.l.b16 %v2763
          %v2798 = vunpack.c.l.b16 %v2764
          %v2799 = vunpack.c.l.b16 %v2765
          %v2800 = vunpack.c.l.b16 %v2766
          %v2801 = vunpack.c.l.b16 %v2767
          %v2802 = vunpack.c.l.b16 %v2768
          %v2803 = vunpack.c.l.b16 %v2769
          %v2804 = vunpack.c.l.b16 %v2770
          %v2805 = vunpack.c.l.b16 %v2771
          %v2806 = vunpack.c.l.b16 %v2772
          %v2807 = vunpack.c.l.b16 %v2773
          %v2808 = vunpack.c.l.b16 %v2774
          %v2809 = vunpack.c.l.b16 %v2775
          %v2810 = vunpack.c.l.b16 %v2776
          %v2811 = vunpack.c.l.b16 %v2777
          %v2812 = vunpack.c.l.b16 %v2778
          %v2813 = vpack.c.b16 %v2798, %v2797
          %v2814 = vpack.c.b16 %v2800, %v2799
          %v2815 = vpack.c.b16 %v2802, %v2801
          %v2816 = vpack.c.b16 %v2804, %v2803
          %v2817 = vpack.c.b16 %v2806, %v2805
          %v2818 = vpack.c.b16 %v2808, %v2807
          %v2819 = vpack.c.b16 %v2810, %v2809
          %v2820 = vpack.c.b16 %v2812, %v2811
          %2829 = vmatprep.subr.bf16.mxu0 0
          %2830 = vmatpush1.bf16.msra.mxu0 %v2813
          %2831 = vmatprep.subr.bf16.mxu0 0
          %2832 = vmatpush1.bf16.msra.mxu0 %v2814
          %2833 = vmatprep.subr.bf16.mxu0 0
          %2834 = vmatpush1.bf16.msra.mxu0 %v2815
          %2835 = vmatprep.subr.bf16.mxu0 0
          %2836 = vmatpush1.bf16.msra.mxu0 %v2816
          %2837 = vmatprep.subr.bf16.mxu0 0
          %2838 = vmatpush1.bf16.msra.mxu0 %v2817
          %2839 = vmatprep.subr.bf16.mxu0 0
          %2840 = vmatpush1.bf16.msra.mxu0 %v2818
          %2841 = vmatprep.subr.bf16.mxu0 0
          %2842 = vmatpush1.bf16.msra.mxu0 %v2819
          %2843 = vmatprep.subr.bf16.mxu0 0
          %2844 = vmatpush1.bf16.msra.mxu0 %v2820
          %2845 = vmatprep.subr.bf16.mxu0 0
          %2846 = vmatpush1.bf16.msra.mxu0 0
          %2847 = vmatprep.subr.bf16.mxu0 0
          %2848 = vmatpush1.bf16.msra.mxu0 0
          %2849 = vmatprep.subr.bf16.mxu0 0
          %2850 = vmatpush1.bf16.msra.mxu0 0
          %2851 = vmatprep.subr.bf16.mxu0 0
          %2852 = vmatpush1.bf16.msra.mxu0 0
          %2853 = vmatprep.subr.bf16.mxu0 0
          %2854 = vmatpush1.bf16.msra.mxu0 0
          %2855 = vmatprep.subr.bf16.mxu0 0
          %2856 = vmatpush1.bf16.msra.mxu0 0
          %2857 = vmatprep.subr.bf16.mxu0 0
          %2858 = vmatpush1.bf16.msra.mxu0 0
          %2859 = vmatprep.subr.bf16.mxu0 0
          %2860 = vmatpush1.bf16.msra.mxu0 0
          %2861 = vmatprep.mubr.bf16.mxu0 0
          %2862 = vmatmul.mubr.bf16.gmra.mrb[0].mxu0 %v2779
          %v2863 = vpop.f32.mrb[0].mxu0
          %v2864 = vadd.f32 0.0, %v2863
          %v2865 = vpop.f32.mrb[0].mxu0
          %v2866 = vpop.f32.mrb[0].mxu0
          %v2867 = vpop.f32.mrb[0].mxu0
          %2868 = vdwg.mxu0
          %v2869 = vadd.f32 %v2761, %v2864
          %s2870 = scalar_lea.vmem %s17, 448
          %v2871 = vld [vmem:[%s2870] sm:$0xf]
          %v2872 = vld [vmem:[%s2870 + $0x4] sm:$0xf]
          %v2873 = vld [vmem:[%s2870 + $0x8] sm:$0xf]
          %v2874 = vld [vmem:[%s2870 + $0xc] sm:$0xf]
          %v2875 = vld [vmem:[%s2870 + $0x10] sm:$0xf]
          %v2876 = vld [vmem:[%s2870 + $0x14] sm:$0xf]
          %v2877 = vld [vmem:[%s2870 + $0x18] sm:$0xf]
          %v2878 = vld [vmem:[%s2870 + $0x1c] sm:$0xf]
          %v2879 = vld [vmem:[%s2870 + $0x20] sm:$0xf]
          %v2880 = vld [vmem:[%s2870 + $0x24] sm:$0xf]
          %v2881 = vld [vmem:[%s2870 + $0x28] sm:$0xf]
          %v2882 = vld [vmem:[%s2870 + $0x2c] sm:$0xf]
          %v2883 = vld [vmem:[%s2870 + $0x30] sm:$0xf]
          %v2884 = vld [vmem:[%s2870 + $0x34] sm:$0xf]
          %v2885 = vld [vmem:[%s2870 + $0x38] sm:$0xf]
          %v2886 = vld [vmem:[%s2870 + $0x3c] sm:$0xf]
          %v2887 = vrot.slane %v2107, 7
          %v2905 = vunpack.c.l.b16 %v2871
          %v2906 = vunpack.c.l.b16 %v2872
          %v2907 = vunpack.c.l.b16 %v2873
          %v2908 = vunpack.c.l.b16 %v2874
          %v2909 = vunpack.c.l.b16 %v2875
          %v2910 = vunpack.c.l.b16 %v2876
          %v2911 = vunpack.c.l.b16 %v2877
          %v2912 = vunpack.c.l.b16 %v2878
          %v2913 = vunpack.c.l.b16 %v2879
          %v2914 = vunpack.c.l.b16 %v2880
          %v2915 = vunpack.c.l.b16 %v2881
          %v2916 = vunpack.c.l.b16 %v2882
          %v2917 = vunpack.c.l.b16 %v2883
          %v2918 = vunpack.c.l.b16 %v2884
          %v2919 = vunpack.c.l.b16 %v2885
          %v2920 = vunpack.c.l.b16 %v2886
          %v2921 = vpack.c.b16 %v2906, %v2905
          %v2922 = vpack.c.b16 %v2908, %v2907
          %v2923 = vpack.c.b16 %v2910, %v2909
          %v2924 = vpack.c.b16 %v2912, %v2911
          %v2925 = vpack.c.b16 %v2914, %v2913
          %v2926 = vpack.c.b16 %v2916, %v2915
          %v2927 = vpack.c.b16 %v2918, %v2917
          %v2928 = vpack.c.b16 %v2920, %v2919
          %2937 = vmatprep.subr.bf16.mxu0 0
          %2938 = vmatpush1.bf16.msra.mxu0 %v2921
          %2939 = vmatprep.subr.bf16.mxu0 0
          %2940 = vmatpush1.bf16.msra.mxu0 %v2922
          %2941 = vmatprep.subr.bf16.mxu0 0
          %2942 = vmatpush1.bf16.msra.mxu0 %v2923
          %2943 = vmatprep.subr.bf16.mxu0 0
          %2944 = vmatpush1.bf16.msra.mxu0 %v2924
          %2945 = vmatprep.subr.bf16.mxu0 0
          %2946 = vmatpush1.bf16.msra.mxu0 %v2925
          %2947 = vmatprep.subr.bf16.mxu0 0
          %2948 = vmatpush1.bf16.msra.mxu0 %v2926
          %2949 = vmatprep.subr.bf16.mxu0 0
          %2950 = vmatpush1.bf16.msra.mxu0 %v2927
          %2951 = vmatprep.subr.bf16.mxu0 0
          %2952 = vmatpush1.bf16.msra.mxu0 %v2928
          %2953 = vmatprep.subr.bf16.mxu0 0
          %2954 = vmatpush1.bf16.msra.mxu0 0
          %2955 = vmatprep.subr.bf16.mxu0 0
          %2956 = vmatpush1.bf16.msra.mxu0 0
          %2957 = vmatprep.subr.bf16.mxu0 0
          %2958 = vmatpush1.bf16.msra.mxu0 0
          %2959 = vmatprep.subr.bf16.mxu0 0
          %2960 = vmatpush1.bf16.msra.mxu0 0
          %2961 = vmatprep.subr.bf16.mxu0 0
          %2962 = vmatpush1.bf16.msra.mxu0 0
          %2963 = vmatprep.subr.bf16.mxu0 0
          %2964 = vmatpush1.bf16.msra.mxu0 0
          %2965 = vmatprep.subr.bf16.mxu0 0
          %2966 = vmatpush1.bf16.msra.mxu0 0
          %2967 = vmatprep.subr.bf16.mxu0 0
          %2968 = vmatpush1.bf16.msra.mxu0 0
          %2969 = vmatprep.mubr.bf16.mxu0 0
          %2970 = vmatmul.mubr.bf16.gmra.mrb[0].mxu0 %v2887
          %v2971 = vpop.f32.mrb[0].mxu0
          %v2972 = vadd.f32 0.0, %v2971
          %v2973 = vpop.f32.mrb[0].mxu0
          %v2974 = vpop.f32.mrb[0].mxu0
          %v2975 = vpop.f32.mrb[0].mxu0
          %2976 = vdwg.mxu0
          %v2977 = vadd.f32 %v2869, %v2972
          %vm2978 = vcmask 58368
          %2979 = vst.msk [vmem:[#allocation8] sm:$0x3] %vm2978, %v2977
        $region112: #{transformer_forward.1} parent=95 // pred_fallthru
          _
        // Predicated region
        $region113: #{transformer_forward.1} parent=95 // pred_check
          %p2980 = pneg %p509
        $region114: #{transformer_forward.1} parent=95 // pred_check_branch
          %2982 = sbr.rel (%p2980) target = $region116
        $region115: #{transformer_forward.1} parent=95 // pred_region
          %s2984 = ssub.s32 32, 32
          %2985 = vsyncadd [#allocation5], %s2984
          %s2987 = sshll.u32 [#allocation8], 4
          %s2988 = int_to_ptr.vmem [resolvable:$true] %s2987
          %2990 = dma.vmem_to_hbm [thread:$0]  %s2988, 32, %s19, [#allocation5]
        $region116: #{transformer_forward.1} parent=95 // pred_fallthru
          _
        // Predicated region
        $region117: #{transformer_forward.1} parent=95 // pred_check
          %p2991 = pneg %p509
        $region118: #{transformer_forward.1} parent=95 // pred_check_branch
          %2993 = sbr.rel (%p2991) target = $region120
        $region119: #{transformer_forward.1} parent=95 // pred_region
          %2994 = dma.done [#allocation5], 32
        $region120: #{transformer_forward.1} parent=95 // pred_fallthru
          _
      $region96: #{transformer_forward.1} parent=5 // pred_fallthru
        _
      %p2995 = scmp.le.s32.totalorder 2, %s32
      // Predicated region
      $region121: #{transformer_forward.1} parent=5 // pred_check
        %p2996 = pneg %p2995
      $region122: #{transformer_forward.1} parent=5 // pred_check_branch
        %2998 = sbr.rel (%p2996) target = $region124
      $region123: #{transformer_forward.1} parent=5 // pred_region
        %s2999 = ssub.s32 %s32, 2
      $region124: #{transformer_forward.1} parent=5 // pred_fallthru
        _
    $region6: #{transformer_forward.1} parent=1 // loop_footer
      %s36 = sadd.s32 1, %s32
    $region7: #{transformer_forward.1} parent=1 // loop_footer_branch
      %31 = sbr.rel target = $region3
    $region8: #{transformer_forward.1} parent=1 // loop_exit
      _
    %3000 = vsyncpa [#allocation4], 1
    %s3001 = scalar_lea.sflag [#allocation4], 1
    %3002 = vsyncpa %s3001, 1
    %3003 = vsyncpa [#allocation7], 1
    %s3004 = scalar_lea.sflag [#allocation7], 1
    %3005 = vsyncpa %s3004, 1
    %3006 = vsyncpa [#allocation5], 1
    %s3007 = scalar_lea.sflag [#allocation5], 1
    %3008 = vsyncpa %s3007, 1

</llo_original>
